<compile_context>
chip_gen: v7x
topology: tpu7x:2x2x1
jax: 0.10.0
libtpu: 0.0.40
codegen_flags: <defaults>
</compile_context>

<pallas_src>
import functools

import jax
import jax.numpy as jnp
from jax import lax
from jax.experimental import pallas as pl
from jax.experimental.pallas import tpu as pltpu


_TAPS = tuple((dy, dx) for dy in range(3) for dx in range(3))


# ---------------------------------------------------------------------------
# In-kernel 3x3 conv helper: per-tap (or row-grouped) accumulated MXU matmuls
# ---------------------------------------------------------------------------
def _accum_conv3x3(src_ref, w_ref, acc, rows, cols, group):
    """3x3 'SAME' conv over a zero-bordered VMEM window.

    src_ref: (rows+2, cols+2, K0) bf16 VMEM ref (1-px zero border already set).
    w_ref  : (9, K0, cout) bf16 if group == 1, (3, 3*K0, cout) if group == 3
             (BN scale already folded into the weights).
    acc    : (rows*cols, cout) f32 VMEM ref view -- explicit accumulator.
    """
    m = rows * cols
    k0 = src_ref.shape[-1]
    if group == 3:
        # Row-grouped taps: one matmul per kernel row, K = 3*K0 (keeps the MXU
        # K-dim filled on v6e/v7x when the layer's channel count is < 256).
        for dy in range(3):
            slab = jnp.concatenate(
                [src_ref[dy:dy + rows, dx:dx + cols, :].reshape(m, k0)
                 for dx in range(3)], axis=-1)
            c = jnp.dot(slab, w_ref[dy], preferred_element_type=jnp.float32)
            if dy == 0:
                acc[...] = c
            else:
                acc[...] += c
    else:
        # Pure per-tap accumulation: one shifted tap slab live at a time.
        for t, (dy, dx) in enumerate(_TAPS):
            slab = src_ref[dy:dy + rows, dx:dx + cols, :].reshape(m, k0)
            c = jnp.dot(slab, w_ref[t], preferred_element_type=jnp.float32)
            if t == 0:
                acc[...] = c
            else:
                acc[...] += c


# ---------------------------------------------------------------------------
# Fused Pallas kernel: pad + concat + (conv3x3 + folded-BN bias + ReLU) x 2,
# one TH-row tile per grid step.
# ---------------------------------------------------------------------------
def _encode_block_kernel(curr_ref, prev_ref, ctop_ref, ptop_ref, cbot_ref,
                         pbot_ref, w1_ref, b1_ref, w2_ref, b2_ref, o_ref,
                         xpad_ref, y1pad_ref, acc_ref,
                         *, tile_rows, group1, group2):
    th = tile_rows
    r = pl.program_id(1)
    nr = pl.num_programs(1)
    W = curr_ref.shape[2]
    c_prev = prev_ref.shape[3]
    c_curr = curr_ref.shape[3]
    cin = c_prev + c_curr
    cout = o_ref.shape[2]

    zrow = jnp.zeros((2, W, cin), xpad_ref.dtype)

    # ---- stage the padded + concatenated (th+4, W+2, cin) input window -----
    # Rows 0..1 / th+2..th+3 are the 2-row H halo for the fused conv pair,
    # cols 0 / W+1 are conv1's zero pad.  Only the border/halo band is written
    # with zeros; the interior is fully overwritten every step.
    xpad_ref[:, 0:1, :] = jnp.zeros((th + 4, 1, cin), xpad_ref.dtype)
    xpad_ref[:, W + 1:W + 2, :] = jnp.zeros((th + 4, 1, cin), xpad_ref.dtype)
    xpad_ref[2:th + 2, 1:W + 1, 0:c_prev] = prev_ref[0]        # fused concat:
    xpad_ref[2:th + 2, 1:W + 1, c_prev:cin] = curr_ref[0]      # prev | curr

    @pl.when(r > 0)
    def _():  # top halo = last 2 rows of the previous tile
        xpad_ref[0:2, 1:W + 1, 0:c_prev] = ptop_ref[0]
        xpad_ref[0:2, 1:W + 1, c_prev:cin] = ctop_ref[0]

    @pl.when(r == 0)
    def _():  # image top edge -> conv1 zero padding
        xpad_ref[0:2, 1:W + 1, :] = zrow

    @pl.when(r < nr - 1)
    def _():  # bottom halo = first 2 rows of the next tile
        xpad_ref[th + 2:th + 4, 1:W + 1, 0:c_prev] = pbot_ref[0]
        xpad_ref[th + 2:th + 4, 1:W + 1, c_prev:cin] = cbot_ref[0]

    @pl.when(r == nr - 1)
    def _():  # image bottom edge -> conv1 zero padding
        xpad_ref[th + 2:th + 4, 1:W + 1, :] = zrow

    # ---- conv1 (BN scale folded into weights) + bias + ReLU ----------------
    # Computed for th+2 output rows: the tile plus the 1-row halo conv2 needs.
    m1 = (th + 2) * W
    _accum_conv3x3(xpad_ref, w1_ref, acc_ref.at[0:m1, :], th + 2, W, group1)
    y1 = jnp.maximum(acc_ref[0:m1, :] + b1_ref[...], 0.0)

    # Stage conv1 output (+ conv2's zero border) in VMEM as bf16 -- the
    # intermediate activation never touches HBM and no full f32 slab is kept.
    y1pad_ref[:, 0:1, :] = jnp.zeros((th + 2, 1, cout), y1pad_ref.dtype)
    y1pad_ref[:, W + 1:W + 2, :] = jnp.zeros((th + 2, 1, cout), y1pad_ref.dtype)
    y1pad_ref[:, 1:W + 1, :] = y1.reshape(th + 2, W, cout).astype(y1pad_ref.dtype)

    @pl.when(r == 0)            # conv2's top zero pad at the image edge
    def _():
        y1pad_ref[0:1, :, :] = jnp.zeros((1, W + 2, cout), y1pad_ref.dtype)

    @pl.when(r == nr - 1)       # conv2's bottom zero pad at the image edge
    def _():
        y1pad_ref[th + 1:th + 2, :, :] = jnp.zeros((1, W + 2, cout),
                                                   y1pad_ref.dtype)

    # ---- conv2 + bias + ReLU -> output tile (kept 2-D: (th*W, cout)) -------
    m2 = th * W
    _accum_conv3x3(y1pad_ref, w2_ref, acc_ref.at[0:m2, :], th, W, group2)
    o_ref[0] = jnp.maximum(acc_ref[0:m2, :] + b2_ref[...], 0.0).astype(o_ref.dtype)


# ---------------------------------------------------------------------------
# Glue (plain JAX): bilinear upsample x2 (align_corners), F.pad, BN folding
# ---------------------------------------------------------------------------
def upsample_bilinear_x2_align_corners(x_nhwc):
    """nn.UpsamplingBilinear2d(scale_factor=2) == bilinear, align_corners=True."""
    N, H, W, C = x_nhwc.shape
    Ho, Wo = 2 * H, 2 * W
    ys = jnp.arange(Ho, dtype=jnp.float32) * (H - 1) / (Ho - 1)
    xs = jnp.arange(Wo, dtype=jnp.float32) * (W - 1) / (Wo - 1)
    y0 = jnp.floor(ys).astype(jnp.int32)
    x0 = jnp.floor(xs).astype(jnp.int32)
    y1 = jnp.minimum(y0 + 1, H - 1)
    x1 = jnp.minimum(x0 + 1, W - 1)
    wy = (ys - y0.astype(jnp.float32))[None, :, None, None]
    wx = (xs - x0.astype(jnp.float32))[None, None, :, None]

    top = x_nhwc[:, y0, :, :]
    bot = x_nhwc[:, y1, :, :]
    xh = top * (1.0 - wy) + bot * wy          # interp along H -> (N, Ho, W, C)
    left = xh[:, :, x0, :]
    right = xh[:, :, x1, :]
    return left * (1.0 - wx) + right * wx     # interp along W -> (N, Ho, Wo, C)


def _pad_or_crop_hw(prev, H, W):
    """F.pad semantics (zero pad, PyTorch split, negative pads crop) to (H, W).

    H and W differences are handled independently; when they coincide (the only
    case the PyTorch module's torch.cat accepts) this matches it exactly.
    """
    Hp, Wp = prev.shape[1], prev.shape[2]
    dh, dw = H - Hp, W - Wp
    top, bottom = dh // 2, dh - dh // 2
    left, right = dw // 2, dw - dw // 2
    ct, cb = max(0, -top), max(0, -bottom)
    cl, cr = max(0, -left), max(0, -right)
    if ct or cb or cl or cr:
        prev = prev[:, ct:Hp - cb, cl:Wp - cr, :]
    return jnp.pad(prev, ((0, 0), (max(0, top), max(0, bottom)),
                          (max(0, left), max(0, right)), (0, 0)))


def fold_bn(conv_bias, gamma, beta, running_mean, running_var, eps=1e-5):
    scale = gamma / jnp.sqrt(running_var + eps)
    bias = (conv_bias - running_mean) * scale + beta
    return scale, bias


def _vmem_limit_bytes():
    """~100 MiB on 128 MiB parts (v5e/v6e), ~50 MiB on 64 MiB parts (v7x)."""
    cap = 64 * 1024 * 1024
    try:
        cap = int(pltpu.get_tpu_info().vmem_capacity_bytes)
    except Exception:
        pass
    return min(int(cap * 0.78), 100 * 1024 * 1024)


def _pick_tile_rows(H, W, cin, cout, out_itemsize, budget_bytes,
                    max_tile_rows=None):
    """Largest even row-tile height (dividing H) whose VMEM need fits budget."""
    def vmem_bytes(th):
        lane = 128
        cin_l = -(-cin // lane) * lane            # last-dim lane padding
        cout_l = -(-cout // lane) * lane
        bf = 2
        io = 2 * (th * W * cin_l * bf             # main blocks (dbl-buffered)
                  + 2 * 2 * W * cin_l * bf        # halo blocks
                  + th * W * cout_l * out_itemsize)
        wgt = 2 * (9 * cin * cout * bf + 9 * cout * cout * bf + 2 * cout * 4)
        scr = ((th + 4) * (W + 2) * cin_l * bf    # xpad
               + (th + 2) * (W + 2) * cout_l * bf  # y1pad
               + (th + 2) * W * cout_l * 4)        # f32 accumulator
        tmp = (th + 2) * W * (3 * cin_l * bf + 2 * cout_l * 4)  # hidden temps
        return io + wgt + scr + tmp

    cands = [d for d in range(2, H + 1, 2)
             if H % d == 0 and (d * W) % 8 == 0]
    cands.append(H)                                # whole-image fallback
    cands = sorted(set(cands))
    if max_tile_rows is not None:
        cands = [d for d in cands if d <= max_tile_rows] or [min(cands)]
    fitting = [d for d in cands if vmem_bytes(d) <= budget_bytes]
    # TODO(synk): if nothing fits (enormous W), also tile along W.
    return max(fitting) if fitting else min(cands)


# ---------------------------------------------------------------------------
# Forward wrapper
# ---------------------------------------------------------------------------
def encode_block_forward(curr_nchw, prev_nchw, params, *,
                         out_dtype=jnp.float32, max_tile_rows=None,
                         taps_per_dot=None):
    """EncodeBlock.forward.  Inputs NCHW (PyTorch convention), output NCHW."""
    curr = jnp.transpose(curr_nchw, (0, 2, 3, 1))   # -> NHWC
    prev = jnp.transpose(prev_nchw, (0, 2, 3, 1))
    # bf16 BEFORE the x2 upsample: the 4x-sized intermediate that round-trips
    # HBM is half the bytes (interpolation math itself stays f32).
    curr = upsample_bilinear_x2_align_corners(
        curr.astype(jnp.bfloat16)).astype(jnp.bfloat16)
    prev = prev.astype(jnp.bfloat16)

    N, H, W, c_curr = curr.shape
    prev = _pad_or_crop_hw(prev, H, W)              # F.pad of the skip input
    c_prev = prev.shape[3]
    cin = c_prev + c_curr
    cout = params["w1"].shape[3]

    # Fold BN (inference form): scale goes INTO the conv weights, bias separate.
    s1, b1 = fold_bn(params["b1"], params["gamma1"], params["beta1"],
                     params["mean1"], params["var1"])
    s2, b2 = fold_bn(params["b2"], params["gamma2"], params["beta2"],
                     params["mean2"], params["var2"])
    w1f = (params["w1"] * s1[None, None, None, :]).astype(jnp.bfloat16)
    w2f = (params["w2"] * s2[None, None, None, :]).astype(jnp.bfloat16)

    # Keep each MXU matmul's K >= 256 where the layer allows it.
    group1 = taps_per_dot if taps_per_dot is not None else (3 if cin < 256 else 1)
    group2 = taps_per_dot if taps_per_dot is not None else (3 if cout < 256 else 1)
    w1 = w1f.reshape(3, 3 * cin, cout) if group1 == 3 else w1f.reshape(9, cin, cout)
    w2 = w2f.reshape(3, 3 * cout, cout) if group2 == 3 else w2f.reshape(9, cout, cout)
    b1 = b1.reshape(1, cout).astype(jnp.float32)
    b2 = b2.reshape(1, cout).astype(jnp.float32)

    # Row-tile height from the per-generation VMEM budget.
    vmem_limit = _vmem_limit_bytes()
    th = _pick_tile_rows(H, W, cin, cout, jnp.dtype(out_dtype).itemsize,
                         budget_bytes=int(0.55 * vmem_limit),
                         max_tile_rows=max_tile_rows)
    n_tiles = H // th

    # Halo rows come from the neighbouring tiles via tiny (2, W, C) blocks;
    # the index is clamped at the image edges (content unused there).
    def top_idx(n, r):
        return (n, jnp.maximum(r * (th // 2) - 1, 0), 0, 0)

    def bot_idx(n, r):
        return (n, jnp.minimum((r + 1) * (th // 2), H // 2 - 1), 0, 0)

    kernel = functools.partial(_encode_block_kernel, tile_rows=th,
                               group1=group1, group2=group2)

    out = pl.pallas_call(
        kernel,
        out_shape=jax.ShapeDtypeStruct((N, H * W, cout), out_dtype),
        grid_spec=pltpu.PrefetchScalarGridSpec(
            num_scalar_prefetch=0,
            grid=(N, n_tiles),
            in_specs=[
                pl.BlockSpec((1, th, W, c_curr), lambda n, r: (n, r, 0, 0)),
                pl.BlockSpec((1, th, W, c_prev), lambda n, r: (n, r, 0, 0)),
                pl.BlockSpec((1, 2, W, c_curr), top_idx),
                pl.BlockSpec((1, 2, W, c_prev), top_idx),
                pl.BlockSpec((1, 2, W, c_curr), bot_idx),
                pl.BlockSpec((1, 2, W, c_prev), bot_idx),
                pl.BlockSpec(w1.shape, lambda n, r: (0, 0, 0)),
                pl.BlockSpec((1, cout), lambda n, r: (0, 0)),
                pl.BlockSpec(w2.shape, lambda n, r: (0, 0, 0)),
                pl.BlockSpec((1, cout), lambda n, r: (0, 0)),
            ],
            out_specs=pl.BlockSpec((1, th * W, cout), lambda n, r: (n, r, 0)),
            scratch_shapes=[
                pltpu.VMEM((th + 4, W + 2, cin), jnp.bfloat16),   # xpad
                pltpu.VMEM((th + 2, W + 2, cout), jnp.bfloat16),  # y1pad
                pltpu.VMEM(((th + 2) * W, cout), jnp.float32),    # f32 acc
            ],
        ),
        compiler_params=pltpu.CompilerParams(
            dimension_semantics=("parallel", "parallel"),
            vmem_limit_bytes=vmem_limit,
        ),
    )(curr, prev, curr, prev, curr, prev, w1, b1, w2, b2)

    out = out.reshape(N, H, W, cout)            # metadata-only reshape in HBM
    return jnp.transpose(out, (0, 3, 1, 2))     # -> NCHW


# ---------------------------------------------------------------------------
# Pure-JAX reference (same bf16 quantization points) for correctness checking
# ---------------------------------------------------------------------------
def encode_block_reference(curr_nchw, prev_nchw, params):
    curr = jnp.transpose(curr_nchw, (0, 2, 3, 1))
    prev = jnp.transpose(prev_nchw, (0, 2, 3, 1))
    curr = upsample_bilinear_x2_align_corners(
        curr.astype(jnp.bfloat16)).astype(jnp.bfloat16)
    prev = prev.astype(jnp.bfloat16)
    H, W = curr.shape[1], curr.shape[2]
    prev = _pad_or_crop_hw(prev, H, W)
    x = jnp.concatenate([prev, curr], axis=-1)

    s1, b1 = fold_bn(params["b1"], params["gamma1"], params["beta1"],
                     params["mean1"], params["var1"])
    s2, b2 = fold_bn(params["b2"], params["gamma2"], params["beta2"],
                     params["mean2"], params["var2"])
    w1f = (params["w1"] * s1[None, None, None, :]).astype(jnp.bfloat16)
    w2f = (params["w2"] * s2[None, None, None, :]).astype(jnp.bfloat16)

    def conv_bias_relu(x, w, b):
        y = lax.conv_general_dilated(
            x, w, window_strides=(1, 1), padding="SAME",
            dimension_numbers=("NHWC", "HWIO", "NHWC"),
            preferred_element_type=jnp.float32)
        return jnp.maximum(y + b[None, None, None, :], 0.0)

    y = conv_bias_relu(x, w1f, b1)
    y = conv_bias_relu(y.astype(jnp.bfloat16), w2f, b2)   # kernel keeps y1 bf16
    return jnp.transpose(y, (0, 3, 1, 2))


# ---------------------------------------------------------------------------
if __name__ == "__main__":
    key = jax.random.PRNGKey(0)
    k = jax.random.split(key, 16)

    # curr (N=2, C=4, 8, 8) upsampled -> 16x16; prev (N=2, C=4, 14, 14) padded
    # by 1 per side.  Concat channels: in_ch = 8, out_ch = 8.
    N, c_curr, c_prev = 2, 4, 4
    in_ch = c_curr + c_prev
    out_ch = 8

    curr = jax.random.normal(k[0], (N, c_curr, 8, 8), jnp.float32)
    prev = jax.random.normal(k[1], (N, c_prev, 14, 14), jnp.float32)

    params = {
        # conv1: Conv2d(in_ch, out_ch, 3, 1, 1) -- weights stored HWIO
        "w1": 0.1 * jax.random.normal(k[2], (3, 3, in_ch, out_ch), jnp.float32),
        "b1": 0.05 * jax.random.normal(k[3], (out_ch,), jnp.float32),
        "gamma1": 1.0 + 0.1 * jax.random.normal(k[4], (out_ch,), jnp.float32),
        "beta1": 0.1 * jax.random.normal(k[5], (out_ch,), jnp.float32),
        "mean1": 0.1 * jax.random.normal(k[6], (out_ch,), jnp.float32),
        "var1": 0.5 + jax.random.uniform(k[7], (out_ch,), jnp.float32),
        # conv2: Conv2d(out_ch, out_ch, 3, 1, 1)
        "w2": 0.1 * jax.random.normal(k[8], (3, 3, out_ch, out_ch), jnp.float32),
        "b2": 0.05 * jax.random.normal(k[9], (out_ch,), jnp.float32),
        "gamma2": 1.0 + 0.1 * jax.random.normal(k[10], (out_ch,), jnp.float32),
        "beta2": 0.1 * jax.random.normal(k[11], (out_ch,), jnp.float32),
        "mean2": 0.1 * jax.random.normal(k[12], (out_ch,), jnp.float32),
        "var2": 0.5 + jax.random.uniform(k[13], (out_ch,), jnp.float32),
    }

    want = jax.block_until_ready(encode_block_reference(curr, prev, params))

    # (a) Row-tiled path: 2 tiles of 8 rows -> exercises halo fetch and both
    #     image-edge branches; tap-grouped matmuls (K = 3*cin).
    out = encode_block_forward(curr, prev, params, max_tile_rows=8)
    out = jax.block_until_ready(out)
    assert out.shape == (N, out_ch, 16, 16), out.shape
    err = float(jnp.max(jnp.abs(out - want)))
    assert err < 2e-2, err

    # (b) Single-tile path with pure per-tap accumulation (K = cin).
    out2 = encode_block_forward(curr, prev, params, taps_per_dot=1)
    out2 = jax.block_until_ready(out2)
    err2 = float(jnp.max(jnp.abs(out2 - want)))
    assert err2 < 2e-2, err2

    print("KERNEL_OK")
</pallas_src>

<mosaic_0001>
module attributes {stable_mosaic.version = 11 : i64} {
  func.func @_encode_block_kernel(%arg0: i32, %arg1: i32, %arg2: memref<1x8x16x4xbf16, #tpu.memory_space<vmem>>, %arg3: memref<1x8x16x4xbf16, #tpu.memory_space<vmem>>, %arg4: memref<1x2x16x4xbf16, #tpu.memory_space<vmem>>, %arg5: memref<1x2x16x4xbf16, #tpu.memory_space<vmem>>, %arg6: memref<1x2x16x4xbf16, #tpu.memory_space<vmem>>, %arg7: memref<1x2x16x4xbf16, #tpu.memory_space<vmem>>, %arg8: memref<3x24x8xbf16, #tpu.memory_space<vmem>>, %arg9: memref<1x8xf32, #tpu.memory_space<vmem>>, %arg10: memref<3x24x8xbf16, #tpu.memory_space<vmem>>, %arg11: memref<1x8xf32, #tpu.memory_space<vmem>>, %arg12: memref<1x128x8xf32, #tpu.memory_space<vmem>>, %arg13: memref<12x18x8xbf16, #tpu.memory_space<vmem>>, %arg14: memref<10x18x8xbf16, #tpu.memory_space<vmem>>, %arg15: memref<160x8xf32, #tpu.memory_space<vmem>>) attributes {dimension_semantics = [#tpu.dimension_semantics<parallel>, #tpu.dimension_semantics<parallel>], iteration_bounds = array<i64: 2, 2>, scalar_prefetch = 0 : i64, scratch_operands = 3 : i64, tpu.core_type = #tpu.core_type<tc>, window_params = [{transform_indices = @transform_0, window_bounds = array<i64: 1, 8, 16, 4>}, {transform_indices = @transform_1, window_bounds = array<i64: 1, 8, 16, 4>}, {transform_indices = @transform_2, window_bounds = array<i64: 1, 2, 16, 4>}, {transform_indices = @transform_3, window_bounds = array<i64: 1, 2, 16, 4>}, {transform_indices = @transform_4, window_bounds = array<i64: 1, 2, 16, 4>}, {transform_indices = @transform_5, window_bounds = array<i64: 1, 2, 16, 4>}, {pipeline_mode = #tpu.pipeline_mode<synchronous>, transform_indices = @transform_6, window_bounds = array<i64: 3, 24, 8>}, {pipeline_mode = #tpu.pipeline_mode<synchronous>, transform_indices = @transform_7, window_bounds = array<i64: 1, 8>}, {pipeline_mode = #tpu.pipeline_mode<synchronous>, transform_indices = @transform_8, window_bounds = array<i64: 3, 24, 8>}, {pipeline_mode = #tpu.pipeline_mode<synchronous>, transform_indices = @transform_9, window_bounds = array<i64: 1, 8>}, {transform_indices = @transform_10, window_bounds = array<i64: 1, 128, 8>}]} {
    %cst = arith.constant 0.000000e+00 : bf16
    %0 = vector.broadcast %cst : bf16 to vector<2x16x8xbf16>
    %cst_0 = arith.constant 0.000000e+00 : bf16
    %1 = vector.broadcast %cst_0 : bf16 to vector<12x1x8xbf16>
    %c0 = arith.constant 0 : index
    %c0_1 = arith.constant 0 : index
    %c0_2 = arith.constant 0 : index
    %2 = vector.load %arg13[%c0, %c0_1, %c0_2] : memref<12x18x8xbf16, #tpu.memory_space<vmem>>, vector<12x1x8xbf16>
    tpu.vector_store %arg13[%c0, %c0_1, %c0_2], %1 {strides = array<i32>} : memref<12x18x8xbf16, #tpu.memory_space<vmem>>, vector<12x1x8xbf16>,
    %cst_3 = arith.constant 0.000000e+00 : bf16
    %3 = vector.broadcast %cst_3 : bf16 to vector<12x1x8xbf16>
    %c0_4 = arith.constant 0 : index
    %c17 = arith.constant 17 : index
    %c0_5 = arith.constant 0 : index
    %4 = vector.load %arg13[%c0_4, %c17, %c0_5] : memref<12x18x8xbf16, #tpu.memory_space<vmem>>, vector<12x1x8xbf16>
    tpu.vector_store %arg13[%c0_4, %c17, %c0_5], %3 {strides = array<i32>} : memref<12x18x8xbf16, #tpu.memory_space<vmem>>, vector<12x1x8xbf16>,
    %c0_6 = arith.constant 0 : index
    %c0_7 = arith.constant 0 : index
    %c0_8 = arith.constant 0 : index
    %c0_9 = arith.constant 0 : index
    %5 = vector.load %arg3[%c0_6, %c0_7, %c0_8, %c0_9] : memref<1x8x16x4xbf16, #tpu.memory_space<vmem>>, vector<1x8x16x4xbf16>
    %6 = vector.shape_cast %5 : vector<1x8x16x4xbf16> to vector<8x16x4xbf16>
    %c2 = arith.constant 2 : index
    %c1 = arith.constant 1 : index
    %c0_10 = arith.constant 0 : index
    %7 = vector.load %arg13[%c2, %c1, %c0_10] : memref<12x18x8xbf16, #tpu.memory_space<vmem>>, vector<8x16x4xbf16>
    tpu.vector_store %arg13[%c2, %c1, %c0_10], %6 {strides = array<i32>} : memref<12x18x8xbf16, #tpu.memory_space<vmem>>, vector<8x16x4xbf16>,
    %c0_11 = arith.constant 0 : index
    %c0_12 = arith.constant 0 : index
    %c0_13 = arith.constant 0 : index
    %c0_14 = arith.constant 0 : index
    %8 = vector.load %arg2[%c0_11, %c0_12, %c0_13, %c0_14] : memref<1x8x16x4xbf16, #tpu.memory_space<vmem>>, vector<1x8x16x4xbf16>
    %9 = vector.shape_cast %8 : vector<1x8x16x4xbf16> to vector<8x16x4xbf16>
    %c2_15 = arith.constant 2 : index
    %c1_16 = arith.constant 1 : index
    %c4 = arith.constant 4 : index
    %10 = vector.load %arg13[%c2_15, %c1_16, %c4] : memref<12x18x8xbf16, #tpu.memory_space<vmem>>, vector<8x16x4xbf16>
    tpu.vector_store %arg13[%c2_15, %c1_16, %c4], %9 {strides = array<i32>} : memref<12x18x8xbf16, #tpu.memory_space<vmem>>, vector<8x16x4xbf16>,
    %c0_i32 = arith.constant 0 : i32
    %11 = arith.cmpi sgt, %arg1, %c0_i32 : i32
    %12 = arith.extui %11 : i1 to i32
    %c0_i32_17 = arith.constant 0 : i32
    %13 = arith.cmpi ne, %12, %c0_i32_17 : i32
    scf.if %13 {
      %c0_149 = arith.constant 0 : index
      %c0_150 = arith.constant 0 : index
      %c0_151 = arith.constant 0 : index
      %c0_152 = arith.constant 0 : index
      %125 = vector.load %arg5[%c0_149, %c0_150, %c0_151, %c0_152] : memref<1x2x16x4xbf16, #tpu.memory_space<vmem>>, vector<1x2x16x4xbf16>
      %126 = vector.shape_cast %125 : vector<1x2x16x4xbf16> to vector<2x16x4xbf16>
      %c0_153 = arith.constant 0 : index
      %c1_154 = arith.constant 1 : index
      %c0_155 = arith.constant 0 : index
      %127 = vector.load %arg13[%c0_153, %c1_154, %c0_155] : memref<12x18x8xbf16, #tpu.memory_space<vmem>>, vector<2x16x4xbf16>
      tpu.vector_store %arg13[%c0_153, %c1_154, %c0_155], %126 {strides = array<i32>} : memref<12x18x8xbf16, #tpu.memory_space<vmem>>, vector<2x16x4xbf16>,
      %c0_156 = arith.constant 0 : index
      %c0_157 = arith.constant 0 : index
      %c0_158 = arith.constant 0 : index
      %c0_159 = arith.constant 0 : index
      %128 = vector.load %arg4[%c0_156, %c0_157, %c0_158, %c0_159] : memref<1x2x16x4xbf16, #tpu.memory_space<vmem>>, vector<1x2x16x4xbf16>
      %129 = vector.shape_cast %128 : vector<1x2x16x4xbf16> to vector<2x16x4xbf16>
      %c0_160 = arith.constant 0 : index
      %c1_161 = arith.constant 1 : index
      %c4_162 = arith.constant 4 : index
      %130 = vector.load %arg13[%c0_160, %c1_161, %c4_162] : memref<12x18x8xbf16, #tpu.memory_space<vmem>>, vector<2x16x4xbf16>
      tpu.vector_store %arg13[%c0_160, %c1_161, %c4_162], %129 {strides = array<i32>} : memref<12x18x8xbf16, #tpu.memory_space<vmem>>, vector<2x16x4xbf16>,
    } else {
    }
    %c0_i32_18 = arith.constant 0 : i32
    %14 = arith.cmpi eq, %arg1, %c0_i32_18 : i32
    %15 = arith.extui %14 : i1 to i32
    %c0_i32_19 = arith.constant 0 : i32
    %16 = arith.cmpi ne, %15, %c0_i32_19 : i32
    scf.if %16 {
      %c0_149 = arith.constant 0 : index
      %c1_150 = arith.constant 1 : index
      %c0_151 = arith.constant 0 : index
      %125 = vector.load %arg13[%c0_149, %c1_150, %c0_151] : memref<12x18x8xbf16, #tpu.memory_space<vmem>>, vector<2x16x8xbf16>
      tpu.vector_store %arg13[%c0_149, %c1_150, %c0_151], %0 {strides = array<i32>} : memref<12x18x8xbf16, #tpu.memory_space<vmem>>, vector<2x16x8xbf16>,
    } else {
    }
    %c1_i32 = arith.constant 1 : i32
    %17 = arith.cmpi slt, %arg1, %c1_i32 : i32
    %18 = arith.extui %17 : i1 to i32
    %c0_i32_20 = arith.constant 0 : i32
    %19 = arith.cmpi ne, %18, %c0_i32_20 : i32
    scf.if %19 {
      %c0_149 = arith.constant 0 : index
      %c0_150 = arith.constant 0 : index
      %c0_151 = arith.constant 0 : index
      %c0_152 = arith.constant 0 : index
      %125 = vector.load %arg7[%c0_149, %c0_150, %c0_151, %c0_152] : memref<1x2x16x4xbf16, #tpu.memory_space<vmem>>, vector<1x2x16x4xbf16>
      %126 = vector.shape_cast %125 : vector<1x2x16x4xbf16> to vector<2x16x4xbf16>
      %c10 = arith.constant 10 : index
      %c1_153 = arith.constant 1 : index
      %c0_154 = arith.constant 0 : index
      %127 = vector.load %arg13[%c10, %c1_153, %c0_154] : memref<12x18x8xbf16, #tpu.memory_space<vmem>>, vector<2x16x4xbf16>
      tpu.vector_store %arg13[%c10, %c1_153, %c0_154], %126 {strides = array<i32>} : memref<12x18x8xbf16, #tpu.memory_space<vmem>>, vector<2x16x4xbf16>,
      %c0_155 = arith.constant 0 : index
      %c0_156 = arith.constant 0 : index
      %c0_157 = arith.constant 0 : index
      %c0_158 = arith.constant 0 : index
      %128 = vector.load %arg6[%c0_155, %c0_156, %c0_157, %c0_158] : memref<1x2x16x4xbf16, #tpu.memory_space<vmem>>, vector<1x2x16x4xbf16>
      %129 = vector.shape_cast %128 : vector<1x2x16x4xbf16> to vector<2x16x4xbf16>
      %c10_159 = arith.constant 10 : index
      %c1_160 = arith.constant 1 : index
      %c4_161 = arith.constant 4 : index
      %130 = vector.load %arg13[%c10_159, %c1_160, %c4_161] : memref<12x18x8xbf16, #tpu.memory_space<vmem>>, vector<2x16x4xbf16>
      tpu.vector_store %arg13[%c10_159, %c1_160, %c4_161], %129 {strides = array<i32>} : memref<12x18x8xbf16, #tpu.memory_space<vmem>>, vector<2x16x4xbf16>,
    } else {
    }
    %c1_i32_21 = arith.constant 1 : i32
    %20 = arith.cmpi eq, %arg1, %c1_i32_21 : i32
    %21 = arith.extui %20 : i1 to i32
    %c0_i32_22 = arith.constant 0 : i32
    %22 = arith.cmpi ne, %21, %c0_i32_22 : i32
    scf.if %22 {
      %c10 = arith.constant 10 : index
      %c1_149 = arith.constant 1 : index
      %c0_150 = arith.constant 0 : index
      %125 = vector.load %arg13[%c10, %c1_149, %c0_150] : memref<12x18x8xbf16, #tpu.memory_space<vmem>>, vector<2x16x8xbf16>
      tpu.vector_store %arg13[%c10, %c1_149, %c0_150], %0 {strides = array<i32>} : memref<12x18x8xbf16, #tpu.memory_space<vmem>>, vector<2x16x8xbf16>,
    } else {
    }
    %c0_23 = arith.constant 0 : index
    %c0_24 = arith.constant 0 : index
    %c0_25 = arith.constant 0 : index
    %23 = vector.load %arg13[%c0_23, %c0_24, %c0_25] : memref<12x18x8xbf16, #tpu.memory_space<vmem>>, vector<10x16x8xbf16>
    %24 = vector.shape_cast %23 : vector<10x16x8xbf16> to vector<160x8xbf16>
    %c0_26 = arith.constant 0 : index
    %c1_27 = arith.constant 1 : index
    %c0_28 = arith.constant 0 : index
    %25 = vector.load %arg13[%c0_26, %c1_27, %c0_28] : memref<12x18x8xbf16, #tpu.memory_space<vmem>>, vector<10x16x8xbf16>
    %26 = vector.shape_cast %25 : vector<10x16x8xbf16> to vector<160x8xbf16>
    %c0_29 = arith.constant 0 : index
    %c2_30 = arith.constant 2 : index
    %c0_31 = arith.constant 0 : index
    %27 = vector.load %arg13[%c0_29, %c2_30, %c0_31] : memref<12x18x8xbf16, #tpu.memory_space<vmem>>, vector<10x16x8xbf16>
    %28 = vector.shape_cast %27 : vector<10x16x8xbf16> to vector<160x8xbf16>
    %29 = tpu.concatenate %24, %26, %28 in 1 : vector<160x8xbf16>, vector<160x8xbf16>, vector<160x8xbf16> -> vector<160x24xbf16>
    %c0_32 = arith.constant 0 : index
    %c0_33 = arith.constant 0 : index
    %c0_34 = arith.constant 0 : index
    %30 = vector.load %arg8[%c0_32, %c0_33, %c0_34] : memref<3x24x8xbf16, #tpu.memory_space<vmem>>, vector<1x24x8xbf16>
    %31 = vector.shape_cast %30 : vector<1x24x8xbf16> to vector<24x8xbf16>
    %cst_35 = arith.constant dense<0.000000e+00> : vector<160x8xf32>
    %32 = tpu.matmul %29, %31, %cst_35 {dimension_numbers = #tpu.dot_dimension_numbers<[1], [0], [0], [1], [0, 0, 1, 1], [], []>} : vector<160x24xbf16>, vector<24x8xbf16>, vector<160x8xf32> -> vector<160x8xf32>
    %c0_36 = arith.constant 0 : index
    %c0_37 = arith.constant 0 : index
    %33 = vector.load %arg15[%c0_36, %c0_37] : memref<160x8xf32, #tpu.memory_space<vmem>>, vector<160x8xf32>
    tpu.vector_store %arg15[%c0_36, %c0_37], %32 {strides = array<i32>} : memref<160x8xf32, #tpu.memory_space<vmem>>, vector<160x8xf32>,
    %c1_38 = arith.constant 1 : index
    %c0_39 = arith.constant 0 : index
    %c0_40 = arith.constant 0 : index
    %34 = vector.load %arg13[%c1_38, %c0_39, %c0_40] : memref<12x18x8xbf16, #tpu.memory_space<vmem>>, vector<10x16x8xbf16>
    %35 = vector.shape_cast %34 : vector<10x16x8xbf16> to vector<160x8xbf16>
    %c1_41 = arith.constant 1 : index
    %c1_42 = arith.constant 1 : index
    %c0_43 = arith.constant 0 : index
    %36 = vector.load %arg13[%c1_41, %c1_42, %c0_43] : memref<12x18x8xbf16, #tpu.memory_space<vmem>>, vector<10x16x8xbf16>
    %37 = vector.shape_cast %36 : vector<10x16x8xbf16> to vector<160x8xbf16>
    %c1_44 = arith.constant 1 : index
    %c2_45 = arith.constant 2 : index
    %c0_46 = arith.constant 0 : index
    %38 = vector.load %arg13[%c1_44, %c2_45, %c0_46] : memref<12x18x8xbf16, #tpu.memory_space<vmem>>, vector<10x16x8xbf16>
    %39 = vector.shape_cast %38 : vector<10x16x8xbf16> to vector<160x8xbf16>
    %40 = tpu.concatenate %35, %37, %39 in 1 : vector<160x8xbf16>, vector<160x8xbf16>, vector<160x8xbf16> -> vector<160x24xbf16>
    %c1_47 = arith.constant 1 : index
    %c0_48 = arith.constant 0 : index
    %c0_49 = arith.constant 0 : index
    %41 = vector.load %arg8[%c1_47, %c0_48, %c0_49] : memref<3x24x8xbf16, #tpu.memory_space<vmem>>, vector<1x24x8xbf16>
    %42 = vector.shape_cast %41 : vector<1x24x8xbf16> to vector<24x8xbf16>
    %cst_50 = arith.constant dense<0.000000e+00> : vector<160x8xf32>
    %43 = tpu.matmul %40, %42, %cst_50 {dimension_numbers = #tpu.dot_dimension_numbers<[1], [0], [0], [1], [0, 0, 1, 1], [], []>} : vector<160x24xbf16>, vector<24x8xbf16>, vector<160x8xf32> -> vector<160x8xf32>
    %c0_51 = arith.constant 0 : index
    %c0_52 = arith.constant 0 : index
    %44 = vector.load %arg15[%c0_51, %c0_52] : memref<160x8xf32, #tpu.memory_space<vmem>>, vector<160x8xf32>
    %45 = arith.addf %44, %43 : vector<160x8xf32>
    %c0_53 = arith.constant 0 : index
    %c0_54 = arith.constant 0 : index
    %46 = vector.load %arg15[%c0_53, %c0_54] : memref<160x8xf32, #tpu.memory_space<vmem>>, vector<160x8xf32>
    tpu.vector_store %arg15[%c0_53, %c0_54], %45 {strides = array<i32>} : memref<160x8xf32, #tpu.memory_space<vmem>>, vector<160x8xf32>,
    %c2_55 = arith.constant 2 : index
    %c0_56 = arith.constant 0 : index
    %c0_57 = arith.constant 0 : index
    %47 = vector.load %arg13[%c2_55, %c0_56, %c0_57] : memref<12x18x8xbf16, #tpu.memory_space<vmem>>, vector<10x16x8xbf16>
    %48 = vector.shape_cast %47 : vector<10x16x8xbf16> to vector<160x8xbf16>
    %c2_58 = arith.constant 2 : index
    %c1_59 = arith.constant 1 : index
    %c0_60 = arith.constant 0 : index
    %49 = vector.load %arg13[%c2_58, %c1_59, %c0_60] : memref<12x18x8xbf16, #tpu.memory_space<vmem>>, vector<10x16x8xbf16>
    %50 = vector.shape_cast %49 : vector<10x16x8xbf16> to vector<160x8xbf16>
    %c2_61 = arith.constant 2 : index
    %c2_62 = arith.constant 2 : index
    %c0_63 = arith.constant 0 : index
    %51 = vector.load %arg13[%c2_61, %c2_62, %c0_63] : memref<12x18x8xbf16, #tpu.memory_space<vmem>>, vector<10x16x8xbf16>
    %52 = vector.shape_cast %51 : vector<10x16x8xbf16> to vector<160x8xbf16>
    %53 = tpu.concatenate %48, %50, %52 in 1 : vector<160x8xbf16>, vector<160x8xbf16>, vector<160x8xbf16> -> vector<160x24xbf16>
    %c2_64 = arith.constant 2 : index
    %c0_65 = arith.constant 0 : index
    %c0_66 = arith.constant 0 : index
    %54 = vector.load %arg8[%c2_64, %c0_65, %c0_66] : memref<3x24x8xbf16, #tpu.memory_space<vmem>>, vector<1x24x8xbf16>
    %55 = vector.shape_cast %54 : vector<1x24x8xbf16> to vector<24x8xbf16>
    %cst_67 = arith.constant dense<0.000000e+00> : vector<160x8xf32>
    %56 = tpu.matmul %53, %55, %cst_67 {dimension_numbers = #tpu.dot_dimension_numbers<[1], [0], [0], [1], [0, 0, 1, 1], [], []>} : vector<160x24xbf16>, vector<24x8xbf16>, vector<160x8xf32> -> vector<160x8xf32>
    %c0_68 = arith.constant 0 : index
    %c0_69 = arith.constant 0 : index
    %57 = vector.load %arg15[%c0_68, %c0_69] : memref<160x8xf32, #tpu.memory_space<vmem>>, vector<160x8xf32>
    %58 = arith.addf %57, %56 : vector<160x8xf32>
    %c0_70 = arith.constant 0 : index
    %c0_71 = arith.constant 0 : index
    %59 = vector.load %arg15[%c0_70, %c0_71] : memref<160x8xf32, #tpu.memory_space<vmem>>, vector<160x8xf32>
    tpu.vector_store %arg15[%c0_70, %c0_71], %58 {strides = array<i32>} : memref<160x8xf32, #tpu.memory_space<vmem>>, vector<160x8xf32>,
    %c0_72 = arith.constant 0 : index
    %c0_73 = arith.constant 0 : index
    %60 = vector.load %arg15[%c0_72, %c0_73] : memref<160x8xf32, #tpu.memory_space<vmem>>, vector<160x8xf32>
    %c0_74 = arith.constant 0 : index
    %c0_75 = arith.constant 0 : index
    %61 = vector.load %arg9[%c0_74, %c0_75] : memref<1x8xf32, #tpu.memory_space<vmem>>, vector<1x8xf32>
    %62 = vector.broadcast %61 : vector<1x8xf32> to vector<160x8xf32>
    %63 = arith.addf %60, %62 : vector<160x8xf32>
    %cst_76 = arith.constant 0.000000e+00 : f32
    %64 = vector.broadcast %cst_76 : f32 to vector<160x8xf32>
    %65 = arith.maximumf %63, %64 : vector<160x8xf32>
    %cst_77 = arith.constant 0.000000e+00 : bf16
    %66 = vector.broadcast %cst_77 : bf16 to vector<10x1x8xbf16>
    %c0_78 = arith.constant 0 : index
    %c0_79 = arith.constant 0 : index
    %c0_80 = arith.constant 0 : index
    %67 = vector.load %arg14[%c0_78, %c0_79, %c0_80] : memref<10x18x8xbf16, #tpu.memory_space<vmem>>, vector<10x1x8xbf16>
    tpu.vector_store %arg14[%c0_78, %c0_79, %c0_80], %66 {strides = array<i32>} : memref<10x18x8xbf16, #tpu.memory_space<vmem>>, vector<10x1x8xbf16>,
    %cst_81 = arith.constant 0.000000e+00 : bf16
    %68 = vector.broadcast %cst_81 : bf16 to vector<10x1x8xbf16>
    %c0_82 = arith.constant 0 : index
    %c17_83 = arith.constant 17 : index
    %c0_84 = arith.constant 0 : index
    %69 = vector.load %arg14[%c0_82, %c17_83, %c0_84] : memref<10x18x8xbf16, #tpu.memory_space<vmem>>, vector<10x1x8xbf16>
    tpu.vector_store %arg14[%c0_82, %c17_83, %c0_84], %68 {strides = array<i32>} : memref<10x18x8xbf16, #tpu.memory_space<vmem>>, vector<10x1x8xbf16>,
    %70 = vector.shape_cast %65 : vector<160x8xf32> to vector<10x16x8xf32>
    %71 = arith.truncf %70 : vector<10x16x8xf32> to vector<10x16x8xbf16>
    %c0_85 = arith.constant 0 : index
    %c1_86 = arith.constant 1 : index
    %c0_87 = arith.constant 0 : index
    %72 = vector.load %arg14[%c0_85, %c1_86, %c0_87] : memref<10x18x8xbf16, #tpu.memory_space<vmem>>, vector<10x16x8xbf16>
    tpu.vector_store %arg14[%c0_85, %c1_86, %c0_87], %71 {strides = array<i32>} : memref<10x18x8xbf16, #tpu.memory_space<vmem>>, vector<10x16x8xbf16>,
    %c0_i32_88 = arith.constant 0 : i32
    %73 = arith.cmpi eq, %arg1, %c0_i32_88 : i32
    %74 = arith.extui %73 : i1 to i32
    %c0_i32_89 = arith.constant 0 : i32
    %75 = arith.cmpi ne, %74, %c0_i32_89 : i32
    scf.if %75 {
      %cst_149 = arith.constant 0.000000e+00 : bf16
      %125 = vector.broadcast %cst_149 : bf16 to vector<1x18x8xbf16>
      %c0_150 = arith.constant 0 : index
      %c0_151 = arith.constant 0 : index
      %c0_152 = arith.constant 0 : index
      %126 = vector.load %arg14[%c0_150, %c0_151, %c0_152] : memref<10x18x8xbf16, #tpu.memory_space<vmem>>, vector<1x18x8xbf16>
      tpu.vector_store %arg14[%c0_150, %c0_151, %c0_152], %125 {strides = array<i32>} : memref<10x18x8xbf16, #tpu.memory_space<vmem>>, vector<1x18x8xbf16>,
    } else {
    }
    %c1_i32_90 = arith.constant 1 : i32
    %76 = arith.cmpi eq, %arg1, %c1_i32_90 : i32
    %77 = arith.extui %76 : i1 to i32
    %c0_i32_91 = arith.constant 0 : i32
    %78 = arith.cmpi ne, %77, %c0_i32_91 : i32
    scf.if %78 {
      %cst_149 = arith.constant 0.000000e+00 : bf16
      %125 = vector.broadcast %cst_149 : bf16 to vector<1x18x8xbf16>
      %c9 = arith.constant 9 : index
      %c0_150 = arith.constant 0 : index
      %c0_151 = arith.constant 0 : index
      %126 = vector.load %arg14[%c9, %c0_150, %c0_151] : memref<10x18x8xbf16, #tpu.memory_space<vmem>>, vector<1x18x8xbf16>
      tpu.vector_store %arg14[%c9, %c0_150, %c0_151], %125 {strides = array<i32>} : memref<10x18x8xbf16, #tpu.memory_space<vmem>>, vector<1x18x8xbf16>,
    } else {
    }
    %c0_92 = arith.constant 0 : index
    %c0_93 = arith.constant 0 : index
    %c0_94 = arith.constant 0 : index
    %79 = vector.load %arg14[%c0_92, %c0_93, %c0_94] : memref<10x18x8xbf16, #tpu.memory_space<vmem>>, vector<8x16x8xbf16>
    %80 = vector.shape_cast %79 : vector<8x16x8xbf16> to vector<128x8xbf16>
    %c0_95 = arith.constant 0 : index
    %c1_96 = arith.constant 1 : index
    %c0_97 = arith.constant 0 : index
    %81 = vector.load %arg14[%c0_95, %c1_96, %c0_97] : memref<10x18x8xbf16, #tpu.memory_space<vmem>>, vector<8x16x8xbf16>
    %82 = vector.shape_cast %81 : vector<8x16x8xbf16> to vector<128x8xbf16>
    %c0_98 = arith.constant 0 : index
    %c2_99 = arith.constant 2 : index
    %c0_100 = arith.constant 0 : index
    %83 = vector.load %arg14[%c0_98, %c2_99, %c0_100] : memref<10x18x8xbf16, #tpu.memory_space<vmem>>, vector<8x16x8xbf16>
    %84 = vector.shape_cast %83 : vector<8x16x8xbf16> to vector<128x8xbf16>
    %85 = tpu.concatenate %80, %82, %84 in 1 : vector<128x8xbf16>, vector<128x8xbf16>, vector<128x8xbf16> -> vector<128x24xbf16>
    %c0_101 = arith.constant 0 : index
    %c0_102 = arith.constant 0 : index
    %c0_103 = arith.constant 0 : index
    %86 = vector.load %arg10[%c0_101, %c0_102, %c0_103] : memref<3x24x8xbf16, #tpu.memory_space<vmem>>, vector<1x24x8xbf16>
    %87 = vector.shape_cast %86 : vector<1x24x8xbf16> to vector<24x8xbf16>
    %cst_104 = arith.constant dense<0.000000e+00> : vector<128x8xf32>
    %88 = tpu.matmul %85, %87, %cst_104 {dimension_numbers = #tpu.dot_dimension_numbers<[1], [0], [0], [1], [0, 0, 1, 1], [], []>} : vector<128x24xbf16>, vector<24x8xbf16>, vector<128x8xf32> -> vector<128x8xf32>
    %c0_105 = arith.constant 0 : index
    %c0_106 = arith.constant 0 : index
    %89 = vector.load %arg15[%c0_105, %c0_106] : memref<160x8xf32, #tpu.memory_space<vmem>>, vector<128x8xf32>
    tpu.vector_store %arg15[%c0_105, %c0_106], %88 {strides = array<i32>} : memref<160x8xf32, #tpu.memory_space<vmem>>, vector<128x8xf32>,
    %c1_107 = arith.constant 1 : index
    %c0_108 = arith.constant 0 : index
    %c0_109 = arith.constant 0 : index
    %90 = vector.load %arg14[%c1_107, %c0_108, %c0_109] : memref<10x18x8xbf16, #tpu.memory_space<vmem>>, vector<8x16x8xbf16>
    %91 = vector.shape_cast %90 : vector<8x16x8xbf16> to vector<128x8xbf16>
    %c1_110 = arith.constant 1 : index
    %c1_111 = arith.constant 1 : index
    %c0_112 = arith.constant 0 : index
    %92 = vector.load %arg14[%c1_110, %c1_111, %c0_112] : memref<10x18x8xbf16, #tpu.memory_space<vmem>>, vector<8x16x8xbf16>
    %93 = vector.shape_cast %92 : vector<8x16x8xbf16> to vector<128x8xbf16>
    %c1_113 = arith.constant 1 : index
    %c2_114 = arith.constant 2 : index
    %c0_115 = arith.constant 0 : index
    %94 = vector.load %arg14[%c1_113, %c2_114, %c0_115] : memref<10x18x8xbf16, #tpu.memory_space<vmem>>, vector<8x16x8xbf16>
    %95 = vector.shape_cast %94 : vector<8x16x8xbf16> to vector<128x8xbf16>
    %96 = tpu.concatenate %91, %93, %95 in 1 : vector<128x8xbf16>, vector<128x8xbf16>, vector<128x8xbf16> -> vector<128x24xbf16>
    %c1_116 = arith.constant 1 : index
    %c0_117 = arith.constant 0 : index
    %c0_118 = arith.constant 0 : index
    %97 = vector.load %arg10[%c1_116, %c0_117, %c0_118] : memref<3x24x8xbf16, #tpu.memory_space<vmem>>, vector<1x24x8xbf16>
    %98 = vector.shape_cast %97 : vector<1x24x8xbf16> to vector<24x8xbf16>
    %cst_119 = arith.constant dense<0.000000e+00> : vector<128x8xf32>
    %99 = tpu.matmul %96, %98, %cst_119 {dimension_numbers = #tpu.dot_dimension_numbers<[1], [0], [0], [1], [0, 0, 1, 1], [], []>} : vector<128x24xbf16>, vector<24x8xbf16>, vector<128x8xf32> -> vector<128x8xf32>
    %c0_120 = arith.constant 0 : index
    %c0_121 = arith.constant 0 : index
    %100 = vector.load %arg15[%c0_120, %c0_121] : memref<160x8xf32, #tpu.memory_space<vmem>>, vector<128x8xf32>
    %101 = arith.addf %100, %99 : vector<128x8xf32>
    %c0_122 = arith.constant 0 : index
    %c0_123 = arith.constant 0 : index
    %102 = vector.load %arg15[%c0_122, %c0_123] : memref<160x8xf32, #tpu.memory_space<vmem>>, vector<128x8xf32>
    tpu.vector_store %arg15[%c0_122, %c0_123], %101 {strides = array<i32>} : memref<160x8xf32, #tpu.memory_space<vmem>>, vector<128x8xf32>,
    %c2_124 = arith.constant 2 : index
    %c0_125 = arith.constant 0 : index
    %c0_126 = arith.constant 0 : index
    %103 = vector.load %arg14[%c2_124, %c0_125, %c0_126] : memref<10x18x8xbf16, #tpu.memory_space<vmem>>, vector<8x16x8xbf16>
    %104 = vector.shape_cast %103 : vector<8x16x8xbf16> to vector<128x8xbf16>
    %c2_127 = arith.constant 2 : index
    %c1_128 = arith.constant 1 : index
    %c0_129 = arith.constant 0 : index
    %105 = vector.load %arg14[%c2_127, %c1_128, %c0_129] : memref<10x18x8xbf16, #tpu.memory_space<vmem>>, vector<8x16x8xbf16>
    %106 = vector.shape_cast %105 : vector<8x16x8xbf16> to vector<128x8xbf16>
    %c2_130 = arith.constant 2 : index
    %c2_131 = arith.constant 2 : index
    %c0_132 = arith.constant 0 : index
    %107 = vector.load %arg14[%c2_130, %c2_131, %c0_132] : memref<10x18x8xbf16, #tpu.memory_space<vmem>>, vector<8x16x8xbf16>
    %108 = vector.shape_cast %107 : vector<8x16x8xbf16> to vector<128x8xbf16>
    %109 = tpu.concatenate %104, %106, %108 in 1 : vector<128x8xbf16>, vector<128x8xbf16>, vector<128x8xbf16> -> vector<128x24xbf16>
    %c2_133 = arith.constant 2 : index
    %c0_134 = arith.constant 0 : index
    %c0_135 = arith.constant 0 : index
    %110 = vector.load %arg10[%c2_133, %c0_134, %c0_135] : memref<3x24x8xbf16, #tpu.memory_space<vmem>>, vector<1x24x8xbf16>
    %111 = vector.shape_cast %110 : vector<1x24x8xbf16> to vector<24x8xbf16>
    %cst_136 = arith.constant dense<0.000000e+00> : vector<128x8xf32>
    %112 = tpu.matmul %109, %111, %cst_136 {dimension_numbers = #tpu.dot_dimension_numbers<[1], [0], [0], [1], [0, 0, 1, 1], [], []>} : vector<128x24xbf16>, vector<24x8xbf16>, vector<128x8xf32> -> vector<128x8xf32>
    %c0_137 = arith.constant 0 : index
    %c0_138 = arith.constant 0 : index
    %113 = vector.load %arg15[%c0_137, %c0_138] : memref<160x8xf32, #tpu.memory_space<vmem>>, vector<128x8xf32>
    %114 = arith.addf %113, %112 : vector<128x8xf32>
    %c0_139 = arith.constant 0 : index
    %c0_140 = arith.constant 0 : index
    %115 = vector.load %arg15[%c0_139, %c0_140] : memref<160x8xf32, #tpu.memory_space<vmem>>, vector<128x8xf32>
    tpu.vector_store %arg15[%c0_139, %c0_140], %114 {strides = array<i32>} : memref<160x8xf32, #tpu.memory_space<vmem>>, vector<128x8xf32>,
    %c0_141 = arith.constant 0 : index
    %c0_142 = arith.constant 0 : index
    %116 = vector.load %arg15[%c0_141, %c0_142] : memref<160x8xf32, #tpu.memory_space<vmem>>, vector<128x8xf32>
    %c0_143 = arith.constant 0 : index
    %c0_144 = arith.constant 0 : index
    %117 = vector.load %arg11[%c0_143, %c0_144] : memref<1x8xf32, #tpu.memory_space<vmem>>, vector<1x8xf32>
    %118 = vector.broadcast %117 : vector<1x8xf32> to vector<128x8xf32>
    %119 = arith.addf %116, %118 : vector<128x8xf32>
    %cst_145 = arith.constant 0.000000e+00 : f32
    %120 = vector.broadcast %cst_145 : f32 to vector<128x8xf32>
    %121 = arith.maximumf %119, %120 : vector<128x8xf32>
    %c0_146 = arith.constant 0 : index
    %c0_147 = arith.constant 0 : index
    %c0_148 = arith.constant 0 : index
    %122 = vector.load %arg12[%c0_146, %c0_147, %c0_148] : memref<1x128x8xf32, #tpu.memory_space<vmem>>, vector<1x128x8xf32>
    %123 = vector.shape_cast %122 : vector<1x128x8xf32> to vector<128x8xf32>
    %124 = vector.shape_cast %121 : vector<128x8xf32> to vector<1x128x8xf32>
    tpu.vector_store %arg12[%c0_146, %c0_147, %c0_148], %124 {strides = array<i32>} : memref<1x128x8xf32, #tpu.memory_space<vmem>>, vector<1x128x8xf32>,
    return
  }
  func.func @transform_0(%arg0: i32, %arg1: i32) -> (i32, i32, i32, i32) {
    %c0_i32 = arith.constant 0 : i32
    %c0_i32_0 = arith.constant 0 : i32
    %c0_i32_1 = arith.constant 0 : i32
    return %arg0, %arg1, %c0_i32, %c0_i32_0 : i32, i32, i32, i32
  }
  func.func @transform_1(%arg0: i32, %arg1: i32) -> (i32, i32, i32, i32) {
    %c0_i32 = arith.constant 0 : i32
    %c0_i32_0 = arith.constant 0 : i32
    %c0_i32_1 = arith.constant 0 : i32
    return %arg0, %arg1, %c0_i32, %c0_i32_0 : i32, i32, i32, i32
  }
  func.func @transform_2(%arg0: i32, %arg1: i32) -> (i32, i32, i32, i32) {
    %c4_i32 = arith.constant 4 : i32
    %0 = arith.muli %arg1, %c4_i32 : i32
    %c1_i32 = arith.constant 1 : i32
    %1 = arith.subi %0, %c1_i32 : i32
    %c0_i32 = arith.constant 0 : i32
    %2 = arith.maxsi %1, %c0_i32 : i32
    %c0_i32_0 = arith.constant 0 : i32
    %c0_i32_1 = arith.constant 0 : i32
    %c0_i32_2 = arith.constant 0 : i32
    return %arg0, %2, %c0_i32_0, %c0_i32_1 : i32, i32, i32, i32
  }
  func.func @transform_3(%arg0: i32, %arg1: i32) -> (i32, i32, i32, i32) {
    %c4_i32 = arith.constant 4 : i32
    %0 = arith.muli %arg1, %c4_i32 : i32
    %c1_i32 = arith.constant 1 : i32
    %1 = arith.subi %0, %c1_i32 : i32
    %c0_i32 = arith.constant 0 : i32
    %2 = arith.maxsi %1, %c0_i32 : i32
    %c0_i32_0 = arith.constant 0 : i32
    %c0_i32_1 = arith.constant 0 : i32
    %c0_i32_2 = arith.constant 0 : i32
    return %arg0, %2, %c0_i32_0, %c0_i32_1 : i32, i32, i32, i32
  }
  func.func @transform_4(%arg0: i32, %arg1: i32) -> (i32, i32, i32, i32) {
    %c1_i32 = arith.constant 1 : i32
    %0 = arith.addi %arg1, %c1_i32 : i32
    %c4_i32 = arith.constant 4 : i32
    %1 = arith.muli %0, %c4_i32 : i32
    %c7_i32 = arith.constant 7 : i32
    %2 = arith.minsi %1, %c7_i32 : i32
    %c0_i32 = arith.constant 0 : i32
    %c0_i32_0 = arith.constant 0 : i32
    %c0_i32_1 = arith.constant 0 : i32
    return %arg0, %2, %c0_i32, %c0_i32_0 : i32, i32, i32, i32
  }
  func.func @transform_5(%arg0: i32, %arg1: i32) -> (i32, i32, i32, i32) {
    %c1_i32 = arith.constant 1 : i32
    %0 = arith.addi %arg1, %c1_i32 : i32
    %c4_i32 = arith.constant 4 : i32
    %1 = arith.muli %0, %c4_i32 : i32
    %c7_i32 = arith.constant 7 : i32
    %2 = arith.minsi %1, %c7_i32 : i32
    %c0_i32 = arith.constant 0 : i32
    %c0_i32_0 = arith.constant 0 : i32
    %c0_i32_1 = arith.constant 0 : i32
    return %arg0, %2, %c0_i32, %c0_i32_0 : i32, i32, i32, i32
  }
  func.func @transform_6(%arg0: i32, %arg1: i32) -> (i32, i32, i32) {
    %c0_i32 = arith.constant 0 : i32
    %c0_i32_0 = arith.constant 0 : i32
    %c0_i32_1 = arith.constant 0 : i32
    %c0_i32_2 = arith.constant 0 : i32
    return %c0_i32, %c0_i32_0, %c0_i32_1 : i32, i32, i32
  }
  func.func @transform_7(%arg0: i32, %arg1: i32) -> (i32, i32) {
    %c0_i32 = arith.constant 0 : i32
    %c0_i32_0 = arith.constant 0 : i32
    %c0_i32_1 = arith.constant 0 : i32
    return %c0_i32, %c0_i32_0 : i32, i32
  }
  func.func @transform_8(%arg0: i32, %arg1: i32) -> (i32, i32, i32) {
    %c0_i32 = arith.constant 0 : i32
    %c0_i32_0 = arith.constant 0 : i32
    %c0_i32_1 = arith.constant 0 : i32
    %c0_i32_2 = arith.constant 0 : i32
    return %c0_i32, %c0_i32_0, %c0_i32_1 : i32, i32, i32
  }
  func.func @transform_9(%arg0: i32, %arg1: i32) -> (i32, i32) {
    %c0_i32 = arith.constant 0 : i32
    %c0_i32_0 = arith.constant 0 : i32
    %c0_i32_1 = arith.constant 0 : i32
    return %c0_i32, %c0_i32_0 : i32, i32
  }
  func.func @transform_10(%arg0: i32, %arg1: i32) -> (i32, i32, i32) {
    %c0_i32 = arith.constant 0 : i32
    %c0_i32_0 = arith.constant 0 : i32
    return %arg0, %arg1, %c0_i32 : i32, i32, i32
  }
}

</mosaic_0001>

<llo_original>
// kernel: tpu_custom_call.1
$region0: #{tpu_custom_call.1}
  #allocation0 [shape = 'u32[]', space=smem, size = 0x4, offset = 0x4, fixed_abs, tag = 'smem constant byte address 0x4 - core index']
  #allocation1 [shape = 'u32[144,128]{1,0:T(1,128)}', space=vmem, size = 0x12000, scoped, tag = 'internal scratch']
  #allocation2 [shape = 'bf16[12,18,8]{2,1,0:T(8,128)(2,1)}', space=vmem, size = 0x12000, scoped, tag = 'scratch operand']
  #allocation3 [shape = 'bf16[10,18,8]{2,1,0:T(8,128)(2,1)}', space=vmem, size = 0xf000, scoped, tag = 'scratch operand']
  #allocation4 [shape = 'f32[160,8]{1,0:T(8,128)}', space=vmem, size = 0x14000, scoped, tag = 'scratch operand']
  %s0 = inlined_call_operand.vmem [shape: bf16[2,16,16,4], index: 0, kind: input, shape index: {}]
  %s1 = inlined_call_operand.vmem [shape: bf16[2,16,16,4], index: 1, kind: input, shape index: {}]
  %s2 = inlined_call_operand.vmem [shape: bf16[2,16,16,4], index: 2, kind: input, shape index: {}]
  %s3 = inlined_call_operand.vmem [shape: bf16[2,16,16,4], index: 3, kind: input, shape index: {}]
  %s4 = inlined_call_operand.vmem [shape: bf16[2,16,16,4], index: 4, kind: input, shape index: {}]
  %s5 = inlined_call_operand.vmem [shape: bf16[2,16,16,4], index: 5, kind: input, shape index: {}]
  %s6 = inlined_call_operand.vmem [shape: bf16[3,24,8], index: 6, kind: input, shape index: {}]
  %s7 = inlined_call_operand.vmem [shape: f32[1,8], index: 7, kind: input, shape index: {}]
  %s8 = inlined_call_operand.vmem [shape: bf16[3,24,8], index: 8, kind: input, shape index: {}]
  %s9 = inlined_call_operand.vmem [shape: f32[1,8], index: 9, kind: input, shape index: {}]
  %s10 = inlined_call_operand.vmem [shape: f32[2,256,8], index: 10, kind: output, shape index: {}]
  %s11 = sld [smem:[#allocation0]]
  $region97: #{tpu_custom_call.1} parent=0
    _
  %s13 = ssub.s32 1, %s11
  %s14 = scalar_select 0, %s13, %s11
  loop: start=0, step=1, limit=6
  $region2: #{tpu_custom_call.1} parent=0 // loop_pre_header
    _
  $region3: #{tpu_custom_call.1} parent=0 // loop_header
    %s16 = sphi 0, %s20
    %p17 = scmp.ge.s32.totalorder %s16, 6
    %s23 = sphi 0, %s35
    %s24 = sphi 0, %s31
    %s25 = sphi 0, %s23
    %s26 = sphi 0, %s24
    %s27 = sphi 0, %s25
    %s28 = sphi 0, %s26
    %s40 = sphi 0, %s42
    %s43 = sphi 0, %s40
    %s44 = sphi 0, %s43
    %s60 = sphi 0, %s44
    %s68 = sphi 0, %s70
    %s71 = sphi 0, %s68
    %s72 = sphi 0, %s71
    %s88 = sphi 0, %s72
    %s104 = sphi 0, %s106
    %s107 = sphi 0, %s104
    %s108 = sphi 0, %s107
    %s124 = sphi 0, %s108
    %s140 = sphi 0, %s142
    %s143 = sphi 0, %s140
    %s144 = sphi 0, %s143
    %s160 = sphi 0, %s144
    %s176 = sphi 0, %s178
    %s179 = sphi 0, %s176
    %s180 = sphi 0, %s179
    %s196 = sphi 0, %s180
    %s212 = sphi 0, %s214
    %s215 = sphi 0, %s212
    %s216 = sphi 0, %s215
    %s232 = sphi 0, %s216
    %s236 = sphi 0, %s236
    %s238 = sphi 0, %s236
    %s239 = sphi 0, %s238
    %s253 = sphi 0, %s239
    %s257 = sphi 0, %s257
    %s259 = sphi 0, %s257
    %s260 = sphi 0, %s259
    %s274 = sphi 0, %s260
    %s278 = sphi 0, %s278
    %s280 = sphi 0, %s278
    %s281 = sphi 0, %s280
    %s295 = sphi 0, %s281
    %s299 = sphi 0, %s299
    %s301 = sphi 0, %s299
    %s302 = sphi 0, %s301
    %s316 = sphi 0, %s302
    %s324 = sphi 0, %s326
    %s327 = sphi 0, %s324
    %s328 = sphi 0, %s327
    %s344 = sphi 0, %s328
  $region4: #{tpu_custom_call.1} parent=0 // loop_header_branch
    %19 = sbr.rel (%p17) target = $region8
  $region5: #{tpu_custom_call.1} parent=0 // loop_body
    %s21 = ssub.s32 %s16, 1
    %s22 = ssub.s32 %s16, 2
    %s29 = sadd.s32 1, %s24
    %p30 = scmp.ge.s32.totalorder %s29, 2
    %s31 = scalar_select %p30, 0, %s29
    %s32 = sadd.s32 1, %s23
    %s33 = scalar_select %p30, %s32, %s23
    %p34 = scmp.ge.s32.totalorder %s33, 2
    %s35 = scalar_select %p34, 0, %s33
    %s36 = ssub.s32 %s23, %s35
    %s37 = ssub.s32 %s24, %s31
    %s38 = sor.u32 %s36, %s37
    %p39 = scmp.eq.s32.totalorder %s38, 0
    %s41 = sadd.s32 %s40, 1
    %s42 = scalar_select %p39, %s40, %s41
    %p45 = pneg %p39
    %p46 = scmp.eq.s32.totalorder %s16, 3
    %p47 = por %p45, %p46
    %p48 = scmp.ne.s32.totalorder %s40, %s43
    %p49 = scmp.eq.s32.totalorder %s16, 0
    %p50 = por %p48, %p49
    %p51 = scmp.ne.s32.totalorder %s40, %s43
    %p52 = scmp.eq.s32.totalorder %s21, 3
    %p53 = por %p51, %p52
    %p54 = scmp.ne.s32.totalorder %s43, %s44
    %p55 = scmp.eq.s32.totalorder %s21, 0
    %p56 = por %p54, %p55
    %p57 = scmp.ne.s32.totalorder %s43, %s44
    %p58 = scmp.eq.s32.totalorder %s22, 3
    %p59 = por %p57, %p58
    %p61 = scmp.ne.s32.totalorder %s44, %s60
    %p62 = scmp.eq.s32.totalorder %s22, 0
    %p63 = por %p61, %p62
    %s64 = ssub.s32 %s23, %s35
    %s65 = ssub.s32 %s24, %s31
    %s66 = sor.u32 %s64, %s65
    %p67 = scmp.eq.s32.totalorder %s66, 0
    %s69 = sadd.s32 %s68, 1
    %s70 = scalar_select %p67, %s68, %s69
    %p73 = pneg %p67
    %p74 = scmp.eq.s32.totalorder %s16, 3
    %p75 = por %p73, %p74
    %p76 = scmp.ne.s32.totalorder %s68, %s71
    %p77 = scmp.eq.s32.totalorder %s16, 0
    %p78 = por %p76, %p77
    %p79 = scmp.ne.s32.totalorder %s68, %s71
    %p80 = scmp.eq.s32.totalorder %s21, 3
    %p81 = por %p79, %p80
    %p82 = scmp.ne.s32.totalorder %s71, %s72
    %p83 = scmp.eq.s32.totalorder %s21, 0
    %p84 = por %p82, %p83
    %p85 = scmp.ne.s32.totalorder %s71, %s72
    %p86 = scmp.eq.s32.totalorder %s22, 3
    %p87 = por %p85, %p86
    %p89 = scmp.ne.s32.totalorder %s72, %s88
    %p90 = scmp.eq.s32.totalorder %s22, 0
    %p91 = por %p89, %p90
    %s92 = smul.u32 %s24, 4
    %s93 = ssub.s32 %s92, 1
    %p94 = scmp.gt.s32.totalorder %s93, 0
    %s95 = scalar_select %p94, %s93, 0
    %s96 = smul.u32 %s31, 4
    %s97 = ssub.s32 %s96, 1
    %p98 = scmp.gt.s32.totalorder %s97, 0
    %s99 = scalar_select %p98, %s97, 0
    %s100 = ssub.s32 %s23, %s35
    %s101 = ssub.s32 %s95, %s99
    %s102 = sor.u32 %s100, %s101
    %p103 = scmp.eq.s32.totalorder %s102, 0
    %s105 = sadd.s32 %s104, 1
    %s106 = scalar_select %p103, %s104, %s105
    %p109 = pneg %p103
    %p110 = scmp.eq.s32.totalorder %s16, 3
    %p111 = por %p109, %p110
    %p112 = scmp.ne.s32.totalorder %s104, %s107
    %p113 = scmp.eq.s32.totalorder %s16, 0
    %p114 = por %p112, %p113
    %p115 = scmp.ne.s32.totalorder %s104, %s107
    %p116 = scmp.eq.s32.totalorder %s21, 3
    %p117 = por %p115, %p116
    %p118 = scmp.ne.s32.totalorder %s107, %s108
    %p119 = scmp.eq.s32.totalorder %s21, 0
    %p120 = por %p118, %p119
    %p121 = scmp.ne.s32.totalorder %s107, %s108
    %p122 = scmp.eq.s32.totalorder %s22, 3
    %p123 = por %p121, %p122
    %p125 = scmp.ne.s32.totalorder %s108, %s124
    %p126 = scmp.eq.s32.totalorder %s22, 0
    %p127 = por %p125, %p126
    %s128 = smul.u32 %s24, 4
    %s129 = ssub.s32 %s128, 1
    %p130 = scmp.gt.s32.totalorder %s129, 0
    %s131 = scalar_select %p130, %s129, 0
    %s132 = smul.u32 %s31, 4
    %s133 = ssub.s32 %s132, 1
    %p134 = scmp.gt.s32.totalorder %s133, 0
    %s135 = scalar_select %p134, %s133, 0
    %s136 = ssub.s32 %s23, %s35
    %s137 = ssub.s32 %s131, %s135
    %s138 = sor.u32 %s136, %s137
    %p139 = scmp.eq.s32.totalorder %s138, 0
    %s141 = sadd.s32 %s140, 1
    %s142 = scalar_select %p139, %s140, %s141
    %p145 = pneg %p139
    %p146 = scmp.eq.s32.totalorder %s16, 3
    %p147 = por %p145, %p146
    %p148 = scmp.ne.s32.totalorder %s140, %s143
    %p149 = scmp.eq.s32.totalorder %s16, 0
    %p150 = por %p148, %p149
    %p151 = scmp.ne.s32.totalorder %s140, %s143
    %p152 = scmp.eq.s32.totalorder %s21, 3
    %p153 = por %p151, %p152
    %p154 = scmp.ne.s32.totalorder %s143, %s144
    %p155 = scmp.eq.s32.totalorder %s21, 0
    %p156 = por %p154, %p155
    %p157 = scmp.ne.s32.totalorder %s143, %s144
    %p158 = scmp.eq.s32.totalorder %s22, 3
    %p159 = por %p157, %p158
    %p161 = scmp.ne.s32.totalorder %s144, %s160
    %p162 = scmp.eq.s32.totalorder %s22, 0
    %p163 = por %p161, %p162
    %s164 = sadd.s32 %s24, 1
    %s165 = smul.u32 %s164, 4
    %p166 = scmp.lt.s32.totalorder %s165, 7
    %s167 = scalar_select %p166, %s165, 7
    %s168 = sadd.s32 %s31, 1
    %s169 = smul.u32 %s168, 4
    %p170 = scmp.lt.s32.totalorder %s169, 7
    %s171 = scalar_select %p170, %s169, 7
    %s172 = ssub.s32 %s23, %s35
    %s173 = ssub.s32 %s167, %s171
    %s174 = sor.u32 %s172, %s173
    %p175 = scmp.eq.s32.totalorder %s174, 0
    %s177 = sadd.s32 %s176, 1
    %s178 = scalar_select %p175, %s176, %s177
    %p181 = pneg %p175
    %p182 = scmp.eq.s32.totalorder %s16, 3
    %p183 = por %p181, %p182
    %p184 = scmp.ne.s32.totalorder %s176, %s179
    %p185 = scmp.eq.s32.totalorder %s16, 0
    %p186 = por %p184, %p185
    %p187 = scmp.ne.s32.totalorder %s176, %s179
    %p188 = scmp.eq.s32.totalorder %s21, 3
    %p189 = por %p187, %p188
    %p190 = scmp.ne.s32.totalorder %s179, %s180
    %p191 = scmp.eq.s32.totalorder %s21, 0
    %p192 = por %p190, %p191
    %p193 = scmp.ne.s32.totalorder %s179, %s180
    %p194 = scmp.eq.s32.totalorder %s22, 3
    %p195 = por %p193, %p194
    %p197 = scmp.ne.s32.totalorder %s180, %s196
    %p198 = scmp.eq.s32.totalorder %s22, 0
    %p199 = por %p197, %p198
    %s200 = sadd.s32 %s24, 1
    %s201 = smul.u32 %s200, 4
    %p202 = scmp.lt.s32.totalorder %s201, 7
    %s203 = scalar_select %p202, %s201, 7
    %s204 = sadd.s32 %s31, 1
    %s205 = smul.u32 %s204, 4
    %p206 = scmp.lt.s32.totalorder %s205, 7
    %s207 = scalar_select %p206, %s205, 7
    %s208 = ssub.s32 %s23, %s35
    %s209 = ssub.s32 %s203, %s207
    %s210 = sor.u32 %s208, %s209
    %p211 = scmp.eq.s32.totalorder %s210, 0
    %s213 = sadd.s32 %s212, 1
    %s214 = scalar_select %p211, %s212, %s213
    %p217 = pneg %p211
    %p218 = scmp.eq.s32.totalorder %s16, 3
    %p219 = por %p217, %p218
    %p220 = scmp.ne.s32.totalorder %s212, %s215
    %p221 = scmp.eq.s32.totalorder %s16, 0
    %p222 = por %p220, %p221
    %p223 = scmp.ne.s32.totalorder %s212, %s215
    %p224 = scmp.eq.s32.totalorder %s21, 3
    %p225 = por %p223, %p224
    %p226 = scmp.ne.s32.totalorder %s215, %s216
    %p227 = scmp.eq.s32.totalorder %s21, 0
    %p228 = por %p226, %p227
    %p229 = scmp.ne.s32.totalorder %s215, %s216
    %p230 = scmp.eq.s32.totalorder %s22, 3
    %p231 = por %p229, %p230
    %p233 = scmp.ne.s32.totalorder %s216, %s232
    %p234 = scmp.eq.s32.totalorder %s22, 0
    %p235 = por %p233, %p234
    %s237 = sadd.s32 %s236, 1
    %p240 = scmp.eq.s32.totalorder %s16, 3
    %p241 = scmp.ne.s32.totalorder %s236, %s238
    %p242 = scmp.eq.s32.totalorder %s16, 0
    %p243 = por %p241, %p242
    %p244 = scmp.ne.s32.totalorder %s236, %s238
    %p245 = scmp.eq.s32.totalorder %s21, 3
    %p246 = por %p244, %p245
    %p247 = scmp.ne.s32.totalorder %s238, %s239
    %p248 = scmp.eq.s32.totalorder %s21, 0
    %p249 = por %p247, %p248
    %p250 = scmp.ne.s32.totalorder %s238, %s239
    %p251 = scmp.eq.s32.totalorder %s22, 3
    %p252 = por %p250, %p251
    %p254 = scmp.ne.s32.totalorder %s239, %s253
    %p255 = scmp.eq.s32.totalorder %s22, 0
    %p256 = por %p254, %p255
    %s258 = sadd.s32 %s257, 1
    %p261 = scmp.eq.s32.totalorder %s16, 3
    %p262 = scmp.ne.s32.totalorder %s257, %s259
    %p263 = scmp.eq.s32.totalorder %s16, 0
    %p264 = por %p262, %p263
    %p265 = scmp.ne.s32.totalorder %s257, %s259
    %p266 = scmp.eq.s32.totalorder %s21, 3
    %p267 = por %p265, %p266
    %p268 = scmp.ne.s32.totalorder %s259, %s260
    %p269 = scmp.eq.s32.totalorder %s21, 0
    %p270 = por %p268, %p269
    %p271 = scmp.ne.s32.totalorder %s259, %s260
    %p272 = scmp.eq.s32.totalorder %s22, 3
    %p273 = por %p271, %p272
    %p275 = scmp.ne.s32.totalorder %s260, %s274
    %p276 = scmp.eq.s32.totalorder %s22, 0
    %p277 = por %p275, %p276
    %s279 = sadd.s32 %s278, 1
    %p282 = scmp.eq.s32.totalorder %s16, 3
    %p283 = scmp.ne.s32.totalorder %s278, %s280
    %p284 = scmp.eq.s32.totalorder %s16, 0
    %p285 = por %p283, %p284
    %p286 = scmp.ne.s32.totalorder %s278, %s280
    %p287 = scmp.eq.s32.totalorder %s21, 3
    %p288 = por %p286, %p287
    %p289 = scmp.ne.s32.totalorder %s280, %s281
    %p290 = scmp.eq.s32.totalorder %s21, 0
    %p291 = por %p289, %p290
    %p292 = scmp.ne.s32.totalorder %s280, %s281
    %p293 = scmp.eq.s32.totalorder %s22, 3
    %p294 = por %p292, %p293
    %p296 = scmp.ne.s32.totalorder %s281, %s295
    %p297 = scmp.eq.s32.totalorder %s22, 0
    %p298 = por %p296, %p297
    %s300 = sadd.s32 %s299, 1
    %p303 = scmp.eq.s32.totalorder %s16, 3
    %p304 = scmp.ne.s32.totalorder %s299, %s301
    %p305 = scmp.eq.s32.totalorder %s16, 0
    %p306 = por %p304, %p305
    %p307 = scmp.ne.s32.totalorder %s299, %s301
    %p308 = scmp.eq.s32.totalorder %s21, 3
    %p309 = por %p307, %p308
    %p310 = scmp.ne.s32.totalorder %s301, %s302
    %p311 = scmp.eq.s32.totalorder %s21, 0
    %p312 = por %p310, %p311
    %p313 = scmp.ne.s32.totalorder %s301, %s302
    %p314 = scmp.eq.s32.totalorder %s22, 3
    %p315 = por %p313, %p314
    %p317 = scmp.ne.s32.totalorder %s302, %s316
    %p318 = scmp.eq.s32.totalorder %s22, 0
    %p319 = por %p317, %p318
    %s320 = ssub.s32 %s23, %s35
    %s321 = ssub.s32 %s24, %s31
    %s322 = sor.u32 %s320, %s321
    %p323 = scmp.eq.s32.totalorder %s322, 0
    %s325 = sadd.s32 %s324, 1
    %s326 = scalar_select %p323, %s324, %s325
    %p329 = pneg %p323
    %p330 = scmp.eq.s32.totalorder %s16, 3
    %p331 = por %p329, %p330
    %p332 = scmp.ne.s32.totalorder %s324, %s327
    %p333 = scmp.eq.s32.totalorder %s16, 0
    %p334 = por %p332, %p333
    %p335 = scmp.ne.s32.totalorder %s324, %s327
    %p336 = scmp.eq.s32.totalorder %s21, 3
    %p337 = por %p335, %p336
    %p338 = scmp.ne.s32.totalorder %s327, %s328
    %p339 = scmp.eq.s32.totalorder %s21, 0
    %p340 = por %p338, %p339
    %p341 = scmp.ne.s32.totalorder %s327, %s328
    %p342 = scmp.eq.s32.totalorder %s22, 3
    %p343 = por %p341, %p342
    %p345 = scmp.ne.s32.totalorder %s328, %s344
    %p346 = scmp.eq.s32.totalorder %s22, 0
    %p347 = por %p345, %p346
    %p348 = scmp.le.s32.totalorder 1, %s16
    %p349 = scmp.lt.s32.totalorder %s16, 5
    %p350 = pnand %p348, %p349
    %p351 = pneg %p350
    // Predicated region
    $region9: #{tpu_custom_call.1} parent=5 // pred_check
      _
    $region10: #{tpu_custom_call.1} parent=5 // pred_check_branch
      %353 = sbr.rel (%p350) target = $region12
    $region11: #{tpu_custom_call.1} parent=5 // pred_region
      %s354 = ssub.s32 %s16, 1
      // Predicated region
      $region13: #{tpu_custom_call.1} parent=11 // pred_check
        %p355 = pneg %p249
      $region14: #{tpu_custom_call.1} parent=11 // pred_check_branch
        %357 = sbr.rel (%p355) target = $region16
      $region15: #{tpu_custom_call.1} parent=11 // pred_region
        _
      $region16: #{tpu_custom_call.1} parent=11 // pred_fallthru
        _
      // Predicated region
      $region17: #{tpu_custom_call.1} parent=11 // pred_check
        %p358 = pneg %p270
      $region18: #{tpu_custom_call.1} parent=11 // pred_check_branch
        %360 = sbr.rel (%p358) target = $region20
      $region19: #{tpu_custom_call.1} parent=11 // pred_region
        _
      $region20: #{tpu_custom_call.1} parent=11 // pred_fallthru
        _
      // Predicated region
      $region21: #{tpu_custom_call.1} parent=11 // pred_check
        %p361 = pneg %p291
      $region22: #{tpu_custom_call.1} parent=11 // pred_check_branch
        %363 = sbr.rel (%p361) target = $region24
      $region23: #{tpu_custom_call.1} parent=11 // pred_region
        _
      $region24: #{tpu_custom_call.1} parent=11 // pred_fallthru
        _
      // Predicated region
      $region25: #{tpu_custom_call.1} parent=11 // pred_check
        %p364 = pneg %p312
      $region26: #{tpu_custom_call.1} parent=11 // pred_check_branch
        %366 = sbr.rel (%p364) target = $region28
      $region27: #{tpu_custom_call.1} parent=11 // pred_region
        _
      $region28: #{tpu_custom_call.1} parent=11 // pred_fallthru
        _
    $region12: #{tpu_custom_call.1} parent=5 // pred_fallthru
      _
    %p367 = scmp.lt.s32.totalorder %s16, 4
    // Predicated region
    $region29: #{tpu_custom_call.1} parent=5 // pred_check
      %p368 = pneg %p367
    $region30: #{tpu_custom_call.1} parent=5 // pred_check_branch
      %370 = sbr.rel (%p368) target = $region32
    $region31: #{tpu_custom_call.1} parent=5 // pred_region
      // Predicated region
      $region33: #{tpu_custom_call.1} parent=31 // pred_check
        %p371 = pneg %p50
      $region34: #{tpu_custom_call.1} parent=31 // pred_check_branch
        %373 = sbr.rel (%p371) target = $region36
      $region35: #{tpu_custom_call.1} parent=31 // pred_region
        %s374 = smul.u32 8, %s24
        %p375 = scmp.lt.s32.totalorder %s23, 1
        %s376 = scalar_select %p375, %s23, 1
        %p377 = scmp.lt.s32.totalorder %s374, 15
        %s378 = scalar_select %p377, %s374, 15
        %s379 = smul.addr %s378, 2
        %s380 = smul.addr %s376, 32
        %s381 = sadd.s32 %s379, %s380
        %s382 = smul.addr %s381, 4
        %s383 = scalar_lea.vmem %s0, %s382
        %s384 = smul.u32 8, %s24
      $region36: #{tpu_custom_call.1} parent=31 // pred_fallthru
        _
      // Predicated region
      $region37: #{tpu_custom_call.1} parent=31 // pred_check
        %p385 = pneg %p78
      $region38: #{tpu_custom_call.1} parent=31 // pred_check_branch
        %387 = sbr.rel (%p385) target = $region40
      $region39: #{tpu_custom_call.1} parent=31 // pred_region
        %s388 = smul.u32 8, %s24
        %p389 = scmp.lt.s32.totalorder %s23, 1
        %s390 = scalar_select %p389, %s23, 1
        %p391 = scmp.lt.s32.totalorder %s388, 15
        %s392 = scalar_select %p391, %s388, 15
        %s393 = smul.addr %s392, 2
        %s394 = smul.addr %s390, 32
        %s395 = sadd.s32 %s393, %s394
        %s396 = smul.addr %s395, 4
        %s397 = scalar_lea.vmem %s1, %s396
        %s398 = smul.u32 8, %s24
      $region40: #{tpu_custom_call.1} parent=31 // pred_fallthru
        _
      // Predicated region
      $region41: #{tpu_custom_call.1} parent=31 // pred_check
        %p399 = pneg %p114
      $region42: #{tpu_custom_call.1} parent=31 // pred_check_branch
        %401 = sbr.rel (%p399) target = $region44
      $region43: #{tpu_custom_call.1} parent=31 // pred_region
        %s402 = smul.u32 %s24, 4
        %s403 = ssub.s32 %s402, 1
        %p404 = scmp.gt.s32.totalorder %s403, 0
        %s405 = scalar_select %p404, %s403, 0
        %s406 = smul.u32 2, %s405
        %p407 = scmp.lt.s32.totalorder %s23, 1
        %s408 = scalar_select %p407, %s23, 1
        %p409 = scmp.lt.s32.totalorder %s406, 15
        %s410 = scalar_select %p409, %s406, 15
        %s411 = smul.addr %s410, 2
        %s412 = smul.addr %s408, 32
        %s413 = sadd.s32 %s411, %s412
        %s414 = smul.addr %s413, 4
        %s415 = scalar_lea.vmem %s2, %s414
        %s416 = smul.u32 %s24, 4
        %s417 = ssub.s32 %s416, 1
        %p418 = scmp.gt.s32.totalorder %s417, 0
        %s419 = scalar_select %p418, %s417, 0
        %s420 = smul.u32 2, %s419
      $region44: #{tpu_custom_call.1} parent=31 // pred_fallthru
        _
      // Predicated region
      $region45: #{tpu_custom_call.1} parent=31 // pred_check
        %p421 = pneg %p150
      $region46: #{tpu_custom_call.1} parent=31 // pred_check_branch
        %423 = sbr.rel (%p421) target = $region48
      $region47: #{tpu_custom_call.1} parent=31 // pred_region
        %s424 = smul.u32 %s24, 4
        %s425 = ssub.s32 %s424, 1
        %p426 = scmp.gt.s32.totalorder %s425, 0
        %s427 = scalar_select %p426, %s425, 0
        %s428 = smul.u32 2, %s427
        %p429 = scmp.lt.s32.totalorder %s23, 1
        %s430 = scalar_select %p429, %s23, 1
        %p431 = scmp.lt.s32.totalorder %s428, 15
        %s432 = scalar_select %p431, %s428, 15
        %s433 = smul.addr %s432, 2
        %s434 = smul.addr %s430, 32
        %s435 = sadd.s32 %s433, %s434
        %s436 = smul.addr %s435, 4
        %s437 = scalar_lea.vmem %s3, %s436
        %s438 = smul.u32 %s24, 4
        %s439 = ssub.s32 %s438, 1
        %p440 = scmp.gt.s32.totalorder %s439, 0
        %s441 = scalar_select %p440, %s439, 0
        %s442 = smul.u32 2, %s441
      $region48: #{tpu_custom_call.1} parent=31 // pred_fallthru
        _
      // Predicated region
      $region49: #{tpu_custom_call.1} parent=31 // pred_check
        %p443 = pneg %p186
      $region50: #{tpu_custom_call.1} parent=31 // pred_check_branch
        %445 = sbr.rel (%p443) target = $region52
      $region51: #{tpu_custom_call.1} parent=31 // pred_region
        %s446 = sadd.s32 %s24, 1
        %s447 = smul.u32 %s446, 4
        %p448 = scmp.lt.s32.totalorder %s447, 7
        %s449 = scalar_select %p448, %s447, 7
        %s450 = smul.u32 2, %s449
        %p451 = scmp.lt.s32.totalorder %s23, 1
        %s452 = scalar_select %p451, %s23, 1
        %p453 = scmp.lt.s32.totalorder %s450, 15
        %s454 = scalar_select %p453, %s450, 15
        %s455 = smul.addr %s454, 2
        %s456 = smul.addr %s452, 32
        %s457 = sadd.s32 %s455, %s456
        %s458 = smul.addr %s457, 4
        %s459 = scalar_lea.vmem %s4, %s458
        %s460 = sadd.s32 %s24, 1
        %s461 = smul.u32 %s460, 4
        %p462 = scmp.lt.s32.totalorder %s461, 7
        %s463 = scalar_select %p462, %s461, 7
        %s464 = smul.u32 2, %s463
      $region52: #{tpu_custom_call.1} parent=31 // pred_fallthru
        _
      // Predicated region
      $region53: #{tpu_custom_call.1} parent=31 // pred_check
        %p465 = pneg %p222
      $region54: #{tpu_custom_call.1} parent=31 // pred_check_branch
        %467 = sbr.rel (%p465) target = $region56
      $region55: #{tpu_custom_call.1} parent=31 // pred_region
        %s468 = sadd.s32 %s24, 1
        %s469 = smul.u32 %s468, 4
        %p470 = scmp.lt.s32.totalorder %s469, 7
        %s471 = scalar_select %p470, %s469, 7
        %s472 = smul.u32 2, %s471
        %p473 = scmp.lt.s32.totalorder %s23, 1
        %s474 = scalar_select %p473, %s23, 1
        %p475 = scmp.lt.s32.totalorder %s472, 15
        %s476 = scalar_select %p475, %s472, 15
        %s477 = smul.addr %s476, 2
        %s478 = smul.addr %s474, 32
        %s479 = sadd.s32 %s477, %s478
        %s480 = smul.addr %s479, 4
        %s481 = scalar_lea.vmem %s5, %s480
        %s482 = sadd.s32 %s24, 1
        %s483 = smul.u32 %s482, 4
        %p484 = scmp.lt.s32.totalorder %s483, 7
        %s485 = scalar_select %p484, %s483, 7
        %s486 = smul.u32 2, %s485
      $region56: #{tpu_custom_call.1} parent=31 // pred_fallthru
        _
    $region32: #{tpu_custom_call.1} parent=5 // pred_fallthru
      _
    %p487 = scmp.le.s32.totalorder 1, %s16
    %p488 = scmp.lt.s32.totalorder %s16, 5
    %p489 = pnand %p487, %p488
    %p490 = pneg %p489
    // Predicated region
    $region57: #{tpu_custom_call.1} parent=5 // pred_check
      _
    $region58: #{tpu_custom_call.1} parent=5 // pred_check_branch
      %492 = sbr.rel (%p489) target = $region60
    $region59: #{tpu_custom_call.1} parent=5 // pred_region
      %s493 = ssub.s32 %s16, 1
      %s494 = smul.u32 8, %s26
      %p495 = scmp.lt.s32.totalorder %s25, 1
      %s496 = scalar_select %p495, %s25, 1
      %p497 = scmp.lt.s32.totalorder %s494, 15
      %s498 = scalar_select %p497, %s494, 15
      %s499 = smul.addr %s498, 2
      %s500 = smul.addr %s496, 32
      %s501 = sadd.s32 %s499, %s500
      %s502 = smul.addr %s501, 4
      %s503 = scalar_lea.vmem %s0, %s502
      %p504 = pneg %p56
      %p505 = pneg %p53
      %s506 = smul.u32 8, %s26
      %p507 = scmp.lt.s32.totalorder %s25, 1
      %s508 = scalar_select %p507, %s25, 1
      %p509 = scmp.lt.s32.totalorder %s506, 15
      %s510 = scalar_select %p509, %s506, 15
      %s511 = smul.addr %s510, 2
      %s512 = smul.addr %s508, 32
      %s513 = sadd.s32 %s511, %s512
      %s514 = smul.addr %s513, 4
      %s515 = scalar_lea.vmem %s1, %s514
      %p516 = pneg %p84
      %p517 = pneg %p81
      %s518 = smul.u32 %s26, 4
      %s519 = ssub.s32 %s518, 1
      %p520 = scmp.gt.s32.totalorder %s519, 0
      %s521 = scalar_select %p520, %s519, 0
      %s522 = smul.u32 2, %s521
      %p523 = scmp.lt.s32.totalorder %s25, 1
      %s524 = scalar_select %p523, %s25, 1
      %p525 = scmp.lt.s32.totalorder %s522, 15
      %s526 = scalar_select %p525, %s522, 15
      %s527 = smul.addr %s526, 2
      %s528 = smul.addr %s524, 32
      %s529 = sadd.s32 %s527, %s528
      %s530 = smul.addr %s529, 4
      %s531 = scalar_lea.vmem %s2, %s530
      %p532 = pneg %p120
      %p533 = pneg %p117
      %s534 = smul.u32 %s26, 4
      %s535 = ssub.s32 %s534, 1
      %p536 = scmp.gt.s32.totalorder %s535, 0
      %s537 = scalar_select %p536, %s535, 0
      %s538 = smul.u32 2, %s537
      %p539 = scmp.lt.s32.totalorder %s25, 1
      %s540 = scalar_select %p539, %s25, 1
      %p541 = scmp.lt.s32.totalorder %s538, 15
      %s542 = scalar_select %p541, %s538, 15
      %s543 = smul.addr %s542, 2
      %s544 = smul.addr %s540, 32
      %s545 = sadd.s32 %s543, %s544
      %s546 = smul.addr %s545, 4
      %s547 = scalar_lea.vmem %s3, %s546
      %p548 = pneg %p156
      %p549 = pneg %p153
      %s550 = sadd.s32 %s26, 1
      %s551 = smul.u32 %s550, 4
      %p552 = scmp.lt.s32.totalorder %s551, 7
      %s553 = scalar_select %p552, %s551, 7
      %s554 = smul.u32 2, %s553
      %p555 = scmp.lt.s32.totalorder %s25, 1
      %s556 = scalar_select %p555, %s25, 1
      %p557 = scmp.lt.s32.totalorder %s554, 15
      %s558 = scalar_select %p557, %s554, 15
      %s559 = smul.addr %s558, 2
      %s560 = smul.addr %s556, 32
      %s561 = sadd.s32 %s559, %s560
      %s562 = smul.addr %s561, 4
      %s563 = scalar_lea.vmem %s4, %s562
      %p564 = pneg %p192
      %p565 = pneg %p189
      %s566 = sadd.s32 %s26, 1
      %s567 = smul.u32 %s566, 4
      %p568 = scmp.lt.s32.totalorder %s567, 7
      %s569 = scalar_select %p568, %s567, 7
      %s570 = smul.u32 2, %s569
      %p571 = scmp.lt.s32.totalorder %s25, 1
      %s572 = scalar_select %p571, %s25, 1
      %p573 = scmp.lt.s32.totalorder %s570, 15
      %s574 = scalar_select %p573, %s570, 15
      %s575 = smul.addr %s574, 2
      %s576 = smul.addr %s572, 32
      %s577 = sadd.s32 %s575, %s576
      %s578 = smul.addr %s577, 4
      %s579 = scalar_lea.vmem %s5, %s578
      %p580 = pneg %p228
      %p581 = pneg %p225
      %p582 = pneg %p249
      %p583 = pneg %p246
      %p584 = pneg %p270
      %p585 = pneg %p267
      %p586 = pneg %p291
      %p587 = pneg %p288
      %p588 = pneg %p312
      %p589 = pneg %p309
      %p590 = pneg %p340
      %p591 = pneg %p337
      %s592 = smul.u32 16, %s26
      %p593 = scmp.lt.s32.totalorder %s25, 1
      %s594 = scalar_select %p593, %s25, 1
      %p595 = scmp.lt.s32.totalorder %s592, 31
      %s596 = scalar_select %p595, %s592, 31
      %s597 = smul.addr %s594, 32
      %s598 = sadd.s32 %s596, %s597
      %s599 = smul.addr %s598, 8
      %s600 = scalar_lea.vmem %s10, %s599
      %s601 = smul.u32 8, %s26
      %p602 = scmp.lt.s32.totalorder %s25, 1
      %s603 = scalar_select %p602, %s25, 1
      %p604 = scmp.lt.s32.totalorder %s601, 15
      %s605 = scalar_select %p604, %s601, 15
      %s606 = smul.addr %s605, 2
      %s607 = smul.addr %s603, 32
      %s608 = sadd.s32 %s606, %s607
      %s609 = smul.addr %s608, 4
      %s610 = scalar_lea.vmem %s0, %s609
      %s611 = smul.u32 8, %s26
      %s612 = smul.u32 8, %s26
      %p613 = scmp.lt.s32.totalorder %s25, 1
      %s614 = scalar_select %p613, %s25, 1
      %p615 = scmp.lt.s32.totalorder %s612, 15
      %s616 = scalar_select %p615, %s612, 15
      %s617 = smul.addr %s616, 2
      %s618 = smul.addr %s614, 32
      %s619 = sadd.s32 %s617, %s618
      %s620 = smul.addr %s619, 4
      %s621 = scalar_lea.vmem %s1, %s620
      %s622 = smul.u32 8, %s26
      %s623 = smul.u32 %s26, 4
      %s624 = ssub.s32 %s623, 1
      %p625 = scmp.gt.s32.totalorder %s624, 0
      %s626 = scalar_select %p625, %s624, 0
      %s627 = smul.u32 2, %s626
      %p628 = scmp.lt.s32.totalorder %s25, 1
      %s629 = scalar_select %p628, %s25, 1
      %p630 = scmp.lt.s32.totalorder %s627, 15
      %s631 = scalar_select %p630, %s627, 15
      %s632 = smul.addr %s631, 2
      %s633 = smul.addr %s629, 32
      %s634 = sadd.s32 %s632, %s633
      %s635 = smul.addr %s634, 4
      %s636 = scalar_lea.vmem %s2, %s635
      %s637 = smul.u32 %s26, 4
      %s638 = ssub.s32 %s637, 1
      %p639 = scmp.gt.s32.totalorder %s638, 0
      %s640 = scalar_select %p639, %s638, 0
      %s641 = smul.u32 2, %s640
      %s642 = smul.u32 %s26, 4
      %s643 = ssub.s32 %s642, 1
      %p644 = scmp.gt.s32.totalorder %s643, 0
      %s645 = scalar_select %p644, %s643, 0
      %s646 = smul.u32 2, %s645
      %p647 = scmp.lt.s32.totalorder %s25, 1
      %s648 = scalar_select %p647, %s25, 1
      %p649 = scmp.lt.s32.totalorder %s646, 15
      %s650 = scalar_select %p649, %s646, 15
      %s651 = smul.addr %s650, 2
      %s652 = smul.addr %s648, 32
      %s653 = sadd.s32 %s651, %s652
      %s654 = smul.addr %s653, 4
      %s655 = scalar_lea.vmem %s3, %s654
      %s656 = smul.u32 %s26, 4
      %s657 = ssub.s32 %s656, 1
      %p658 = scmp.gt.s32.totalorder %s657, 0
      %s659 = scalar_select %p658, %s657, 0
      %s660 = smul.u32 2, %s659
      %s661 = sadd.s32 %s26, 1
      %s662 = smul.u32 %s661, 4
      %p663 = scmp.lt.s32.totalorder %s662, 7
      %s664 = scalar_select %p663, %s662, 7
      %s665 = smul.u32 2, %s664
      %p666 = scmp.lt.s32.totalorder %s25, 1
      %s667 = scalar_select %p666, %s25, 1
      %p668 = scmp.lt.s32.totalorder %s665, 15
      %s669 = scalar_select %p668, %s665, 15
      %s670 = smul.addr %s669, 2
      %s671 = smul.addr %s667, 32
      %s672 = sadd.s32 %s670, %s671
      %s673 = smul.addr %s672, 4
      %s674 = scalar_lea.vmem %s4, %s673
      %s675 = sadd.s32 %s26, 1
      %s676 = smul.u32 %s675, 4
      %p677 = scmp.lt.s32.totalorder %s676, 7
      %s678 = scalar_select %p677, %s676, 7
      %s679 = smul.u32 2, %s678
      %s680 = sadd.s32 %s26, 1
      %s681 = smul.u32 %s680, 4
      %p682 = scmp.lt.s32.totalorder %s681, 7
      %s683 = scalar_select %p682, %s681, 7
      %s684 = smul.u32 2, %s683
      %p685 = scmp.lt.s32.totalorder %s25, 1
      %s686 = scalar_select %p685, %s25, 1
      %p687 = scmp.lt.s32.totalorder %s684, 15
      %s688 = scalar_select %p687, %s684, 15
      %s689 = smul.addr %s688, 2
      %s690 = smul.addr %s686, 32
      %s691 = sadd.s32 %s689, %s690
      %s692 = smul.addr %s691, 4
      %s693 = scalar_lea.vmem %s5, %s692
      %s694 = sadd.s32 %s26, 1
      %s695 = smul.u32 %s694, 4
      %p696 = scmp.lt.s32.totalorder %s695, 7
      %s697 = scalar_select %p696, %s695, 7
      %s698 = smul.u32 2, %s697
      %s699 = smul.u32 16, %s26
      %p700 = scmp.lt.s32.totalorder %s25, 1
      %s701 = scalar_select %p700, %s25, 1
      %p702 = scmp.lt.s32.totalorder %s699, 31
      %s703 = scalar_select %p702, %s699, 31
      %s704 = smul.addr %s701, 32
      %s705 = sadd.s32 %s703, %s704
      %s706 = smul.addr %s705, 8
      %s707 = scalar_lea.vmem %s10, %s706
      %s708 = smul.u32 16, %s26
      %vm710 = vcmask 57344
      %vm711 = vsmask.f32 256
      %vm712 = vmand %vm710, %vm711
      %v713 = vld [vmem:[#allocation2] sm:$0x1]
      %v714 = vsel %vm712, 0, %v713
      %715 = vst [vmem:[#allocation2] sm:$0x1] %v714
      %v716 = vld [vmem:[#allocation2 + $0xc] sm:$0x1]
      %v717 = vsel %vm712, 0, %v716
      %718 = vst [vmem:[#allocation2 + $0xc] sm:$0x1] %v717
      %v719 = vld [vmem:[#allocation2 + $0x18] sm:$0x1]
      %v720 = vsel %vm712, 0, %v719
      %721 = vst [vmem:[#allocation2 + $0x18] sm:$0x1] %v720
      %v722 = vld [vmem:[#allocation2 + $0x24] sm:$0x1]
      %v723 = vsel %vm712, 0, %v722
      %724 = vst [vmem:[#allocation2 + $0x24] sm:$0x1] %v723
      %v725 = vld [vmem:[#allocation2 + $0x30] sm:$0x1]
      %v726 = vsel %vm712, 0, %v725
      %727 = vst [vmem:[#allocation2 + $0x30] sm:$0x1] %v726
      %v728 = vld [vmem:[#allocation2 + $0x3c] sm:$0x1]
      %v729 = vsel %vm712, 0, %v728
      %730 = vst [vmem:[#allocation2 + $0x3c] sm:$0x1] %v729
      %v731 = vld [vmem:[#allocation2 + $0x48] sm:$0x1]
      %v732 = vsel %vm712, 0, %v731
      %733 = vst [vmem:[#allocation2 + $0x48] sm:$0x1] %v732
      %v734 = vld [vmem:[#allocation2 + $0x54] sm:$0x1]
      %v735 = vsel %vm712, 0, %v734
      %736 = vst [vmem:[#allocation2 + $0x54] sm:$0x1] %v735
      %v737 = vld [vmem:[#allocation2 + $0x60] sm:$0x1]
      %v738 = vsel %vm712, 0, %v737
      %739 = vst [vmem:[#allocation2 + $0x60] sm:$0x1] %v738
      %v740 = vld [vmem:[#allocation2 + $0x6c] sm:$0x1]
      %v741 = vsel %vm712, 0, %v740
      %742 = vst [vmem:[#allocation2 + $0x6c] sm:$0x1] %v741
      %v743 = vld [vmem:[#allocation2 + $0x78] sm:$0x1]
      %v744 = vsel %vm712, 0, %v743
      %745 = vst [vmem:[#allocation2 + $0x78] sm:$0x1] %v744
      %v746 = vld [vmem:[#allocation2 + $0x84] sm:$0x1]
      %v747 = vsel %vm712, 0, %v746
      %748 = vst [vmem:[#allocation2 + $0x84] sm:$0x1] %v747
      %vm749 = vsmask.f32 7938
      %vm750 = vmand %vm710, %vm749
      %v751 = vld [vmem:[#allocation2 + $0x8] sm:$0x1]
      %v752 = vsel %vm750, 0, %v751
      %753 = vst [vmem:[#allocation2 + $0x8] sm:$0x1] %v752
      %v754 = vld [vmem:[#allocation2 + $0x14] sm:$0x1]
      %v755 = vsel %vm750, 0, %v754
      %756 = vst [vmem:[#allocation2 + $0x14] sm:$0x1] %v755
      %v757 = vld [vmem:[#allocation2 + $0x20] sm:$0x1]
      %v758 = vsel %vm750, 0, %v757
      %759 = vst [vmem:[#allocation2 + $0x20] sm:$0x1] %v758
      %v760 = vld [vmem:[#allocation2 + $0x2c] sm:$0x1]
      %v761 = vsel %vm750, 0, %v760
      %762 = vst [vmem:[#allocation2 + $0x2c] sm:$0x1] %v761
      %v763 = vld [vmem:[#allocation2 + $0x38] sm:$0x1]
      %v764 = vsel %vm750, 0, %v763
      %765 = vst [vmem:[#allocation2 + $0x38] sm:$0x1] %v764
      %v766 = vld [vmem:[#allocation2 + $0x44] sm:$0x1]
      %v767 = vsel %vm750, 0, %v766
      %768 = vst [vmem:[#allocation2 + $0x44] sm:$0x1] %v767
      %v769 = vld [vmem:[#allocation2 + $0x50] sm:$0x1]
      %v770 = vsel %vm750, 0, %v769
      %771 = vst [vmem:[#allocation2 + $0x50] sm:$0x1] %v770
      %v772 = vld [vmem:[#allocation2 + $0x5c] sm:$0x1]
      %v773 = vsel %vm750, 0, %v772
      %774 = vst [vmem:[#allocation2 + $0x5c] sm:$0x1] %v773
      %v775 = vld [vmem:[#allocation2 + $0x68] sm:$0x1]
      %v776 = vsel %vm750, 0, %v775
      %777 = vst [vmem:[#allocation2 + $0x68] sm:$0x1] %v776
      %v778 = vld [vmem:[#allocation2 + $0x74] sm:$0x1]
      %v779 = vsel %vm750, 0, %v778
      %780 = vst [vmem:[#allocation2 + $0x74] sm:$0x1] %v779
      %v781 = vld [vmem:[#allocation2 + $0x80] sm:$0x1]
      %v782 = vsel %vm750, 0, %v781
      %783 = vst [vmem:[#allocation2 + $0x80] sm:$0x1] %v782
      %v784 = vld [vmem:[#allocation2 + $0x8c] sm:$0x1]
      %v785 = vsel %vm750, 0, %v784
      %786 = vst [vmem:[#allocation2 + $0x8c] sm:$0x1] %v785
      %v787 = vld [vmem:[%s621] sm:$0xf]
      %v788 = vld [vmem:[%s621 + $0x4] sm:$0xf]
      %v789 = vld [vmem:[%s621 + $0x8] sm:$0xf]
      %v790 = vld [vmem:[%s621 + $0xc] sm:$0xf]
      %v791 = vld [vmem:[%s621 + $0x10] sm:$0xf]
      %v792 = vld [vmem:[%s621 + $0x14] sm:$0xf]
      %v793 = vld [vmem:[%s621 + $0x18] sm:$0xf]
      %v794 = vld [vmem:[%s621 + $0x1c] sm:$0xf]
      %v795 = vld [vmem:[%s621 + $0x20] sm:$0xf]
      %v796 = vld [vmem:[%s621 + $0x24] sm:$0xf]
      %v797 = vld [vmem:[%s621 + $0x28] sm:$0xf]
      %v798 = vld [vmem:[%s621 + $0x2c] sm:$0xf]
      %v799 = vld [vmem:[%s621 + $0x30] sm:$0xf]
      %v800 = vld [vmem:[%s621 + $0x34] sm:$0xf]
      %v801 = vld [vmem:[%s621 + $0x38] sm:$0xf]
      %v802 = vld [vmem:[%s621 + $0x3c] sm:$0xf]
      %vm803 = vsmask.f32 4368
      %vm804 = vmor %vm711, %vm803
      %v806 = vshrl.u32 %v787, 16
      %v808 = vrot.slane %v806, 7
      %v809 = vshll.u32 %v787, 16
      %v811 = vor.u32 %v808, %v809
      %v812 = vrot.slane %v808, 4
      %v814 = vshrl.u32 %v788, 16
      %v816 = vrot.slane %v814, 7
      %v817 = vshll.u32 %v788, 16
      %v819 = vor.u32 %v816, %v817
      %v820 = vsel %vm804, %v812, %v819
      %v821 = vrot.slane %v816, 4
      %v823 = vshrl.u32 %v789, 16
      %v825 = vrot.slane %v823, 7
      %v826 = vshll.u32 %v789, 16
      %v828 = vor.u32 %v825, %v826
      %v829 = vrot.slane %v825, 4
      %v831 = vshrl.u32 %v790, 16
      %v833 = vrot.slane %v831, 7
      %v834 = vshll.u32 %v790, 16
      %v836 = vor.u32 %v833, %v834
      %v837 = vsel %vm804, %v829, %v836
      %v838 = vrot.slane %v833, 4
      %v840 = vshrl.u32 %v791, 16
      %v842 = vrot.slane %v840, 7
      %v843 = vshll.u32 %v791, 16
      %v845 = vor.u32 %v842, %v843
      %v846 = vrot.slane %v842, 4
      %v848 = vshrl.u32 %v792, 16
      %v850 = vrot.slane %v848, 7
      %v851 = vshll.u32 %v792, 16
      %v853 = vor.u32 %v850, %v851
      %v854 = vsel %vm804, %v846, %v853
      %v855 = vrot.slane %v850, 4
      %v857 = vshrl.u32 %v793, 16
      %v859 = vrot.slane %v857, 7
      %v860 = vshll.u32 %v793, 16
      %v862 = vor.u32 %v859, %v860
      %v863 = vrot.slane %v859, 4
      %v865 = vshrl.u32 %v794, 16
      %v867 = vrot.slane %v865, 7
      %v868 = vshll.u32 %v794, 16
      %v870 = vor.u32 %v867, %v868
      %v871 = vsel %vm804, %v863, %v870
      %v872 = vrot.slane %v867, 4
      %v874 = vshrl.u32 %v795, 16
      %v876 = vrot.slane %v874, 7
      %v877 = vshll.u32 %v795, 16
      %v879 = vor.u32 %v876, %v877
      %v880 = vrot.slane %v876, 4
      %v882 = vshrl.u32 %v796, 16
      %v884 = vrot.slane %v882, 7
      %v885 = vshll.u32 %v796, 16
      %v887 = vor.u32 %v884, %v885
      %v888 = vsel %vm804, %v880, %v887
      %v889 = vrot.slane %v884, 4
      %v891 = vshrl.u32 %v797, 16
      %v893 = vrot.slane %v891, 7
      %v894 = vshll.u32 %v797, 16
      %v896 = vor.u32 %v893, %v894
      %v897 = vrot.slane %v893, 4
      %v899 = vshrl.u32 %v798, 16
      %v901 = vrot.slane %v899, 7
      %v902 = vshll.u32 %v798, 16
      %v904 = vor.u32 %v901, %v902
      %v905 = vsel %vm804, %v897, %v904
      %v906 = vrot.slane %v901, 4
      %v908 = vshrl.u32 %v799, 16
      %v910 = vrot.slane %v908, 7
      %v911 = vshll.u32 %v799, 16
      %v913 = vor.u32 %v910, %v911
      %v914 = vrot.slane %v910, 4
      %v916 = vshrl.u32 %v800, 16
      %v918 = vrot.slane %v916, 7
      %v919 = vshll.u32 %v800, 16
      %v921 = vor.u32 %v918, %v919
      %v922 = vsel %vm804, %v914, %v921
      %v923 = vrot.slane %v918, 4
      %v925 = vshrl.u32 %v801, 16
      %v927 = vrot.slane %v925, 7
      %v928 = vshll.u32 %v801, 16
      %v930 = vor.u32 %v927, %v928
      %v931 = vrot.slane %v927, 4
      %v933 = vshrl.u32 %v802, 16
      %v935 = vrot.slane %v933, 7
      %v936 = vshll.u32 %v802, 16
      %v938 = vor.u32 %v935, %v936
      %v939 = vsel %vm804, %v931, %v938
      %v940 = vrot.slane %v935, 4
      %s965 = scalar_lea.vmem [#allocation2], 24
      %vm966 = vcmask 27648
      %vm967 = vmand %vm966, %vm749
      %v968 = vld [vmem:[%s965] sm:$0xf]
      %v969 = vsel %vm967, %v811, %v968
      %970 = vst [vmem:[%s965] sm:$0xf] %v969
      %vm971 = vcmask 27648
      %972 = vst.msk [vmem:[%s965 + $0x4] sm:$0xf] %vm971, %v820
      %vm973 = vcmask 24576
      %vm974 = vmand %vm973, %vm711
      %v975 = vld [vmem:[%s965 + $0x8] sm:$0x1]
      %v976 = vsel %vm974, %v821, %v975
      %977 = vst [vmem:[%s965 + $0x8] sm:$0x1] %v976
      %v978 = vld [vmem:[%s965 + $0xc] sm:$0xf]
      %v979 = vsel %vm967, %v828, %v978
      %980 = vst [vmem:[%s965 + $0xc] sm:$0xf] %v979
      %981 = vst.msk [vmem:[%s965 + $0x10] sm:$0xf] %vm971, %v837
      %v982 = vld [vmem:[%s965 + $0x14] sm:$0x1]
      %v983 = vsel %vm974, %v838, %v982
      %984 = vst [vmem:[%s965 + $0x14] sm:$0x1] %v983
      %v985 = vld [vmem:[%s965 + $0x18] sm:$0xf]
      %v986 = vsel %vm967, %v845, %v985
      %987 = vst [vmem:[%s965 + $0x18] sm:$0xf] %v986
      %988 = vst.msk [vmem:[%s965 + $0x1c] sm:$0xf] %vm971, %v854
      %v989 = vld [vmem:[%s965 + $0x20] sm:$0x1]
      %v990 = vsel %vm974, %v855, %v989
      %991 = vst [vmem:[%s965 + $0x20] sm:$0x1] %v990
      %v992 = vld [vmem:[%s965 + $0x24] sm:$0xf]
      %v993 = vsel %vm967, %v862, %v992
      %994 = vst [vmem:[%s965 + $0x24] sm:$0xf] %v993
      %995 = vst.msk [vmem:[%s965 + $0x28] sm:$0xf] %vm971, %v871
      %v996 = vld [vmem:[%s965 + $0x2c] sm:$0x1]
      %v997 = vsel %vm974, %v872, %v996
      %998 = vst [vmem:[%s965 + $0x2c] sm:$0x1] %v997
      %v999 = vld [vmem:[%s965 + $0x30] sm:$0xf]
      %v1000 = vsel %vm967, %v879, %v999
      %1001 = vst [vmem:[%s965 + $0x30] sm:$0xf] %v1000
      %1002 = vst.msk [vmem:[%s965 + $0x34] sm:$0xf] %vm971, %v888
      %v1003 = vld [vmem:[%s965 + $0x38] sm:$0x1]
      %v1004 = vsel %vm974, %v889, %v1003
      %1005 = vst [vmem:[%s965 + $0x38] sm:$0x1] %v1004
      %v1006 = vld [vmem:[%s965 + $0x3c] sm:$0xf]
      %v1007 = vsel %vm967, %v896, %v1006
      %1008 = vst [vmem:[%s965 + $0x3c] sm:$0xf] %v1007
      %1009 = vst.msk [vmem:[%s965 + $0x40] sm:$0xf] %vm971, %v905
      %v1010 = vld [vmem:[%s965 + $0x44] sm:$0x1]
      %v1011 = vsel %vm974, %v906, %v1010
      %1012 = vst [vmem:[%s965 + $0x44] sm:$0x1] %v1011
      %v1013 = vld [vmem:[%s965 + $0x48] sm:$0xf]
      %v1014 = vsel %vm967, %v913, %v1013
      %1015 = vst [vmem:[%s965 + $0x48] sm:$0xf] %v1014
      %1016 = vst.msk [vmem:[%s965 + $0x4c] sm:$0xf] %vm971, %v922
      %v1017 = vld [vmem:[%s965 + $0x50] sm:$0x1]
      %v1018 = vsel %vm974, %v923, %v1017
      %1019 = vst [vmem:[%s965 + $0x50] sm:$0x1] %v1018
      %v1020 = vld [vmem:[%s965 + $0x54] sm:$0xf]
      %v1021 = vsel %vm967, %v930, %v1020
      %1022 = vst [vmem:[%s965 + $0x54] sm:$0xf] %v1021
      %1023 = vst.msk [vmem:[%s965 + $0x58] sm:$0xf] %vm971, %v939
      %v1024 = vld [vmem:[%s965 + $0x5c] sm:$0x1]
      %v1025 = vsel %vm974, %v940, %v1024
      %1026 = vst [vmem:[%s965 + $0x5c] sm:$0x1] %v1025
      %v1027 = vld [vmem:[%s610] sm:$0xf]
      %v1028 = vld [vmem:[%s610 + $0x4] sm:$0xf]
      %v1029 = vld [vmem:[%s610 + $0x8] sm:$0xf]
      %v1030 = vld [vmem:[%s610 + $0xc] sm:$0xf]
      %v1031 = vld [vmem:[%s610 + $0x10] sm:$0xf]
      %v1032 = vld [vmem:[%s610 + $0x14] sm:$0xf]
      %v1033 = vld [vmem:[%s610 + $0x18] sm:$0xf]
      %v1034 = vld [vmem:[%s610 + $0x1c] sm:$0xf]
      %v1035 = vld [vmem:[%s610 + $0x20] sm:$0xf]
      %v1036 = vld [vmem:[%s610 + $0x24] sm:$0xf]
      %v1037 = vld [vmem:[%s610 + $0x28] sm:$0xf]
      %v1038 = vld [vmem:[%s610 + $0x2c] sm:$0xf]
      %v1039 = vld [vmem:[%s610 + $0x30] sm:$0xf]
      %v1040 = vld [vmem:[%s610 + $0x34] sm:$0xf]
      %v1041 = vld [vmem:[%s610 + $0x38] sm:$0xf]
      %v1042 = vld [vmem:[%s610 + $0x3c] sm:$0xf]
      %v1044 = vshrl.u32 %v1027, 16
      %v1046 = vrot.slane %v1044, 7
      %v1047 = vshll.u32 %v1027, 16
      %v1049 = vor.u32 %v1046, %v1047
      %v1050 = vrot.slane %v1046, 4
      %v1052 = vshrl.u32 %v1028, 16
      %v1054 = vrot.slane %v1052, 7
      %v1055 = vshll.u32 %v1028, 16
      %v1057 = vor.u32 %v1054, %v1055
      %v1058 = vsel %vm804, %v1050, %v1057
      %v1059 = vrot.slane %v1054, 4
      %v1061 = vshrl.u32 %v1029, 16
      %v1063 = vrot.slane %v1061, 7
      %v1064 = vshll.u32 %v1029, 16
      %v1066 = vor.u32 %v1063, %v1064
      %v1067 = vrot.slane %v1063, 4
      %v1069 = vshrl.u32 %v1030, 16
      %v1071 = vrot.slane %v1069, 7
      %v1072 = vshll.u32 %v1030, 16
      %v1074 = vor.u32 %v1071, %v1072
      %v1075 = vsel %vm804, %v1067, %v1074
      %v1076 = vrot.slane %v1071, 4
      %v1078 = vshrl.u32 %v1031, 16
      %v1080 = vrot.slane %v1078, 7
      %v1081 = vshll.u32 %v1031, 16
      %v1083 = vor.u32 %v1080, %v1081
      %v1084 = vrot.slane %v1080, 4
      %v1086 = vshrl.u32 %v1032, 16
      %v1088 = vrot.slane %v1086, 7
      %v1089 = vshll.u32 %v1032, 16
      %v1091 = vor.u32 %v1088, %v1089
      %v1092 = vsel %vm804, %v1084, %v1091
      %v1093 = vrot.slane %v1088, 4
      %v1095 = vshrl.u32 %v1033, 16
      %v1097 = vrot.slane %v1095, 7
      %v1098 = vshll.u32 %v1033, 16
      %v1100 = vor.u32 %v1097, %v1098
      %v1101 = vrot.slane %v1097, 4
      %v1103 = vshrl.u32 %v1034, 16
      %v1105 = vrot.slane %v1103, 7
      %v1106 = vshll.u32 %v1034, 16
      %v1108 = vor.u32 %v1105, %v1106
      %v1109 = vsel %vm804, %v1101, %v1108
      %v1110 = vrot.slane %v1105, 4
      %v1112 = vshrl.u32 %v1035, 16
      %v1114 = vrot.slane %v1112, 7
      %v1115 = vshll.u32 %v1035, 16
      %v1117 = vor.u32 %v1114, %v1115
      %v1118 = vrot.slane %v1114, 4
      %v1120 = vshrl.u32 %v1036, 16
      %v1122 = vrot.slane %v1120, 7
      %v1123 = vshll.u32 %v1036, 16
      %v1125 = vor.u32 %v1122, %v1123
      %v1126 = vsel %vm804, %v1118, %v1125
      %v1127 = vrot.slane %v1122, 4
      %v1129 = vshrl.u32 %v1037, 16
      %v1131 = vrot.slane %v1129, 7
      %v1132 = vshll.u32 %v1037, 16
      %v1134 = vor.u32 %v1131, %v1132
      %v1135 = vrot.slane %v1131, 4
      %v1137 = vshrl.u32 %v1038, 16
      %v1139 = vrot.slane %v1137, 7
      %v1140 = vshll.u32 %v1038, 16
      %v1142 = vor.u32 %v1139, %v1140
      %v1143 = vsel %vm804, %v1135, %v1142
      %v1144 = vrot.slane %v1139, 4
      %v1146 = vshrl.u32 %v1039, 16
      %v1148 = vrot.slane %v1146, 7
      %v1149 = vshll.u32 %v1039, 16
      %v1151 = vor.u32 %v1148, %v1149
      %v1152 = vrot.slane %v1148, 4
      %v1154 = vshrl.u32 %v1040, 16
      %v1156 = vrot.slane %v1154, 7
      %v1157 = vshll.u32 %v1040, 16
      %v1159 = vor.u32 %v1156, %v1157
      %v1160 = vsel %vm804, %v1152, %v1159
      %v1161 = vrot.slane %v1156, 4
      %v1163 = vshrl.u32 %v1041, 16
      %v1165 = vrot.slane %v1163, 7
      %v1166 = vshll.u32 %v1041, 16
      %v1168 = vor.u32 %v1165, %v1166
      %v1169 = vrot.slane %v1165, 4
      %v1171 = vshrl.u32 %v1042, 16
      %v1173 = vrot.slane %v1171, 7
      %v1174 = vshll.u32 %v1042, 16
      %v1176 = vor.u32 %v1173, %v1174
      %v1177 = vsel %vm804, %v1169, %v1176
      %v1178 = vrot.slane %v1173, 4
      %1179 = vrot.lane.b32.xlu0 %v1049, 4
      %v1180 = vpop.permute.xlu0 %1179
      %1181 = vrot.lane.b32.xlu0 %v1058, 4
      %v1182 = vpop.permute.xlu0 %1181
      %1183 = vrot.lane.b32.xlu0 %v1059, 4
      %v1184 = vpop.permute.xlu0 %1183
      %1185 = vrot.lane.b32.xlu0 %v1066, 4
      %v1186 = vpop.permute.xlu0 %1185
      %1187 = vrot.lane.b32.xlu0 %v1075, 4
      %v1188 = vpop.permute.xlu0 %1187
      %1189 = vrot.lane.b32.xlu0 %v1076, 4
      %v1190 = vpop.permute.xlu0 %1189
      %1191 = vrot.lane.b32.xlu0 %v1083, 4
      %v1192 = vpop.permute.xlu0 %1191
      %1193 = vrot.lane.b32.xlu0 %v1092, 4
      %v1194 = vpop.permute.xlu0 %1193
      %1195 = vrot.lane.b32.xlu0 %v1093, 4
      %v1196 = vpop.permute.xlu0 %1195
      %1197 = vrot.lane.b32.xlu0 %v1100, 4
      %v1198 = vpop.permute.xlu0 %1197
      %1199 = vrot.lane.b32.xlu0 %v1109, 4
      %v1200 = vpop.permute.xlu0 %1199
      %1201 = vrot.lane.b32.xlu0 %v1110, 4
      %v1202 = vpop.permute.xlu0 %1201
      %1203 = vrot.lane.b32.xlu0 %v1117, 4
      %v1204 = vpop.permute.xlu0 %1203
      %1205 = vrot.lane.b32.xlu0 %v1126, 4
      %v1206 = vpop.permute.xlu0 %1205
      %1207 = vrot.lane.b32.xlu0 %v1127, 4
      %v1208 = vpop.permute.xlu0 %1207
      %1209 = vrot.lane.b32.xlu0 %v1134, 4
      %v1210 = vpop.permute.xlu0 %1209
      %1211 = vrot.lane.b32.xlu0 %v1143, 4
      %v1212 = vpop.permute.xlu0 %1211
      %1213 = vrot.lane.b32.xlu0 %v1144, 4
      %v1214 = vpop.permute.xlu0 %1213
      %1215 = vrot.lane.b32.xlu0 %v1151, 4
      %v1216 = vpop.permute.xlu0 %1215
      %1217 = vrot.lane.b32.xlu0 %v1160, 4
      %v1218 = vpop.permute.xlu0 %1217
      %1219 = vrot.lane.b32.xlu0 %v1161, 4
      %v1220 = vpop.permute.xlu0 %1219
      %1221 = vrot.lane.b32.xlu0 %v1168, 4
      %v1222 = vpop.permute.xlu0 %1221
      %1223 = vrot.lane.b32.xlu0 %v1177, 4
      %v1224 = vpop.permute.xlu0 %1223
      %1225 = vrot.lane.b32.xlu0 %v1178, 4
      %v1226 = vpop.permute.xlu0 %1225
      %vm1251 = vcmask 60448
      %vm1252 = vmand %vm1251, %vm749
      %v1253 = vld [vmem:[%s965] sm:$0xf]
      %v1254 = vsel %vm1252, %v1180, %v1253
      %1255 = vst [vmem:[%s965] sm:$0xf] %v1254
      %vm1256 = vcmask 60448
      %1257 = vst.msk [vmem:[%s965 + $0x4] sm:$0xf] %vm1256, %v1182
      %vm1258 = vcmask 57376
      %vm1259 = vmand %vm1258, %vm711
      %v1260 = vld [vmem:[%s965 + $0x8] sm:$0x1]
      %v1261 = vsel %vm1259, %v1184, %v1260
      %1262 = vst [vmem:[%s965 + $0x8] sm:$0x1] %v1261
      %v1263 = vld [vmem:[%s965 + $0xc] sm:$0xf]
      %v1264 = vsel %vm1252, %v1186, %v1263
      %1265 = vst [vmem:[%s965 + $0xc] sm:$0xf] %v1264
      %1266 = vst.msk [vmem:[%s965 + $0x10] sm:$0xf] %vm1256, %v1188
      %v1267 = vld [vmem:[%s965 + $0x14] sm:$0x1]
      %v1268 = vsel %vm1259, %v1190, %v1267
      %1269 = vst [vmem:[%s965 + $0x14] sm:$0x1] %v1268
      %v1270 = vld [vmem:[%s965 + $0x18] sm:$0xf]
      %v1271 = vsel %vm1252, %v1192, %v1270
      %1272 = vst [vmem:[%s965 + $0x18] sm:$0xf] %v1271
      %1273 = vst.msk [vmem:[%s965 + $0x1c] sm:$0xf] %vm1256, %v1194
      %v1274 = vld [vmem:[%s965 + $0x20] sm:$0x1]
      %v1275 = vsel %vm1259, %v1196, %v1274
      %1276 = vst [vmem:[%s965 + $0x20] sm:$0x1] %v1275
      %v1277 = vld [vmem:[%s965 + $0x24] sm:$0xf]
      %v1278 = vsel %vm1252, %v1198, %v1277
      %1279 = vst [vmem:[%s965 + $0x24] sm:$0xf] %v1278
      %1280 = vst.msk [vmem:[%s965 + $0x28] sm:$0xf] %vm1256, %v1200
      %v1281 = vld [vmem:[%s965 + $0x2c] sm:$0x1]
      %v1282 = vsel %vm1259, %v1202, %v1281
      %1283 = vst [vmem:[%s965 + $0x2c] sm:$0x1] %v1282
      %v1284 = vld [vmem:[%s965 + $0x30] sm:$0xf]
      %v1285 = vsel %vm1252, %v1204, %v1284
      %1286 = vst [vmem:[%s965 + $0x30] sm:$0xf] %v1285
      %1287 = vst.msk [vmem:[%s965 + $0x34] sm:$0xf] %vm1256, %v1206
      %v1288 = vld [vmem:[%s965 + $0x38] sm:$0x1]
      %v1289 = vsel %vm1259, %v1208, %v1288
      %1290 = vst [vmem:[%s965 + $0x38] sm:$0x1] %v1289
      %v1291 = vld [vmem:[%s965 + $0x3c] sm:$0xf]
      %v1292 = vsel %vm1252, %v1210, %v1291
      %1293 = vst [vmem:[%s965 + $0x3c] sm:$0xf] %v1292
      %1294 = vst.msk [vmem:[%s965 + $0x40] sm:$0xf] %vm1256, %v1212
      %v1295 = vld [vmem:[%s965 + $0x44] sm:$0x1]
      %v1296 = vsel %vm1259, %v1214, %v1295
      %1297 = vst [vmem:[%s965 + $0x44] sm:$0x1] %v1296
      %v1298 = vld [vmem:[%s965 + $0x48] sm:$0xf]
      %v1299 = vsel %vm1252, %v1216, %v1298
      %1300 = vst [vmem:[%s965 + $0x48] sm:$0xf] %v1299
      %1301 = vst.msk [vmem:[%s965 + $0x4c] sm:$0xf] %vm1256, %v1218
      %v1302 = vld [vmem:[%s965 + $0x50] sm:$0x1]
      %v1303 = vsel %vm1259, %v1220, %v1302
      %1304 = vst [vmem:[%s965 + $0x50] sm:$0x1] %v1303
      %v1305 = vld [vmem:[%s965 + $0x54] sm:$0xf]
      %v1306 = vsel %vm1252, %v1222, %v1305
      %1307 = vst [vmem:[%s965 + $0x54] sm:$0xf] %v1306
      %1308 = vst.msk [vmem:[%s965 + $0x58] sm:$0xf] %vm1256, %v1224
      %v1309 = vld [vmem:[%s965 + $0x5c] sm:$0x1]
      %v1310 = vsel %vm1259, %v1226, %v1309
      %1311 = vst [vmem:[%s965 + $0x5c] sm:$0x1] %v1310
      %p1312 = scmp.gt.s32.totalorder %s26, 0
      // Predicated region
      $region61: #{tpu_custom_call.1} parent=59 // pred_check
        %p1313 = pneg %p1312
      $region62: #{tpu_custom_call.1} parent=59 // pred_check_branch
        %1315 = sbr.rel (%p1313) target = $region64
      $region63: #{tpu_custom_call.1} parent=59 // pred_region
        %v1316 = vld [vmem:[%s655] sm:$0xf]
        %v1317 = vld [vmem:[%s655 + $0x4] sm:$0xf]
        %v1318 = vld [vmem:[%s655 + $0x8] sm:$0xf]
        %v1319 = vld [vmem:[%s655 + $0xc] sm:$0xf]
        %v1321 = vshrl.u32 %v1316, 16
        %v1323 = vrot.slane %v1321, 7
        %v1324 = vshll.u32 %v1316, 16
        %v1326 = vor.u32 %v1323, %v1324
        %v1327 = vrot.slane %v1323, 4
        %v1329 = vshrl.u32 %v1317, 16
        %v1331 = vrot.slane %v1329, 7
        %v1332 = vshll.u32 %v1317, 16
        %v1334 = vor.u32 %v1331, %v1332
        %v1335 = vsel %vm804, %v1327, %v1334
        %v1336 = vrot.slane %v1331, 4
        %v1338 = vshrl.u32 %v1318, 16
        %v1340 = vrot.slane %v1338, 7
        %v1341 = vshll.u32 %v1318, 16
        %v1343 = vor.u32 %v1340, %v1341
        %v1344 = vrot.slane %v1340, 4
        %v1346 = vshrl.u32 %v1319, 16
        %v1348 = vrot.slane %v1346, 7
        %v1349 = vshll.u32 %v1319, 16
        %v1351 = vor.u32 %v1348, %v1349
        %v1352 = vsel %vm804, %v1344, %v1351
        %v1353 = vrot.slane %v1348, 4
        %v1360 = vld [vmem:[#allocation2] sm:$0xf]
        %v1361 = vsel %vm967, %v1326, %v1360
        %1362 = vst [vmem:[#allocation2] sm:$0xf] %v1361
        %1363 = vst.msk [vmem:[#allocation2 + $0x4] sm:$0xf] %vm971, %v1335
        %v1364 = vld [vmem:[#allocation2 + $0x8] sm:$0x1]
        %v1365 = vsel %vm974, %v1336, %v1364
        %1366 = vst [vmem:[#allocation2 + $0x8] sm:$0x1] %v1365
        %v1367 = vld [vmem:[#allocation2 + $0xc] sm:$0xf]
        %v1368 = vsel %vm967, %v1343, %v1367
        %1369 = vst [vmem:[#allocation2 + $0xc] sm:$0xf] %v1368
        %1370 = vst.msk [vmem:[#allocation2 + $0x10] sm:$0xf] %vm971, %v1352
        %v1371 = vld [vmem:[#allocation2 + $0x14] sm:$0x1]
        %v1372 = vsel %vm974, %v1353, %v1371
        %1373 = vst [vmem:[#allocation2 + $0x14] sm:$0x1] %v1372
        %v1374 = vld [vmem:[%s636] sm:$0xf]
        %v1375 = vld [vmem:[%s636 + $0x4] sm:$0xf]
        %v1376 = vld [vmem:[%s636 + $0x8] sm:$0xf]
        %v1377 = vld [vmem:[%s636 + $0xc] sm:$0xf]
        %v1379 = vshrl.u32 %v1374, 16
        %v1381 = vrot.slane %v1379, 7
        %v1382 = vshll.u32 %v1374, 16
        %v1384 = vor.u32 %v1381, %v1382
        %v1385 = vrot.slane %v1381, 4
        %v1387 = vshrl.u32 %v1375, 16
        %v1389 = vrot.slane %v1387, 7
        %v1390 = vshll.u32 %v1375, 16
        %v1392 = vor.u32 %v1389, %v1390
        %v1393 = vsel %vm804, %v1385, %v1392
        %v1394 = vrot.slane %v1389, 4
        %v1396 = vshrl.u32 %v1376, 16
        %v1398 = vrot.slane %v1396, 7
        %v1399 = vshll.u32 %v1376, 16
        %v1401 = vor.u32 %v1398, %v1399
        %v1402 = vrot.slane %v1398, 4
        %v1404 = vshrl.u32 %v1377, 16
        %v1406 = vrot.slane %v1404, 7
        %v1407 = vshll.u32 %v1377, 16
        %v1409 = vor.u32 %v1406, %v1407
        %v1410 = vsel %vm804, %v1402, %v1409
        %v1411 = vrot.slane %v1406, 4
        %1412 = vrot.lane.b32.xlu0 %v1384, 4
        %v1413 = vpop.permute.xlu0 %1412
        %1414 = vrot.lane.b32.xlu0 %v1393, 4
        %v1415 = vpop.permute.xlu0 %1414
        %1416 = vrot.lane.b32.xlu0 %v1394, 4
        %v1417 = vpop.permute.xlu0 %1416
        %1418 = vrot.lane.b32.xlu0 %v1401, 4
        %v1419 = vpop.permute.xlu0 %1418
        %1420 = vrot.lane.b32.xlu0 %v1410, 4
        %v1421 = vpop.permute.xlu0 %1420
        %1422 = vrot.lane.b32.xlu0 %v1411, 4
        %v1423 = vpop.permute.xlu0 %1422
        %v1430 = vld [vmem:[#allocation2] sm:$0xf]
        %v1431 = vsel %vm1252, %v1413, %v1430
        %1432 = vst [vmem:[#allocation2] sm:$0xf] %v1431
        %1433 = vst.msk [vmem:[#allocation2 + $0x4] sm:$0xf] %vm1256, %v1415
        %v1434 = vld [vmem:[#allocation2 + $0x8] sm:$0x1]
        %v1435 = vsel %vm1259, %v1417, %v1434
        %1436 = vst [vmem:[#allocation2 + $0x8] sm:$0x1] %v1435
        %v1437 = vld [vmem:[#allocation2 + $0xc] sm:$0xf]
        %v1438 = vsel %vm1252, %v1419, %v1437
        %1439 = vst [vmem:[#allocation2 + $0xc] sm:$0xf] %v1438
        %1440 = vst.msk [vmem:[#allocation2 + $0x10] sm:$0xf] %vm1256, %v1421
        %v1441 = vld [vmem:[#allocation2 + $0x14] sm:$0x1]
        %v1442 = vsel %vm1259, %v1423, %v1441
        %1443 = vst [vmem:[#allocation2 + $0x14] sm:$0x1] %v1442
      $region64: #{tpu_custom_call.1} parent=59 // pred_fallthru
        _
      %p1444 = scmp.eq.s32.totalorder %s26, 0
      // Predicated region
      $region65: #{tpu_custom_call.1} parent=59 // pred_check
        %p1445 = pneg %p1444
      $region66: #{tpu_custom_call.1} parent=59 // pred_check_branch
        %1447 = sbr.rel (%p1445) target = $region68
      $region67: #{tpu_custom_call.1} parent=59 // pred_region
        %vm1448 = vcmask 60416
        %vm1449 = vmand %vm1448, %vm749
        %v1450 = vld [vmem:[#allocation2] sm:$0xf]
        %v1451 = vsel %vm1449, 0, %v1450
        %1452 = vst [vmem:[#allocation2] sm:$0xf] %v1451
        %vm1453 = vcmask 60416
        %1454 = vst.msk [vmem:[#allocation2 + $0x4] sm:$0xf] %vm1453, 0
        %v1455 = vld [vmem:[#allocation2 + $0x8] sm:$0x1]
        %v1456 = vsel %vm712, 0, %v1455
        %1457 = vst [vmem:[#allocation2 + $0x8] sm:$0x1] %v1456
        %v1458 = vld [vmem:[#allocation2 + $0xc] sm:$0xf]
        %v1459 = vsel %vm1449, 0, %v1458
        %1460 = vst [vmem:[#allocation2 + $0xc] sm:$0xf] %v1459
        %1461 = vst.msk [vmem:[#allocation2 + $0x10] sm:$0xf] %vm1453, 0
        %v1462 = vld [vmem:[#allocation2 + $0x14] sm:$0x1]
        %v1463 = vsel %vm712, 0, %v1462
        %1464 = vst [vmem:[#allocation2 + $0x14] sm:$0x1] %v1463
      $region68: #{tpu_custom_call.1} parent=59 // pred_fallthru
        _
      %p1465 = scmp.lt.s32.totalorder %s26, 1
      // Predicated region
      $region69: #{tpu_custom_call.1} parent=59 // pred_check
        %p1466 = pneg %p1465
      $region70: #{tpu_custom_call.1} parent=59 // pred_check_branch
        %1468 = sbr.rel (%p1466) target = $region72
      $region71: #{tpu_custom_call.1} parent=59 // pred_region
        %v1469 = vld [vmem:[%s693] sm:$0xf]
        %v1470 = vld [vmem:[%s693 + $0x4] sm:$0xf]
        %v1471 = vld [vmem:[%s693 + $0x8] sm:$0xf]
        %v1472 = vld [vmem:[%s693 + $0xc] sm:$0xf]
        %v1474 = vshrl.u32 %v1469, 16
        %v1476 = vrot.slane %v1474, 7
        %v1477 = vshll.u32 %v1469, 16
        %v1479 = vor.u32 %v1476, %v1477
        %v1480 = vrot.slane %v1476, 4
        %v1482 = vshrl.u32 %v1470, 16
        %v1484 = vrot.slane %v1482, 7
        %v1485 = vshll.u32 %v1470, 16
        %v1487 = vor.u32 %v1484, %v1485
        %v1488 = vsel %vm804, %v1480, %v1487
        %v1489 = vrot.slane %v1484, 4
        %v1491 = vshrl.u32 %v1471, 16
        %v1493 = vrot.slane %v1491, 7
        %v1494 = vshll.u32 %v1471, 16
        %v1496 = vor.u32 %v1493, %v1494
        %v1497 = vrot.slane %v1493, 4
        %v1499 = vshrl.u32 %v1472, 16
        %v1501 = vrot.slane %v1499, 7
        %v1502 = vshll.u32 %v1472, 16
        %v1504 = vor.u32 %v1501, %v1502
        %v1505 = vsel %vm804, %v1497, %v1504
        %v1506 = vrot.slane %v1501, 4
        %s1513 = scalar_lea.vmem [#allocation2], 120
        %v1514 = vld [vmem:[%s1513] sm:$0xf]
        %v1515 = vsel %vm967, %v1479, %v1514
        %1516 = vst [vmem:[%s1513] sm:$0xf] %v1515
        %1517 = vst.msk [vmem:[%s1513 + $0x4] sm:$0xf] %vm971, %v1488
        %v1518 = vld [vmem:[%s1513 + $0x8] sm:$0x1]
        %v1519 = vsel %vm974, %v1489, %v1518
        %1520 = vst [vmem:[%s1513 + $0x8] sm:$0x1] %v1519
        %v1521 = vld [vmem:[%s1513 + $0xc] sm:$0xf]
        %v1522 = vsel %vm967, %v1496, %v1521
        %1523 = vst [vmem:[%s1513 + $0xc] sm:$0xf] %v1522
        %1524 = vst.msk [vmem:[%s1513 + $0x10] sm:$0xf] %vm971, %v1505
        %v1525 = vld [vmem:[%s1513 + $0x14] sm:$0x1]
        %v1526 = vsel %vm974, %v1506, %v1525
        %1527 = vst [vmem:[%s1513 + $0x14] sm:$0x1] %v1526
        %v1528 = vld [vmem:[%s674] sm:$0xf]
        %v1529 = vld [vmem:[%s674 + $0x4] sm:$0xf]
        %v1530 = vld [vmem:[%s674 + $0x8] sm:$0xf]
        %v1531 = vld [vmem:[%s674 + $0xc] sm:$0xf]
        %v1533 = vshrl.u32 %v1528, 16
        %v1535 = vrot.slane %v1533, 7
        %v1536 = vshll.u32 %v1528, 16
        %v1538 = vor.u32 %v1535, %v1536
        %v1539 = vrot.slane %v1535, 4
        %v1541 = vshrl.u32 %v1529, 16
        %v1543 = vrot.slane %v1541, 7
        %v1544 = vshll.u32 %v1529, 16
        %v1546 = vor.u32 %v1543, %v1544
        %v1547 = vsel %vm804, %v1539, %v1546
        %v1548 = vrot.slane %v1543, 4
        %v1550 = vshrl.u32 %v1530, 16
        %v1552 = vrot.slane %v1550, 7
        %v1553 = vshll.u32 %v1530, 16
        %v1555 = vor.u32 %v1552, %v1553
        %v1556 = vrot.slane %v1552, 4
        %v1558 = vshrl.u32 %v1531, 16
        %v1560 = vrot.slane %v1558, 7
        %v1561 = vshll.u32 %v1531, 16
        %v1563 = vor.u32 %v1560, %v1561
        %v1564 = vsel %vm804, %v1556, %v1563
        %v1565 = vrot.slane %v1560, 4
        %1566 = vrot.lane.b32.xlu0 %v1538, 4
        %v1567 = vpop.permute.xlu0 %1566
        %1568 = vrot.lane.b32.xlu0 %v1547, 4
        %v1569 = vpop.permute.xlu0 %1568
        %1570 = vrot.lane.b32.xlu0 %v1548, 4
        %v1571 = vpop.permute.xlu0 %1570
        %1572 = vrot.lane.b32.xlu0 %v1555, 4
        %v1573 = vpop.permute.xlu0 %1572
        %1574 = vrot.lane.b32.xlu0 %v1564, 4
        %v1575 = vpop.permute.xlu0 %1574
        %1576 = vrot.lane.b32.xlu0 %v1565, 4
        %v1577 = vpop.permute.xlu0 %1576
        %v1584 = vld [vmem:[%s1513] sm:$0xf]
        %v1585 = vsel %vm1252, %v1567, %v1584
        %1586 = vst [vmem:[%s1513] sm:$0xf] %v1585
        %1587 = vst.msk [vmem:[%s1513 + $0x4] sm:$0xf] %vm1256, %v1569
        %v1588 = vld [vmem:[%s1513 + $0x8] sm:$0x1]
        %v1589 = vsel %vm1259, %v1571, %v1588
        %1590 = vst [vmem:[%s1513 + $0x8] sm:$0x1] %v1589
        %v1591 = vld [vmem:[%s1513 + $0xc] sm:$0xf]
        %v1592 = vsel %vm1252, %v1573, %v1591
        %1593 = vst [vmem:[%s1513 + $0xc] sm:$0xf] %v1592
        %1594 = vst.msk [vmem:[%s1513 + $0x10] sm:$0xf] %vm1256, %v1575
        %v1595 = vld [vmem:[%s1513 + $0x14] sm:$0x1]
        %v1596 = vsel %vm1259, %v1577, %v1595
        %1597 = vst [vmem:[%s1513 + $0x14] sm:$0x1] %v1596
      $region72: #{tpu_custom_call.1} parent=59 // pred_fallthru
        _
      %p1598 = scmp.eq.s32.totalorder %s26, 1
      // Predicated region
      $region73: #{tpu_custom_call.1} parent=59 // pred_check
        %p1599 = pneg %p1598
      $region74: #{tpu_custom_call.1} parent=59 // pred_check_branch
        %1601 = sbr.rel (%p1599) target = $region76
      $region75: #{tpu_custom_call.1} parent=59 // pred_region
        %s1602 = scalar_lea.vmem [#allocation2], 120
        %vm1603 = vcmask 60416
        %vm1604 = vmand %vm1603, %vm749
        %v1605 = vld [vmem:[%s1602] sm:$0xf]
        %v1606 = vsel %vm1604, 0, %v1605
        %1607 = vst [vmem:[%s1602] sm:$0xf] %v1606
        %vm1608 = vcmask 60416
        %1609 = vst.msk [vmem:[%s1602 + $0x4] sm:$0xf] %vm1608, 0
        %v1610 = vld [vmem:[%s1602 + $0x8] sm:$0x1]
        %v1611 = vsel %vm712, 0, %v1610
        %1612 = vst [vmem:[%s1602 + $0x8] sm:$0x1] %v1611
        %v1613 = vld [vmem:[%s1602 + $0xc] sm:$0xf]
        %v1614 = vsel %vm1604, 0, %v1613
        %1615 = vst [vmem:[%s1602 + $0xc] sm:$0xf] %v1614
        %1616 = vst.msk [vmem:[%s1602 + $0x10] sm:$0xf] %vm1608, 0
        %v1617 = vld [vmem:[%s1602 + $0x14] sm:$0x1]
        %v1618 = vsel %vm712, 0, %v1617
        %1619 = vst [vmem:[%s1602 + $0x14] sm:$0x1] %v1618
      $region76: #{tpu_custom_call.1} parent=59 // pred_fallthru
        _
      %v1620 = vld [vmem:[#allocation2] sm:$0xf]
      %v1621 = vld [vmem:[#allocation2 + $0x4] sm:$0xf]
      %v1622 = vld [vmem:[#allocation2 + $0xc] sm:$0xf]
      %v1623 = vld [vmem:[#allocation2 + $0x10] sm:$0xf]
      %v1624 = vld [vmem:[#allocation2 + $0x18] sm:$0xf]
      %v1625 = vld [vmem:[#allocation2 + $0x1c] sm:$0xf]
      %v1626 = vld [vmem:[#allocation2 + $0x24] sm:$0xf]
      %v1627 = vld [vmem:[#allocation2 + $0x28] sm:$0xf]
      %v1628 = vld [vmem:[#allocation2 + $0x30] sm:$0xf]
      %v1629 = vld [vmem:[#allocation2 + $0x34] sm:$0xf]
      %v1630 = vld [vmem:[#allocation2 + $0x3c] sm:$0xf]
      %v1631 = vld [vmem:[#allocation2 + $0x40] sm:$0xf]
      %v1632 = vld [vmem:[#allocation2 + $0x48] sm:$0xf]
      %v1633 = vld [vmem:[#allocation2 + $0x4c] sm:$0xf]
      %v1634 = vld [vmem:[#allocation2 + $0x54] sm:$0xf]
      %v1635 = vld [vmem:[#allocation2 + $0x58] sm:$0xf]
      %v1636 = vld [vmem:[#allocation2 + $0x60] sm:$0xf]
      %v1637 = vld [vmem:[#allocation2 + $0x64] sm:$0xf]
      %v1638 = vld [vmem:[#allocation2 + $0x6c] sm:$0xf]
      %v1639 = vld [vmem:[#allocation2 + $0x70] sm:$0xf]
      %v1640 = vld [vmem:[#allocation2 + $0x8] sm:$0x1]
      %v1641 = vld [vmem:[#allocation2 + $0x14] sm:$0x1]
      %v1642 = vld [vmem:[#allocation2 + $0x20] sm:$0x1]
      %v1643 = vld [vmem:[#allocation2 + $0x2c] sm:$0x1]
      %v1644 = vld [vmem:[#allocation2 + $0x38] sm:$0x1]
      %v1645 = vld [vmem:[#allocation2 + $0x44] sm:$0x1]
      %v1646 = vld [vmem:[#allocation2 + $0x50] sm:$0x1]
      %v1647 = vld [vmem:[#allocation2 + $0x5c] sm:$0x1]
      %v1648 = vld [vmem:[#allocation2 + $0x68] sm:$0x1]
      %v1649 = vld [vmem:[#allocation2 + $0x74] sm:$0x1]
      %vm1650 = vsmask.f32 3328
      %vm1651 = vsmask.f32 7440
      %vm1652 = vmor %vm1650, %vm1651
      %v1654 = vshrl.u32 %v1620, 16
      %v1656 = vrot.slane %v1654, 4
      %v1657 = vshll.u32 %v1620, 16
      %v1659 = vrot.slane %v1657, 5
      %v1660 = vor.u32 %v1656, %v1659
      %v1661 = vrot.slane %v1660, 4
      %v1663 = vshll.u32 %v1621, 16
      %v1665 = vrot.slane %v1663, 5
      %v1666 = vsel %vm1652, %v1661, %v1665
      %v1667 = vshrl.u32 %v1621, 16
      %v1669 = vrot.slane %v1667, 4
      %v1670 = vor.u32 %v1669, %v1665
      %v1671 = vrot.slane %v1670, 4
      %v1673 = vshll.u32 %v1640, 16
      %v1675 = vrot.slane %v1673, 5
      %v1676 = vsel %vm1652, %v1671, %v1675
      %v1678 = vshrl.u32 %v1622, 16
      %v1680 = vrot.slane %v1678, 4
      %v1681 = vshll.u32 %v1622, 16
      %v1683 = vrot.slane %v1681, 5
      %v1684 = vor.u32 %v1680, %v1683
      %v1685 = vrot.slane %v1684, 4
      %v1687 = vshll.u32 %v1623, 16
      %v1689 = vrot.slane %v1687, 5
      %v1690 = vsel %vm1652, %v1685, %v1689
      %v1691 = vshrl.u32 %v1623, 16
      %v1693 = vrot.slane %v1691, 4
      %v1694 = vor.u32 %v1693, %v1689
      %v1695 = vrot.slane %v1694, 4
      %v1697 = vshll.u32 %v1641, 16
      %v1699 = vrot.slane %v1697, 5
      %v1700 = vsel %vm1652, %v1695, %v1699
      %v1702 = vshrl.u32 %v1624, 16
      %v1704 = vrot.slane %v1702, 4
      %v1705 = vshll.u32 %v1624, 16
      %v1707 = vrot.slane %v1705, 5
      %v1708 = vor.u32 %v1704, %v1707
      %v1709 = vrot.slane %v1708, 4
      %v1711 = vshll.u32 %v1625, 16
      %v1713 = vrot.slane %v1711, 5
      %v1714 = vsel %vm1652, %v1709, %v1713
      %v1715 = vshrl.u32 %v1625, 16
      %v1717 = vrot.slane %v1715, 4
      %v1718 = vor.u32 %v1717, %v1713
      %v1719 = vrot.slane %v1718, 4
      %v1721 = vshll.u32 %v1642, 16
      %v1723 = vrot.slane %v1721, 5
      %v1724 = vsel %vm1652, %v1719, %v1723
      %v1726 = vshrl.u32 %v1626, 16
      %v1728 = vrot.slane %v1726, 4
      %v1729 = vshll.u32 %v1626, 16
      %v1731 = vrot.slane %v1729, 5
      %v1732 = vor.u32 %v1728, %v1731
      %v1733 = vrot.slane %v1732, 4
      %v1735 = vshll.u32 %v1627, 16
      %v1737 = vrot.slane %v1735, 5
      %v1738 = vsel %vm1652, %v1733, %v1737
      %v1739 = vshrl.u32 %v1627, 16
      %v1741 = vrot.slane %v1739, 4
      %v1742 = vor.u32 %v1741, %v1737
      %v1743 = vrot.slane %v1742, 4
      %v1745 = vshll.u32 %v1643, 16
      %v1747 = vrot.slane %v1745, 5
      %v1748 = vsel %vm1652, %v1743, %v1747
      %v1750 = vshrl.u32 %v1628, 16
      %v1752 = vrot.slane %v1750, 4
      %v1753 = vshll.u32 %v1628, 16
      %v1755 = vrot.slane %v1753, 5
      %v1756 = vor.u32 %v1752, %v1755
      %v1757 = vrot.slane %v1756, 4
      %v1759 = vshll.u32 %v1629, 16
      %v1761 = vrot.slane %v1759, 5
      %v1762 = vsel %vm1652, %v1757, %v1761
      %v1763 = vshrl.u32 %v1629, 16
      %v1765 = vrot.slane %v1763, 4
      %v1766 = vor.u32 %v1765, %v1761
      %v1767 = vrot.slane %v1766, 4
      %v1769 = vshll.u32 %v1644, 16
      %v1771 = vrot.slane %v1769, 5
      %v1772 = vsel %vm1652, %v1767, %v1771
      %v1774 = vshrl.u32 %v1630, 16
      %v1776 = vrot.slane %v1774, 4
      %v1777 = vshll.u32 %v1630, 16
      %v1779 = vrot.slane %v1777, 5
      %v1780 = vor.u32 %v1776, %v1779
      %v1781 = vrot.slane %v1780, 4
      %v1783 = vshll.u32 %v1631, 16
      %v1785 = vrot.slane %v1783, 5
      %v1786 = vsel %vm1652, %v1781, %v1785
      %v1787 = vshrl.u32 %v1631, 16
      %v1789 = vrot.slane %v1787, 4
      %v1790 = vor.u32 %v1789, %v1785
      %v1791 = vrot.slane %v1790, 4
      %v1793 = vshll.u32 %v1645, 16
      %v1795 = vrot.slane %v1793, 5
      %v1796 = vsel %vm1652, %v1791, %v1795
      %v1798 = vshrl.u32 %v1632, 16
      %v1800 = vrot.slane %v1798, 4
      %v1801 = vshll.u32 %v1632, 16
      %v1803 = vrot.slane %v1801, 5
      %v1804 = vor.u32 %v1800, %v1803
      %v1805 = vrot.slane %v1804, 4
      %v1807 = vshll.u32 %v1633, 16
      %v1809 = vrot.slane %v1807, 5
      %v1810 = vsel %vm1652, %v1805, %v1809
      %v1811 = vshrl.u32 %v1633, 16
      %v1813 = vrot.slane %v1811, 4
      %v1814 = vor.u32 %v1813, %v1809
      %v1815 = vrot.slane %v1814, 4
      %v1817 = vshll.u32 %v1646, 16
      %v1819 = vrot.slane %v1817, 5
      %v1820 = vsel %vm1652, %v1815, %v1819
      %v1822 = vshrl.u32 %v1634, 16
      %v1824 = vrot.slane %v1822, 4
      %v1825 = vshll.u32 %v1634, 16
      %v1827 = vrot.slane %v1825, 5
      %v1828 = vor.u32 %v1824, %v1827
      %v1829 = vrot.slane %v1828, 4
      %v1831 = vshll.u32 %v1635, 16
      %v1833 = vrot.slane %v1831, 5
      %v1834 = vsel %vm1652, %v1829, %v1833
      %v1835 = vshrl.u32 %v1635, 16
      %v1837 = vrot.slane %v1835, 4
      %v1838 = vor.u32 %v1837, %v1833
      %v1839 = vrot.slane %v1838, 4
      %v1841 = vshll.u32 %v1647, 16
      %v1843 = vrot.slane %v1841, 5
      %v1844 = vsel %vm1652, %v1839, %v1843
      %v1846 = vshrl.u32 %v1636, 16
      %v1848 = vrot.slane %v1846, 4
      %v1849 = vshll.u32 %v1636, 16
      %v1851 = vrot.slane %v1849, 5
      %v1852 = vor.u32 %v1848, %v1851
      %v1853 = vrot.slane %v1852, 4
      %v1855 = vshll.u32 %v1637, 16
      %v1857 = vrot.slane %v1855, 5
      %v1858 = vsel %vm1652, %v1853, %v1857
      %v1859 = vshrl.u32 %v1637, 16
      %v1861 = vrot.slane %v1859, 4
      %v1862 = vor.u32 %v1861, %v1857
      %v1863 = vrot.slane %v1862, 4
      %v1865 = vshll.u32 %v1648, 16
      %v1867 = vrot.slane %v1865, 5
      %v1868 = vsel %vm1652, %v1863, %v1867
      %v1870 = vshrl.u32 %v1638, 16
      %v1872 = vrot.slane %v1870, 4
      %v1873 = vshll.u32 %v1638, 16
      %v1875 = vrot.slane %v1873, 5
      %v1876 = vor.u32 %v1872, %v1875
      %v1877 = vrot.slane %v1876, 4
      %v1879 = vshll.u32 %v1639, 16
      %v1881 = vrot.slane %v1879, 5
      %v1882 = vsel %vm1652, %v1877, %v1881
      %v1883 = vshrl.u32 %v1639, 16
      %v1885 = vrot.slane %v1883, 4
      %v1886 = vor.u32 %v1885, %v1881
      %v1887 = vrot.slane %v1886, 4
      %v1889 = vshll.u32 %v1649, 16
      %v1891 = vrot.slane %v1889, 5
      %v1892 = vsel %vm1652, %v1887, %v1891
      %v1893 = vld [vmem:[#allocation2] sm:$0xe]
      %v1894 = vld [vmem:[#allocation2 + $0xc] sm:$0xe]
      %v1895 = vld [vmem:[#allocation2 + $0x18] sm:$0xe]
      %v1896 = vld [vmem:[#allocation2 + $0x24] sm:$0xe]
      %v1897 = vld [vmem:[#allocation2 + $0x30] sm:$0xe]
      %v1898 = vld [vmem:[#allocation2 + $0x3c] sm:$0xe]
      %v1899 = vld [vmem:[#allocation2 + $0x48] sm:$0xe]
      %v1900 = vld [vmem:[#allocation2 + $0x54] sm:$0xe]
      %v1901 = vld [vmem:[#allocation2 + $0x60] sm:$0xe]
      %v1902 = vld [vmem:[#allocation2 + $0x6c] sm:$0xe]
      %vm1933 = vcmask 1042432
      %vm1934 = vcmask 1046532
      %vm1935 = vmor %vm1933, %vm1934
      %v1936 = vrot.slane %v1893, 5
      %v1937 = vrot.slane %v1936, 4
      %v1938 = vrot.slane %v1621, 5
      %v1939 = vsel %vm1935, %v1937, %v1938
      %v1940 = vrot.slane %v1938, 4
      %v1941 = vrot.slane %v1640, 5
      %v1942 = vsel %vm1935, %v1940, %v1941
      %v1943 = vrot.slane %v1894, 5
      %v1944 = vrot.slane %v1943, 4
      %v1945 = vrot.slane %v1623, 5
      %v1946 = vsel %vm1935, %v1944, %v1945
      %v1947 = vrot.slane %v1945, 4
      %v1948 = vrot.slane %v1641, 5
      %v1949 = vsel %vm1935, %v1947, %v1948
      %v1950 = vrot.slane %v1895, 5
      %v1951 = vrot.slane %v1950, 4
      %v1952 = vrot.slane %v1625, 5
      %v1953 = vsel %vm1935, %v1951, %v1952
      %v1954 = vrot.slane %v1952, 4
      %v1955 = vrot.slane %v1642, 5
      %v1956 = vsel %vm1935, %v1954, %v1955
      %v1957 = vrot.slane %v1896, 5
      %v1958 = vrot.slane %v1957, 4
      %v1959 = vrot.slane %v1627, 5
      %v1960 = vsel %vm1935, %v1958, %v1959
      %v1961 = vrot.slane %v1959, 4
      %v1962 = vrot.slane %v1643, 5
      %v1963 = vsel %vm1935, %v1961, %v1962
      %v1964 = vrot.slane %v1897, 5
      %v1965 = vrot.slane %v1964, 4
      %v1966 = vrot.slane %v1629, 5
      %v1967 = vsel %vm1935, %v1965, %v1966
      %v1968 = vrot.slane %v1966, 4
      %v1969 = vrot.slane %v1644, 5
      %v1970 = vsel %vm1935, %v1968, %v1969
      %v1971 = vrot.slane %v1898, 5
      %v1972 = vrot.slane %v1971, 4
      %v1973 = vrot.slane %v1631, 5
      %v1974 = vsel %vm1935, %v1972, %v1973
      %v1975 = vrot.slane %v1973, 4
      %v1976 = vrot.slane %v1645, 5
      %v1977 = vsel %vm1935, %v1975, %v1976
      %v1978 = vrot.slane %v1899, 5
      %v1979 = vrot.slane %v1978, 4
      %v1980 = vrot.slane %v1633, 5
      %v1981 = vsel %vm1935, %v1979, %v1980
      %v1982 = vrot.slane %v1980, 4
      %v1983 = vrot.slane %v1646, 5
      %v1984 = vsel %vm1935, %v1982, %v1983
      %v1985 = vrot.slane %v1900, 5
      %v1986 = vrot.slane %v1985, 4
      %v1987 = vrot.slane %v1635, 5
      %v1988 = vsel %vm1935, %v1986, %v1987
      %v1989 = vrot.slane %v1987, 4
      %v1990 = vrot.slane %v1647, 5
      %v1991 = vsel %vm1935, %v1989, %v1990
      %v1992 = vrot.slane %v1901, 5
      %v1993 = vrot.slane %v1992, 4
      %v1994 = vrot.slane %v1637, 5
      %v1995 = vsel %vm1935, %v1993, %v1994
      %v1996 = vrot.slane %v1994, 4
      %v1997 = vrot.slane %v1648, 5
      %v1998 = vsel %vm1935, %v1996, %v1997
      %v1999 = vrot.slane %v1902, 5
      %v2000 = vrot.slane %v1999, 4
      %v2001 = vrot.slane %v1639, 5
      %v2002 = vsel %vm1935, %v2000, %v2001
      %v2003 = vrot.slane %v2001, 4
      %v2004 = vrot.slane %v1649, 5
      %v2005 = vsel %vm1935, %v2003, %v2004
      %v2016 = vunpack.c.l.b16 %v1620
      %v2017 = vunpack.c.l.b16 %v1621
      %v2018 = vunpack.c.l.b16 %v1622
      %v2019 = vunpack.c.l.b16 %v1623
      %v2020 = vunpack.c.l.b16 %v1624
      %v2021 = vunpack.c.l.b16 %v1625
      %v2022 = vunpack.c.l.b16 %v1626
      %v2023 = vunpack.c.l.b16 %v1627
      %v2024 = vunpack.c.l.b16 %v1628
      %v2025 = vunpack.c.l.b16 %v1629
      %v2026 = vunpack.c.l.b16 %v1630
      %v2027 = vunpack.c.l.b16 %v1631
      %v2028 = vunpack.c.l.b16 %v1632
      %v2029 = vunpack.c.l.b16 %v1633
      %v2030 = vunpack.c.l.b16 %v1634
      %v2031 = vunpack.c.l.b16 %v1635
      %v2032 = vunpack.c.l.b16 %v1636
      %v2033 = vunpack.c.l.b16 %v1637
      %v2034 = vunpack.c.l.b16 %v1638
      %v2035 = vunpack.c.l.b16 %v1639
      %v2036 = vpack.c.b16 %v2017, %v2016
      %v2037 = vpack.c.b16 %v2019, %v2018
      %v2038 = vpack.c.b16 %v2021, %v2020
      %v2039 = vpack.c.b16 %v2023, %v2022
      %v2040 = vpack.c.b16 %v2025, %v2024
      %v2041 = vpack.c.b16 %v2027, %v2026
      %v2042 = vpack.c.b16 %v2029, %v2028
      %v2043 = vpack.c.b16 %v2031, %v2030
      %v2044 = vpack.c.b16 %v2033, %v2032
      %v2045 = vpack.c.b16 %v2035, %v2034
      %v2046 = vunpack.c.l.b16 %v1666
      %v2047 = vunpack.c.l.b16 %v1676
      %v2048 = vunpack.c.l.b16 %v1690
      %v2049 = vunpack.c.l.b16 %v1700
      %v2050 = vunpack.c.l.b16 %v1714
      %v2051 = vunpack.c.l.b16 %v1724
      %v2052 = vunpack.c.l.b16 %v1738
      %v2053 = vunpack.c.l.b16 %v1748
      %v2054 = vunpack.c.l.b16 %v1762
      %v2055 = vunpack.c.l.b16 %v1772
      %v2056 = vunpack.c.l.b16 %v1786
      %v2057 = vunpack.c.l.b16 %v1796
      %v2058 = vunpack.c.l.b16 %v1810
      %v2059 = vunpack.c.l.b16 %v1820
      %v2060 = vunpack.c.l.b16 %v1834
      %v2061 = vunpack.c.l.b16 %v1844
      %v2062 = vunpack.c.l.b16 %v1858
      %v2063 = vunpack.c.l.b16 %v1868
      %v2064 = vunpack.c.l.b16 %v1882
      %v2065 = vunpack.c.l.b16 %v1892
      %v2066 = vpack.c.b16 %v2047, %v2046
      %v2067 = vpack.c.b16 %v2049, %v2048
      %v2068 = vpack.c.b16 %v2051, %v2050
      %v2069 = vpack.c.b16 %v2053, %v2052
      %v2070 = vpack.c.b16 %v2055, %v2054
      %v2071 = vpack.c.b16 %v2057, %v2056
      %v2072 = vpack.c.b16 %v2059, %v2058
      %v2073 = vpack.c.b16 %v2061, %v2060
      %v2074 = vpack.c.b16 %v2063, %v2062
      %v2075 = vpack.c.b16 %v2065, %v2064
      %2076 = vrot.lane.b32.xlu0 %v2066, 8
      %v2077 = vpop.permute.xlu0 %2076
      %2078 = vrot.lane.b32.xlu0 %v2067, 8
      %v2079 = vpop.permute.xlu0 %2078
      %2080 = vrot.lane.b32.xlu0 %v2068, 8
      %v2081 = vpop.permute.xlu0 %2080
      %2082 = vrot.lane.b32.xlu0 %v2069, 8
      %v2083 = vpop.permute.xlu0 %2082
      %2084 = vrot.lane.b32.xlu0 %v2070, 8
      %v2085 = vpop.permute.xlu0 %2084
      %2086 = vrot.lane.b32.xlu0 %v2071, 8
      %v2087 = vpop.permute.xlu0 %2086
      %2088 = vrot.lane.b32.xlu0 %v2072, 8
      %v2089 = vpop.permute.xlu0 %2088
      %2090 = vrot.lane.b32.xlu0 %v2073, 8
      %v2091 = vpop.permute.xlu0 %2090
      %2092 = vrot.lane.b32.xlu0 %v2074, 8
      %v2093 = vpop.permute.xlu0 %2092
      %2094 = vrot.lane.b32.xlu0 %v2075, 8
      %v2095 = vpop.permute.xlu0 %2094
      %v2096 = vunpack.c.l.b16 %v1939
      %v2097 = vunpack.c.l.b16 %v1942
      %v2098 = vunpack.c.l.b16 %v1946
      %v2099 = vunpack.c.l.b16 %v1949
      %v2100 = vunpack.c.l.b16 %v1953
      %v2101 = vunpack.c.l.b16 %v1956
      %v2102 = vunpack.c.l.b16 %v1960
      %v2103 = vunpack.c.l.b16 %v1963
      %v2104 = vunpack.c.l.b16 %v1967
      %v2105 = vunpack.c.l.b16 %v1970
      %v2106 = vunpack.c.l.b16 %v1974
      %v2107 = vunpack.c.l.b16 %v1977
      %v2108 = vunpack.c.l.b16 %v1981
      %v2109 = vunpack.c.l.b16 %v1984
      %v2110 = vunpack.c.l.b16 %v1988
      %v2111 = vunpack.c.l.b16 %v1991
      %v2112 = vunpack.c.l.b16 %v1995
      %v2113 = vunpack.c.l.b16 %v1998
      %v2114 = vunpack.c.l.b16 %v2002
      %v2115 = vunpack.c.l.b16 %v2005
      %v2116 = vpack.c.b16 %v2097, %v2096
      %v2117 = vpack.c.b16 %v2099, %v2098
      %v2118 = vpack.c.b16 %v2101, %v2100
      %v2119 = vpack.c.b16 %v2103, %v2102
      %v2120 = vpack.c.b16 %v2105, %v2104
      %v2121 = vpack.c.b16 %v2107, %v2106
      %v2122 = vpack.c.b16 %v2109, %v2108
      %v2123 = vpack.c.b16 %v2111, %v2110
      %v2124 = vpack.c.b16 %v2113, %v2112
      %v2125 = vpack.c.b16 %v2115, %v2114
      %2126 = vrot.lane.b32.xlu0 %v2116, 16
      %v2127 = vpop.permute.xlu0 %2126
      %2128 = vrot.lane.b32.xlu0 %v2117, 16
      %v2129 = vpop.permute.xlu0 %2128
      %2130 = vrot.lane.b32.xlu0 %v2118, 16
      %v2131 = vpop.permute.xlu0 %2130
      %2132 = vrot.lane.b32.xlu0 %v2119, 16
      %v2133 = vpop.permute.xlu0 %2132
      %2134 = vrot.lane.b32.xlu0 %v2120, 16
      %v2135 = vpop.permute.xlu0 %2134
      %2136 = vrot.lane.b32.xlu0 %v2121, 16
      %v2137 = vpop.permute.xlu0 %2136
      %2138 = vrot.lane.b32.xlu0 %v2122, 16
      %v2139 = vpop.permute.xlu0 %2138
      %2140 = vrot.lane.b32.xlu0 %v2123, 16
      %v2141 = vpop.permute.xlu0 %2140
      %2142 = vrot.lane.b32.xlu0 %v2124, 16
      %v2143 = vpop.permute.xlu0 %2142
      %2144 = vrot.lane.b32.xlu0 %v2125, 16
      %v2145 = vpop.permute.xlu0 %2144
      %vm2146 = vcmask 64512
      %v2149 = vsel %vm2146, %v2036, %v2077
      %v2152 = vsel %vm2146, %v2037, %v2079
      %v2155 = vsel %vm2146, %v2038, %v2081
      %v2158 = vsel %vm2146, %v2039, %v2083
      %v2161 = vsel %vm2146, %v2040, %v2085
      %v2164 = vsel %vm2146, %v2041, %v2087
      %v2167 = vsel %vm2146, %v2042, %v2089
      %v2170 = vsel %vm2146, %v2043, %v2091
      %v2173 = vsel %vm2146, %v2044, %v2093
      %v2176 = vsel %vm2146, %v2045, %v2095
      %vm2177 = vcmask 130048
      %v2179 = vsel %vm2177, %v2149, %v2127
      %v2181 = vsel %vm2177, %v2152, %v2129
      %v2183 = vsel %vm2177, %v2155, %v2131
      %v2185 = vsel %vm2177, %v2158, %v2133
      %v2187 = vsel %vm2177, %v2161, %v2135
      %v2189 = vsel %vm2177, %v2164, %v2137
      %v2191 = vsel %vm2177, %v2167, %v2139
      %v2193 = vsel %vm2177, %v2170, %v2141
      %v2195 = vsel %vm2177, %v2173, %v2143
      %v2197 = vsel %vm2177, %v2176, %v2145
      %v2198 = vld [vmem:[%s6] sm:$0xf]
      %v2199 = vld [vmem:[%s6 + $0x4] sm:$0xf]
      %v2200 = vld [vmem:[%s6 + $0x8] sm:$0xf]
      %v2204 = vunpack.c.l.b16 %v2198
      %v2205 = vunpack.c.l.b16 %v2199
      %v2206 = vunpack.c.l.b16 %v2200
      %v2207 = vpack.c.b16 %v2205, %v2204
      %v2208 = vpack.c.b16 %v2206, %v2206
      %vm2210 = vcmask 195584
      %v2211 = vsel %vm2210, %v2179, 0
      %v2213 = vsel %vm2210, %v2181, 0
      %v2215 = vsel %vm2210, %v2183, 0
      %v2217 = vsel %vm2210, %v2185, 0
      %v2219 = vsel %vm2210, %v2187, 0
      %v2221 = vsel %vm2210, %v2189, 0
      %v2223 = vsel %vm2210, %v2191, 0
      %v2225 = vsel %vm2210, %v2193, 0
      %v2227 = vsel %vm2210, %v2195, 0
      %v2229 = vsel %vm2210, %v2197, 0
      %vm2231 = vcmask 1043456
      %v2233 = vsel %vm2231, %v2208, 0
      %2235 = vmatprep.subr.bf16.mxu0 0
      %2236 = vmatpush1.bf16.msra.mxu0 %v2207
      %2237 = vmatprep.subr.bf16.mxu0 0
      %2238 = vmatpush1.bf16.msra.mxu0 %v2233
      %2239 = vmatprep.subr.bf16.mxu0 0
      %2240 = vmatpush1.bf16.msra.mxu0 0
      %2241 = vmatprep.subr.bf16.mxu0 0
      %2242 = vmatpush1.bf16.msra.mxu0 0
      %2243 = vmatprep.subr.bf16.mxu0 0
      %2244 = vmatpush1.bf16.msra.mxu0 0
      %2245 = vmatprep.subr.bf16.mxu0 0
      %2246 = vmatpush1.bf16.msra.mxu0 0
      %2247 = vmatprep.subr.bf16.mxu0 0
      %2248 = vmatpush1.bf16.msra.mxu0 0
      %2249 = vmatprep.subr.bf16.mxu0 0
      %2250 = vmatpush1.bf16.msra.mxu0 0
      %2251 = vmatprep.subr.bf16.mxu0 0
      %2252 = vmatpush1.bf16.msra.mxu0 0
      %2253 = vmatprep.subr.bf16.mxu0 0
      %2254 = vmatpush1.bf16.msra.mxu0 0
      %2255 = vmatprep.subr.bf16.mxu0 0
      %2256 = vmatpush1.bf16.msra.mxu0 0
      %2257 = vmatprep.subr.bf16.mxu0 0
      %2258 = vmatpush1.bf16.msra.mxu0 0
      %2259 = vmatprep.subr.bf16.mxu0 0
      %2260 = vmatpush1.bf16.msra.mxu0 0
      %2261 = vmatprep.subr.bf16.mxu0 0
      %2262 = vmatpush1.bf16.msra.mxu0 0
      %2263 = vmatprep.subr.bf16.mxu0 0
      %2264 = vmatpush1.bf16.msra.mxu0 0
      %2265 = vmatprep.subr.bf16.mxu0 0
      %2266 = vmatpush1.bf16.msra.mxu0 0
      %2267 = vmatprep.mubr.bf16.mxu0 0
      %2268 = vmatmul.mubr.bf16.gmra.mrb[0].mxu0 %v2211
      %v2269 = vpop.f32.mrb[0].mxu0
      %v2270 = vadd.f32 0.0, %v2269
      %v2271 = vpop.f32.mrb[0].mxu0
      %v2272 = vpop.f32.mrb[0].mxu0
      %v2273 = vadd.f32 0.0, %v2272
      %v2274 = vpop.f32.mrb[0].mxu0
      %2275 = vmatprep.mubr.bf16.mxu0 0
      %2276 = vmatmul.mubr.bf16.gmra.mrb[0].mxu0 %v2213
      %v2277 = vpop.f32.mrb[0].mxu0
      %v2278 = vadd.f32 0.0, %v2277
      %v2279 = vpop.f32.mrb[0].mxu0
      %v2280 = vpop.f32.mrb[0].mxu0
      %v2281 = vadd.f32 0.0, %v2280
      %v2282 = vpop.f32.mrb[0].mxu0
      %2283 = vmatprep.mubr.bf16.mxu0 0
      %2284 = vmatmul.mubr.bf16.gmra.mrb[0].mxu0 %v2215
      %v2285 = vpop.f32.mrb[0].mxu0
      %v2286 = vadd.f32 0.0, %v2285
      %v2287 = vpop.f32.mrb[0].mxu0
      %v2288 = vpop.f32.mrb[0].mxu0
      %v2289 = vadd.f32 0.0, %v2288
      %v2290 = vpop.f32.mrb[0].mxu0
      %2291 = vmatprep.mubr.bf16.mxu0 0
      %2292 = vmatmul.mubr.bf16.gmra.mrb[0].mxu0 %v2217
      %v2293 = vpop.f32.mrb[0].mxu0
      %v2294 = vadd.f32 0.0, %v2293
      %v2295 = vpop.f32.mrb[0].mxu0
      %v2296 = vpop.f32.mrb[0].mxu0
      %v2297 = vadd.f32 0.0, %v2296
      %v2298 = vpop.f32.mrb[0].mxu0
      %2299 = vmatprep.mubr.bf16.mxu0 0
      %2300 = vmatmul.mubr.bf16.gmra.mrb[0].mxu0 %v2219
      %v2301 = vpop.f32.mrb[0].mxu0
      %v2302 = vadd.f32 0.0, %v2301
      %v2303 = vpop.f32.mrb[0].mxu0
      %v2304 = vpop.f32.mrb[0].mxu0
      %v2305 = vadd.f32 0.0, %v2304
      %v2306 = vpop.f32.mrb[0].mxu0
      %2307 = vmatprep.mubr.bf16.mxu0 0
      %2308 = vmatmul.mubr.bf16.gmra.mrb[0].mxu0 %v2221
      %v2309 = vpop.f32.mrb[0].mxu0
      %v2310 = vadd.f32 0.0, %v2309
      %v2311 = vpop.f32.mrb[0].mxu0
      %v2312 = vpop.f32.mrb[0].mxu0
      %v2313 = vadd.f32 0.0, %v2312
      %v2314 = vpop.f32.mrb[0].mxu0
      %2315 = vmatprep.mubr.bf16.mxu0 0
      %2316 = vmatmul.mubr.bf16.gmra.mrb[0].mxu0 %v2223
      %v2317 = vpop.f32.mrb[0].mxu0
      %v2318 = vadd.f32 0.0, %v2317
      %v2319 = vpop.f32.mrb[0].mxu0
      %v2320 = vpop.f32.mrb[0].mxu0
      %v2321 = vadd.f32 0.0, %v2320
      %v2322 = vpop.f32.mrb[0].mxu0
      %2323 = vmatprep.mubr.bf16.mxu0 0
      %2324 = vmatmul.mubr.bf16.gmra.mrb[0].mxu0 %v2225
      %v2325 = vpop.f32.mrb[0].mxu0
      %v2326 = vadd.f32 0.0, %v2325
      %v2327 = vpop.f32.mrb[0].mxu0
      %v2328 = vpop.f32.mrb[0].mxu0
      %v2329 = vadd.f32 0.0, %v2328
      %v2330 = vpop.f32.mrb[0].mxu0
      %2331 = vmatprep.mubr.bf16.mxu0 0
      %2332 = vmatmul.mubr.bf16.gmra.mrb[0].mxu0 %v2227
      %v2333 = vpop.f32.mrb[0].mxu0
      %v2334 = vadd.f32 0.0, %v2333
      %v2335 = vpop.f32.mrb[0].mxu0
      %v2336 = vpop.f32.mrb[0].mxu0
      %v2337 = vadd.f32 0.0, %v2336
      %v2338 = vpop.f32.mrb[0].mxu0
      %2339 = vmatprep.mubr.bf16.mxu0 0
      %2340 = vmatmul.mubr.bf16.gmra.mrb[0].mxu0 %v2229
      %v2341 = vpop.f32.mrb[0].mxu0
      %v2342 = vadd.f32 0.0, %v2341
      %v2343 = vpop.f32.mrb[0].mxu0
      %v2344 = vpop.f32.mrb[0].mxu0
      %v2345 = vadd.f32 0.0, %v2344
      %v2346 = vpop.f32.mrb[0].mxu0
      %2347 = vdwg.mxu0
      %2348 = vst.msk [vmem:[#allocation4] sm:$0xff] %vm2146, %v2270
      %2349 = vst.msk [vmem:[#allocation4 + $0x8] sm:$0xff] %vm2146, %v2273
      %2350 = vst.msk [vmem:[#allocation4 + $0x10] sm:$0xff] %vm2146, %v2278
      %2351 = vst.msk [vmem:[#allocation4 + $0x18] sm:$0xff] %vm2146, %v2281
      %2352 = vst.msk [vmem:[#allocation4 + $0x20] sm:$0xff] %vm2146, %v2286
      %2353 = vst.msk [vmem:[#allocation4 + $0x28] sm:$0xff] %vm2146, %v2289
      %2354 = vst.msk [vmem:[#allocation4 + $0x30] sm:$0xff] %vm2146, %v2294
      %2355 = vst.msk [vmem:[#allocation4 + $0x38] sm:$0xff] %vm2146, %v2297
      %2356 = vst.msk [vmem:[#allocation4 + $0x40] sm:$0xff] %vm2146, %v2302
      %2357 = vst.msk [vmem:[#allocation4 + $0x48] sm:$0xff] %vm2146, %v2305
      %2358 = vst.msk [vmem:[#allocation4 + $0x50] sm:$0xff] %vm2146, %v2310
      %2359 = vst.msk [vmem:[#allocation4 + $0x58] sm:$0xff] %vm2146, %v2313
      %2360 = vst.msk [vmem:[#allocation4 + $0x60] sm:$0xff] %vm2146, %v2318
      %2361 = vst.msk [vmem:[#allocation4 + $0x68] sm:$0xff] %vm2146, %v2321
      %2362 = vst.msk [vmem:[#allocation4 + $0x70] sm:$0xff] %vm2146, %v2326
      %2363 = vst.msk [vmem:[#allocation4 + $0x78] sm:$0xff] %vm2146, %v2329
      %2364 = vst.msk [vmem:[#allocation4 + $0x80] sm:$0xff] %vm2146, %v2334
      %2365 = vst.msk [vmem:[#allocation4 + $0x88] sm:$0xff] %vm2146, %v2337
      %2366 = vst.msk [vmem:[#allocation4 + $0x90] sm:$0xff] %vm2146, %v2342
      %2367 = vst.msk [vmem:[#allocation4 + $0x98] sm:$0xff] %vm2146, %v2345
      %s2368 = scalar_lea.vmem [#allocation2], 12
      %v2369 = vld [vmem:[%s2368] sm:$0xf]
      %v2370 = vld [vmem:[%s2368 + $0x4] sm:$0xf]
      %v2371 = vld [vmem:[%s2368 + $0xc] sm:$0xf]
      %v2372 = vld [vmem:[%s2368 + $0x10] sm:$0xf]
      %v2373 = vld [vmem:[%s2368 + $0x18] sm:$0xf]
      %v2374 = vld [vmem:[%s2368 + $0x1c] sm:$0xf]
      %v2375 = vld [vmem:[%s2368 + $0x24] sm:$0xf]
      %v2376 = vld [vmem:[%s2368 + $0x28] sm:$0xf]
      %v2377 = vld [vmem:[%s2368 + $0x30] sm:$0xf]
      %v2378 = vld [vmem:[%s2368 + $0x34] sm:$0xf]
      %v2379 = vld [vmem:[%s2368 + $0x3c] sm:$0xf]
      %v2380 = vld [vmem:[%s2368 + $0x40] sm:$0xf]
      %v2381 = vld [vmem:[%s2368 + $0x48] sm:$0xf]
      %v2382 = vld [vmem:[%s2368 + $0x4c] sm:$0xf]
      %v2383 = vld [vmem:[%s2368 + $0x54] sm:$0xf]
      %v2384 = vld [vmem:[%s2368 + $0x58] sm:$0xf]
      %v2385 = vld [vmem:[%s2368 + $0x60] sm:$0xf]
      %v2386 = vld [vmem:[%s2368 + $0x64] sm:$0xf]
      %v2387 = vld [vmem:[%s2368 + $0x6c] sm:$0xf]
      %v2388 = vld [vmem:[%s2368 + $0x70] sm:$0xf]
      %v2389 = vld [vmem:[%s2368 + $0x8] sm:$0x1]
      %v2390 = vld [vmem:[%s2368 + $0x14] sm:$0x1]
      %v2391 = vld [vmem:[%s2368 + $0x20] sm:$0x1]
      %v2392 = vld [vmem:[%s2368 + $0x2c] sm:$0x1]
      %v2393 = vld [vmem:[%s2368 + $0x38] sm:$0x1]
      %v2394 = vld [vmem:[%s2368 + $0x44] sm:$0x1]
      %v2395 = vld [vmem:[%s2368 + $0x50] sm:$0x1]
      %v2396 = vld [vmem:[%s2368 + $0x5c] sm:$0x1]
      %v2397 = vld [vmem:[%s2368 + $0x68] sm:$0x1]
      %v2398 = vld [vmem:[%s2368 + $0x74] sm:$0x1]
      %v2400 = vshrl.u32 %v2369, 16
      %v2402 = vrot.slane %v2400, 4
      %v2403 = vshll.u32 %v2369, 16
      %v2405 = vrot.slane %v2403, 5
      %v2406 = vor.u32 %v2402, %v2405
      %v2407 = vrot.slane %v2406, 4
      %v2409 = vshll.u32 %v2370, 16
      %v2411 = vrot.slane %v2409, 5
      %v2412 = vsel %vm1652, %v2407, %v2411
      %v2413 = vshrl.u32 %v2370, 16
      %v2415 = vrot.slane %v2413, 4
      %v2416 = vor.u32 %v2415, %v2411
      %v2417 = vrot.slane %v2416, 4
      %v2419 = vshll.u32 %v2389, 16
      %v2421 = vrot.slane %v2419, 5
      %v2422 = vsel %vm1652, %v2417, %v2421
      %v2424 = vshrl.u32 %v2371, 16
      %v2426 = vrot.slane %v2424, 4
      %v2427 = vshll.u32 %v2371, 16
      %v2429 = vrot.slane %v2427, 5
      %v2430 = vor.u32 %v2426, %v2429
      %v2431 = vrot.slane %v2430, 4
      %v2433 = vshll.u32 %v2372, 16
      %v2435 = vrot.slane %v2433, 5
      %v2436 = vsel %vm1652, %v2431, %v2435
      %v2437 = vshrl.u32 %v2372, 16
      %v2439 = vrot.slane %v2437, 4
      %v2440 = vor.u32 %v2439, %v2435
      %v2441 = vrot.slane %v2440, 4
      %v2443 = vshll.u32 %v2390, 16
      %v2445 = vrot.slane %v2443, 5
      %v2446 = vsel %vm1652, %v2441, %v2445
      %v2448 = vshrl.u32 %v2373, 16
      %v2450 = vrot.slane %v2448, 4
      %v2451 = vshll.u32 %v2373, 16
      %v2453 = vrot.slane %v2451, 5
      %v2454 = vor.u32 %v2450, %v2453
      %v2455 = vrot.slane %v2454, 4
      %v2457 = vshll.u32 %v2374, 16
      %v2459 = vrot.slane %v2457, 5
      %v2460 = vsel %vm1652, %v2455, %v2459
      %v2461 = vshrl.u32 %v2374, 16
      %v2463 = vrot.slane %v2461, 4
      %v2464 = vor.u32 %v2463, %v2459
      %v2465 = vrot.slane %v2464, 4
      %v2467 = vshll.u32 %v2391, 16
      %v2469 = vrot.slane %v2467, 5
      %v2470 = vsel %vm1652, %v2465, %v2469
      %v2472 = vshrl.u32 %v2375, 16
      %v2474 = vrot.slane %v2472, 4
      %v2475 = vshll.u32 %v2375, 16
      %v2477 = vrot.slane %v2475, 5
      %v2478 = vor.u32 %v2474, %v2477
      %v2479 = vrot.slane %v2478, 4
      %v2481 = vshll.u32 %v2376, 16
      %v2483 = vrot.slane %v2481, 5
      %v2484 = vsel %vm1652, %v2479, %v2483
      %v2485 = vshrl.u32 %v2376, 16
      %v2487 = vrot.slane %v2485, 4
      %v2488 = vor.u32 %v2487, %v2483
      %v2489 = vrot.slane %v2488, 4
      %v2491 = vshll.u32 %v2392, 16
      %v2493 = vrot.slane %v2491, 5
      %v2494 = vsel %vm1652, %v2489, %v2493
      %v2496 = vshrl.u32 %v2377, 16
      %v2498 = vrot.slane %v2496, 4
      %v2499 = vshll.u32 %v2377, 16
      %v2501 = vrot.slane %v2499, 5
      %v2502 = vor.u32 %v2498, %v2501
      %v2503 = vrot.slane %v2502, 4
      %v2505 = vshll.u32 %v2378, 16
      %v2507 = vrot.slane %v2505, 5
      %v2508 = vsel %vm1652, %v2503, %v2507
      %v2509 = vshrl.u32 %v2378, 16
      %v2511 = vrot.slane %v2509, 4
      %v2512 = vor.u32 %v2511, %v2507
      %v2513 = vrot.slane %v2512, 4
      %v2515 = vshll.u32 %v2393, 16
      %v2517 = vrot.slane %v2515, 5
      %v2518 = vsel %vm1652, %v2513, %v2517
      %v2520 = vshrl.u32 %v2379, 16
      %v2522 = vrot.slane %v2520, 4
      %v2523 = vshll.u32 %v2379, 16
      %v2525 = vrot.slane %v2523, 5
      %v2526 = vor.u32 %v2522, %v2525
      %v2527 = vrot.slane %v2526, 4
      %v2529 = vshll.u32 %v2380, 16
      %v2531 = vrot.slane %v2529, 5
      %v2532 = vsel %vm1652, %v2527, %v2531
      %v2533 = vshrl.u32 %v2380, 16
      %v2535 = vrot.slane %v2533, 4
      %v2536 = vor.u32 %v2535, %v2531
      %v2537 = vrot.slane %v2536, 4
      %v2539 = vshll.u32 %v2394, 16
      %v2541 = vrot.slane %v2539, 5
      %v2542 = vsel %vm1652, %v2537, %v2541
      %v2544 = vshrl.u32 %v2381, 16
      %v2546 = vrot.slane %v2544, 4
      %v2547 = vshll.u32 %v2381, 16
      %v2549 = vrot.slane %v2547, 5
      %v2550 = vor.u32 %v2546, %v2549
      %v2551 = vrot.slane %v2550, 4
      %v2553 = vshll.u32 %v2382, 16
      %v2555 = vrot.slane %v2553, 5
      %v2556 = vsel %vm1652, %v2551, %v2555
      %v2557 = vshrl.u32 %v2382, 16
      %v2559 = vrot.slane %v2557, 4
      %v2560 = vor.u32 %v2559, %v2555
      %v2561 = vrot.slane %v2560, 4
      %v2563 = vshll.u32 %v2395, 16
      %v2565 = vrot.slane %v2563, 5
      %v2566 = vsel %vm1652, %v2561, %v2565
      %v2568 = vshrl.u32 %v2383, 16
      %v2570 = vrot.slane %v2568, 4
      %v2571 = vshll.u32 %v2383, 16
      %v2573 = vrot.slane %v2571, 5
      %v2574 = vor.u32 %v2570, %v2573
      %v2575 = vrot.slane %v2574, 4
      %v2577 = vshll.u32 %v2384, 16
      %v2579 = vrot.slane %v2577, 5
      %v2580 = vsel %vm1652, %v2575, %v2579
      %v2581 = vshrl.u32 %v2384, 16
      %v2583 = vrot.slane %v2581, 4
      %v2584 = vor.u32 %v2583, %v2579
      %v2585 = vrot.slane %v2584, 4
      %v2587 = vshll.u32 %v2396, 16
      %v2589 = vrot.slane %v2587, 5
      %v2590 = vsel %vm1652, %v2585, %v2589
      %v2592 = vshrl.u32 %v2385, 16
      %v2594 = vrot.slane %v2592, 4
      %v2595 = vshll.u32 %v2385, 16
      %v2597 = vrot.slane %v2595, 5
      %v2598 = vor.u32 %v2594, %v2597
      %v2599 = vrot.slane %v2598, 4
      %v2601 = vshll.u32 %v2386, 16
      %v2603 = vrot.slane %v2601, 5
      %v2604 = vsel %vm1652, %v2599, %v2603
      %v2605 = vshrl.u32 %v2386, 16
      %v2607 = vrot.slane %v2605, 4
      %v2608 = vor.u32 %v2607, %v2603
      %v2609 = vrot.slane %v2608, 4
      %v2611 = vshll.u32 %v2397, 16
      %v2613 = vrot.slane %v2611, 5
      %v2614 = vsel %vm1652, %v2609, %v2613
      %v2616 = vshrl.u32 %v2387, 16
      %v2618 = vrot.slane %v2616, 4
      %v2619 = vshll.u32 %v2387, 16
      %v2621 = vrot.slane %v2619, 5
      %v2622 = vor.u32 %v2618, %v2621
      %v2623 = vrot.slane %v2622, 4
      %v2625 = vshll.u32 %v2388, 16
      %v2627 = vrot.slane %v2625, 5
      %v2628 = vsel %vm1652, %v2623, %v2627
      %v2629 = vshrl.u32 %v2388, 16
      %v2631 = vrot.slane %v2629, 4
      %v2632 = vor.u32 %v2631, %v2627
      %v2633 = vrot.slane %v2632, 4
      %v2635 = vshll.u32 %v2398, 16
      %v2637 = vrot.slane %v2635, 5
      %v2638 = vsel %vm1652, %v2633, %v2637
      %v2639 = vld [vmem:[%s2368] sm:$0xe]
      %v2640 = vld [vmem:[%s2368 + $0xc] sm:$0xe]
      %v2641 = vld [vmem:[%s2368 + $0x18] sm:$0xe]
      %v2642 = vld [vmem:[%s2368 + $0x24] sm:$0xe]
      %v2643 = vld [vmem:[%s2368 + $0x30] sm:$0xe]
      %v2644 = vld [vmem:[%s2368 + $0x3c] sm:$0xe]
      %v2645 = vld [vmem:[%s2368 + $0x48] sm:$0xe]
      %v2646 = vld [vmem:[%s2368 + $0x54] sm:$0xe]
      %v2647 = vld [vmem:[%s2368 + $0x60] sm:$0xe]
      %v2648 = vld [vmem:[%s2368 + $0x6c] sm:$0xe]
      %v2679 = vrot.slane %v2639, 5
      %v2680 = vrot.slane %v2679, 4
      %v2681 = vrot.slane %v2370, 5
      %v2682 = vsel %vm1935, %v2680, %v2681
      %v2683 = vrot.slane %v2681, 4
      %v2684 = vrot.slane %v2389, 5
      %v2685 = vsel %vm1935, %v2683, %v2684
      %v2686 = vrot.slane %v2640, 5
      %v2687 = vrot.slane %v2686, 4
      %v2688 = vrot.slane %v2372, 5
      %v2689 = vsel %vm1935, %v2687, %v2688
      %v2690 = vrot.slane %v2688, 4
      %v2691 = vrot.slane %v2390, 5
      %v2692 = vsel %vm1935, %v2690, %v2691
      %v2693 = vrot.slane %v2641, 5
      %v2694 = vrot.slane %v2693, 4
      %v2695 = vrot.slane %v2374, 5
      %v2696 = vsel %vm1935, %v2694, %v2695
      %v2697 = vrot.slane %v2695, 4
      %v2698 = vrot.slane %v2391, 5
      %v2699 = vsel %vm1935, %v2697, %v2698
      %v2700 = vrot.slane %v2642, 5
      %v2701 = vrot.slane %v2700, 4
      %v2702 = vrot.slane %v2376, 5
      %v2703 = vsel %vm1935, %v2701, %v2702
      %v2704 = vrot.slane %v2702, 4
      %v2705 = vrot.slane %v2392, 5
      %v2706 = vsel %vm1935, %v2704, %v2705
      %v2707 = vrot.slane %v2643, 5
      %v2708 = vrot.slane %v2707, 4
      %v2709 = vrot.slane %v2378, 5
      %v2710 = vsel %vm1935, %v2708, %v2709
      %v2711 = vrot.slane %v2709, 4
      %v2712 = vrot.slane %v2393, 5
      %v2713 = vsel %vm1935, %v2711, %v2712
      %v2714 = vrot.slane %v2644, 5
      %v2715 = vrot.slane %v2714, 4
      %v2716 = vrot.slane %v2380, 5
      %v2717 = vsel %vm1935, %v2715, %v2716
      %v2718 = vrot.slane %v2716, 4
      %v2719 = vrot.slane %v2394, 5
      %v2720 = vsel %vm1935, %v2718, %v2719
      %v2721 = vrot.slane %v2645, 5
      %v2722 = vrot.slane %v2721, 4
      %v2723 = vrot.slane %v2382, 5
      %v2724 = vsel %vm1935, %v2722, %v2723
      %v2725 = vrot.slane %v2723, 4
      %v2726 = vrot.slane %v2395, 5
      %v2727 = vsel %vm1935, %v2725, %v2726
      %v2728 = vrot.slane %v2646, 5
      %v2729 = vrot.slane %v2728, 4
      %v2730 = vrot.slane %v2384, 5
      %v2731 = vsel %vm1935, %v2729, %v2730
      %v2732 = vrot.slane %v2730, 4
      %v2733 = vrot.slane %v2396, 5
      %v2734 = vsel %vm1935, %v2732, %v2733
      %v2735 = vrot.slane %v2647, 5
      %v2736 = vrot.slane %v2735, 4
      %v2737 = vrot.slane %v2386, 5
      %v2738 = vsel %vm1935, %v2736, %v2737
      %v2739 = vrot.slane %v2737, 4
      %v2740 = vrot.slane %v2397, 5
      %v2741 = vsel %vm1935, %v2739, %v2740
      %v2742 = vrot.slane %v2648, 5
      %v2743 = vrot.slane %v2742, 4
      %v2744 = vrot.slane %v2388, 5
      %v2745 = vsel %vm1935, %v2743, %v2744
      %v2746 = vrot.slane %v2744, 4
      %v2747 = vrot.slane %v2398, 5
      %v2748 = vsel %vm1935, %v2746, %v2747
      %v2759 = vunpack.c.l.b16 %v2369
      %v2760 = vunpack.c.l.b16 %v2370
      %v2761 = vunpack.c.l.b16 %v2371
      %v2762 = vunpack.c.l.b16 %v2372
      %v2763 = vunpack.c.l.b16 %v2373
      %v2764 = vunpack.c.l.b16 %v2374
      %v2765 = vunpack.c.l.b16 %v2375
      %v2766 = vunpack.c.l.b16 %v2376
      %v2767 = vunpack.c.l.b16 %v2377
      %v2768 = vunpack.c.l.b16 %v2378
      %v2769 = vunpack.c.l.b16 %v2379
      %v2770 = vunpack.c.l.b16 %v2380
      %v2771 = vunpack.c.l.b16 %v2381
      %v2772 = vunpack.c.l.b16 %v2382
      %v2773 = vunpack.c.l.b16 %v2383
      %v2774 = vunpack.c.l.b16 %v2384
      %v2775 = vunpack.c.l.b16 %v2385
      %v2776 = vunpack.c.l.b16 %v2386
      %v2777 = vunpack.c.l.b16 %v2387
      %v2778 = vunpack.c.l.b16 %v2388
      %v2779 = vpack.c.b16 %v2760, %v2759
      %v2780 = vpack.c.b16 %v2762, %v2761
      %v2781 = vpack.c.b16 %v2764, %v2763
      %v2782 = vpack.c.b16 %v2766, %v2765
      %v2783 = vpack.c.b16 %v2768, %v2767
      %v2784 = vpack.c.b16 %v2770, %v2769
      %v2785 = vpack.c.b16 %v2772, %v2771
      %v2786 = vpack.c.b16 %v2774, %v2773
      %v2787 = vpack.c.b16 %v2776, %v2775
      %v2788 = vpack.c.b16 %v2778, %v2777
      %v2789 = vunpack.c.l.b16 %v2412
      %v2790 = vunpack.c.l.b16 %v2422
      %v2791 = vunpack.c.l.b16 %v2436
      %v2792 = vunpack.c.l.b16 %v2446
      %v2793 = vunpack.c.l.b16 %v2460
      %v2794 = vunpack.c.l.b16 %v2470
      %v2795 = vunpack.c.l.b16 %v2484
      %v2796 = vunpack.c.l.b16 %v2494
      %v2797 = vunpack.c.l.b16 %v2508
      %v2798 = vunpack.c.l.b16 %v2518
      %v2799 = vunpack.c.l.b16 %v2532
      %v2800 = vunpack.c.l.b16 %v2542
      %v2801 = vunpack.c.l.b16 %v2556
      %v2802 = vunpack.c.l.b16 %v2566
      %v2803 = vunpack.c.l.b16 %v2580
      %v2804 = vunpack.c.l.b16 %v2590
      %v2805 = vunpack.c.l.b16 %v2604
      %v2806 = vunpack.c.l.b16 %v2614
      %v2807 = vunpack.c.l.b16 %v2628
      %v2808 = vunpack.c.l.b16 %v2638
      %v2809 = vpack.c.b16 %v2790, %v2789
      %v2810 = vpack.c.b16 %v2792, %v2791
      %v2811 = vpack.c.b16 %v2794, %v2793
      %v2812 = vpack.c.b16 %v2796, %v2795
      %v2813 = vpack.c.b16 %v2798, %v2797
      %v2814 = vpack.c.b16 %v2800, %v2799
      %v2815 = vpack.c.b16 %v2802, %v2801
      %v2816 = vpack.c.b16 %v2804, %v2803
      %v2817 = vpack.c.b16 %v2806, %v2805
      %v2818 = vpack.c.b16 %v2808, %v2807
      %2819 = vrot.lane.b32.xlu0 %v2809, 8
      %v2820 = vpop.permute.xlu0 %2819
      %2821 = vrot.lane.b32.xlu0 %v2810, 8
      %v2822 = vpop.permute.xlu0 %2821
      %2823 = vrot.lane.b32.xlu0 %v2811, 8
      %v2824 = vpop.permute.xlu0 %2823
      %2825 = vrot.lane.b32.xlu0 %v2812, 8
      %v2826 = vpop.permute.xlu0 %2825
      %2827 = vrot.lane.b32.xlu0 %v2813, 8
      %v2828 = vpop.permute.xlu0 %2827
      %2829 = vrot.lane.b32.xlu0 %v2814, 8
      %v2830 = vpop.permute.xlu0 %2829
      %2831 = vrot.lane.b32.xlu0 %v2815, 8
      %v2832 = vpop.permute.xlu0 %2831
      %2833 = vrot.lane.b32.xlu0 %v2816, 8
      %v2834 = vpop.permute.xlu0 %2833
      %2835 = vrot.lane.b32.xlu0 %v2817, 8
      %v2836 = vpop.permute.xlu0 %2835
      %2837 = vrot.lane.b32.xlu0 %v2818, 8
      %v2838 = vpop.permute.xlu0 %2837
      %v2839 = vunpack.c.l.b16 %v2682
      %v2840 = vunpack.c.l.b16 %v2685
      %v2841 = vunpack.c.l.b16 %v2689
      %v2842 = vunpack.c.l.b16 %v2692
      %v2843 = vunpack.c.l.b16 %v2696
      %v2844 = vunpack.c.l.b16 %v2699
      %v2845 = vunpack.c.l.b16 %v2703
      %v2846 = vunpack.c.l.b16 %v2706
      %v2847 = vunpack.c.l.b16 %v2710
      %v2848 = vunpack.c.l.b16 %v2713
      %v2849 = vunpack.c.l.b16 %v2717
      %v2850 = vunpack.c.l.b16 %v2720
      %v2851 = vunpack.c.l.b16 %v2724
      %v2852 = vunpack.c.l.b16 %v2727
      %v2853 = vunpack.c.l.b16 %v2731
      %v2854 = vunpack.c.l.b16 %v2734
      %v2855 = vunpack.c.l.b16 %v2738
      %v2856 = vunpack.c.l.b16 %v2741
      %v2857 = vunpack.c.l.b16 %v2745
      %v2858 = vunpack.c.l.b16 %v2748
      %v2859 = vpack.c.b16 %v2840, %v2839
      %v2860 = vpack.c.b16 %v2842, %v2841
      %v2861 = vpack.c.b16 %v2844, %v2843
      %v2862 = vpack.c.b16 %v2846, %v2845
      %v2863 = vpack.c.b16 %v2848, %v2847
      %v2864 = vpack.c.b16 %v2850, %v2849
      %v2865 = vpack.c.b16 %v2852, %v2851
      %v2866 = vpack.c.b16 %v2854, %v2853
      %v2867 = vpack.c.b16 %v2856, %v2855
      %v2868 = vpack.c.b16 %v2858, %v2857
      %2869 = vrot.lane.b32.xlu0 %v2859, 16
      %v2870 = vpop.permute.xlu0 %2869
      %2871 = vrot.lane.b32.xlu0 %v2860, 16
      %v2872 = vpop.permute.xlu0 %2871
      %2873 = vrot.lane.b32.xlu0 %v2861, 16
      %v2874 = vpop.permute.xlu0 %2873
      %2875 = vrot.lane.b32.xlu0 %v2862, 16
      %v2876 = vpop.permute.xlu0 %2875
      %2877 = vrot.lane.b32.xlu0 %v2863, 16
      %v2878 = vpop.permute.xlu0 %2877
      %2879 = vrot.lane.b32.xlu0 %v2864, 16
      %v2880 = vpop.permute.xlu0 %2879
      %2881 = vrot.lane.b32.xlu0 %v2865, 16
      %v2882 = vpop.permute.xlu0 %2881
      %2883 = vrot.lane.b32.xlu0 %v2866, 16
      %v2884 = vpop.permute.xlu0 %2883
      %2885 = vrot.lane.b32.xlu0 %v2867, 16
      %v2886 = vpop.permute.xlu0 %2885
      %2887 = vrot.lane.b32.xlu0 %v2868, 16
      %v2888 = vpop.permute.xlu0 %2887
      %v2891 = vsel %vm2146, %v2779, %v2820
      %v2894 = vsel %vm2146, %v2780, %v2822
      %v2897 = vsel %vm2146, %v2781, %v2824
      %v2900 = vsel %vm2146, %v2782, %v2826
      %v2903 = vsel %vm2146, %v2783, %v2828
      %v2906 = vsel %vm2146, %v2784, %v2830
      %v2909 = vsel %vm2146, %v2785, %v2832
      %v2912 = vsel %vm2146, %v2786, %v2834
      %v2915 = vsel %vm2146, %v2787, %v2836
      %v2918 = vsel %vm2146, %v2788, %v2838
      %v2920 = vsel %vm2177, %v2891, %v2870
      %v2922 = vsel %vm2177, %v2894, %v2872
      %v2924 = vsel %vm2177, %v2897, %v2874
      %v2926 = vsel %vm2177, %v2900, %v2876
      %v2928 = vsel %vm2177, %v2903, %v2878
      %v2930 = vsel %vm2177, %v2906, %v2880
      %v2932 = vsel %vm2177, %v2909, %v2882
      %v2934 = vsel %vm2177, %v2912, %v2884
      %v2936 = vsel %vm2177, %v2915, %v2886
      %v2938 = vsel %vm2177, %v2918, %v2888
      %s2939 = scalar_lea.vmem %s6, 12
      %v2940 = vld [vmem:[%s2939] sm:$0xf]
      %v2941 = vld [vmem:[%s2939 + $0x4] sm:$0xf]
      %v2942 = vld [vmem:[%s2939 + $0x8] sm:$0xf]
      %v2946 = vunpack.c.l.b16 %v2940
      %v2947 = vunpack.c.l.b16 %v2941
      %v2948 = vunpack.c.l.b16 %v2942
      %v2949 = vpack.c.b16 %v2947, %v2946
      %v2950 = vpack.c.b16 %v2948, %v2948
      %v2952 = vsel %vm2210, %v2920, 0
      %v2954 = vsel %vm2210, %v2922, 0
      %v2956 = vsel %vm2210, %v2924, 0
      %v2958 = vsel %vm2210, %v2926, 0
      %v2960 = vsel %vm2210, %v2928, 0
      %v2962 = vsel %vm2210, %v2930, 0
      %v2964 = vsel %vm2210, %v2932, 0
      %v2966 = vsel %vm2210, %v2934, 0
      %v2968 = vsel %vm2210, %v2936, 0
      %v2970 = vsel %vm2210, %v2938, 0
      %v2973 = vsel %vm2231, %v2950, 0
      %2975 = vmatprep.subr.bf16.mxu0 0
      %2976 = vmatpush1.bf16.msra.mxu0 %v2949
      %2977 = vmatprep.subr.bf16.mxu0 0
      %2978 = vmatpush1.bf16.msra.mxu0 %v2973
      %2979 = vmatprep.subr.bf16.mxu0 0
      %2980 = vmatpush1.bf16.msra.mxu0 0
      %2981 = vmatprep.subr.bf16.mxu0 0
      %2982 = vmatpush1.bf16.msra.mxu0 0
      %2983 = vmatprep.subr.bf16.mxu0 0
      %2984 = vmatpush1.bf16.msra.mxu0 0
      %2985 = vmatprep.subr.bf16.mxu0 0
      %2986 = vmatpush1.bf16.msra.mxu0 0
      %2987 = vmatprep.subr.bf16.mxu0 0
      %2988 = vmatpush1.bf16.msra.mxu0 0
      %2989 = vmatprep.subr.bf16.mxu0 0
      %2990 = vmatpush1.bf16.msra.mxu0 0
      %2991 = vmatprep.subr.bf16.mxu0 0
      %2992 = vmatpush1.bf16.msra.mxu0 0
      %2993 = vmatprep.subr.bf16.mxu0 0
      %2994 = vmatpush1.bf16.msra.mxu0 0
      %2995 = vmatprep.subr.bf16.mxu0 0
      %2996 = vmatpush1.bf16.msra.mxu0 0
      %2997 = vmatprep.subr.bf16.mxu0 0
      %2998 = vmatpush1.bf16.msra.mxu0 0
      %2999 = vmatprep.subr.bf16.mxu0 0
      %3000 = vmatpush1.bf16.msra.mxu0 0
      %3001 = vmatprep.subr.bf16.mxu0 0
      %3002 = vmatpush1.bf16.msra.mxu0 0
      %3003 = vmatprep.subr.bf16.mxu0 0
      %3004 = vmatpush1.bf16.msra.mxu0 0
      %3005 = vmatprep.subr.bf16.mxu0 0
      %3006 = vmatpush1.bf16.msra.mxu0 0
      %3007 = vmatprep.mubr.bf16.mxu0 0
      %3008 = vmatmul.mubr.bf16.gmra.mrb[0].mxu0 %v2952
      %v3009 = vpop.f32.mrb[0].mxu0
      %v3010 = vadd.f32 0.0, %v3009
      %v3011 = vpop.f32.mrb[0].mxu0
      %v3012 = vpop.f32.mrb[0].mxu0
      %v3013 = vadd.f32 0.0, %v3012
      %v3014 = vpop.f32.mrb[0].mxu0
      %3015 = vmatprep.mubr.bf16.mxu0 0
      %3016 = vmatmul.mubr.bf16.gmra.mrb[0].mxu0 %v2954
      %v3017 = vpop.f32.mrb[0].mxu0
      %v3018 = vadd.f32 0.0, %v3017
      %v3019 = vpop.f32.mrb[0].mxu0
      %v3020 = vpop.f32.mrb[0].mxu0
      %v3021 = vadd.f32 0.0, %v3020
      %v3022 = vpop.f32.mrb[0].mxu0
      %3023 = vmatprep.mubr.bf16.mxu0 0
      %3024 = vmatmul.mubr.bf16.gmra.mrb[0].mxu0 %v2956
      %v3025 = vpop.f32.mrb[0].mxu0
      %v3026 = vadd.f32 0.0, %v3025
      %v3027 = vpop.f32.mrb[0].mxu0
      %v3028 = vpop.f32.mrb[0].mxu0
      %v3029 = vadd.f32 0.0, %v3028
      %v3030 = vpop.f32.mrb[0].mxu0
      %3031 = vmatprep.mubr.bf16.mxu0 0
      %3032 = vmatmul.mubr.bf16.gmra.mrb[0].mxu0 %v2958
      %v3033 = vpop.f32.mrb[0].mxu0
      %v3034 = vadd.f32 0.0, %v3033
      %v3035 = vpop.f32.mrb[0].mxu0
      %v3036 = vpop.f32.mrb[0].mxu0
      %v3037 = vadd.f32 0.0, %v3036
      %v3038 = vpop.f32.mrb[0].mxu0
      %3039 = vmatprep.mubr.bf16.mxu0 0
      %3040 = vmatmul.mubr.bf16.gmra.mrb[0].mxu0 %v2960
      %v3041 = vpop.f32.mrb[0].mxu0
      %v3042 = vadd.f32 0.0, %v3041
      %v3043 = vpop.f32.mrb[0].mxu0
      %v3044 = vpop.f32.mrb[0].mxu0
      %v3045 = vadd.f32 0.0, %v3044
      %v3046 = vpop.f32.mrb[0].mxu0
      %3047 = vmatprep.mubr.bf16.mxu0 0
      %3048 = vmatmul.mubr.bf16.gmra.mrb[0].mxu0 %v2962
      %v3049 = vpop.f32.mrb[0].mxu0
      %v3050 = vadd.f32 0.0, %v3049
      %v3051 = vpop.f32.mrb[0].mxu0
      %v3052 = vpop.f32.mrb[0].mxu0
      %v3053 = vadd.f32 0.0, %v3052
      %v3054 = vpop.f32.mrb[0].mxu0
      %3055 = vmatprep.mubr.bf16.mxu0 0
      %3056 = vmatmul.mubr.bf16.gmra.mrb[0].mxu0 %v2964
      %v3057 = vpop.f32.mrb[0].mxu0
      %v3058 = vadd.f32 0.0, %v3057
      %v3059 = vpop.f32.mrb[0].mxu0
      %v3060 = vpop.f32.mrb[0].mxu0
      %v3061 = vadd.f32 0.0, %v3060
      %v3062 = vpop.f32.mrb[0].mxu0
      %3063 = vmatprep.mubr.bf16.mxu0 0
      %3064 = vmatmul.mubr.bf16.gmra.mrb[0].mxu0 %v2966
      %v3065 = vpop.f32.mrb[0].mxu0
      %v3066 = vadd.f32 0.0, %v3065
      %v3067 = vpop.f32.mrb[0].mxu0
      %v3068 = vpop.f32.mrb[0].mxu0
      %v3069 = vadd.f32 0.0, %v3068
      %v3070 = vpop.f32.mrb[0].mxu0
      %3071 = vmatprep.mubr.bf16.mxu0 0
      %3072 = vmatmul.mubr.bf16.gmra.mrb[0].mxu0 %v2968
      %v3073 = vpop.f32.mrb[0].mxu0
      %v3074 = vadd.f32 0.0, %v3073
      %v3075 = vpop.f32.mrb[0].mxu0
      %v3076 = vpop.f32.mrb[0].mxu0
      %v3077 = vadd.f32 0.0, %v3076
      %v3078 = vpop.f32.mrb[0].mxu0
      %3079 = vmatprep.mubr.bf16.mxu0 0
      %3080 = vmatmul.mubr.bf16.gmra.mrb[0].mxu0 %v2970
      %v3081 = vpop.f32.mrb[0].mxu0
      %v3082 = vadd.f32 0.0, %v3081
      %v3083 = vpop.f32.mrb[0].mxu0
      %v3084 = vpop.f32.mrb[0].mxu0
      %v3085 = vadd.f32 0.0, %v3084
      %v3086 = vpop.f32.mrb[0].mxu0
      %3087 = vdwg.mxu0
      %v3088 = vld [vmem:[#allocation4] sm:$0xff]
      %v3089 = vld [vmem:[#allocation4 + $0x8] sm:$0xff]
      %v3090 = vld [vmem:[#allocation4 + $0x10] sm:$0xff]
      %v3091 = vld [vmem:[#allocation4 + $0x18] sm:$0xff]
      %v3092 = vld [vmem:[#allocation4 + $0x20] sm:$0xff]
      %v3093 = vld [vmem:[#allocation4 + $0x28] sm:$0xff]
      %v3094 = vld [vmem:[#allocation4 + $0x30] sm:$0xff]
      %v3095 = vld [vmem:[#allocation4 + $0x38] sm:$0xff]
      %v3096 = vld [vmem:[#allocation4 + $0x40] sm:$0xff]
      %v3097 = vld [vmem:[#allocation4 + $0x48] sm:$0xff]
      %v3098 = vld [vmem:[#allocation4 + $0x50] sm:$0xff]
      %v3099 = vld [vmem:[#allocation4 + $0x58] sm:$0xff]
      %v3100 = vld [vmem:[#allocation4 + $0x60] sm:$0xff]
      %v3101 = vld [vmem:[#allocation4 + $0x68] sm:$0xff]
      %v3102 = vld [vmem:[#allocation4 + $0x70] sm:$0xff]
      %v3103 = vld [vmem:[#allocation4 + $0x78] sm:$0xff]
      %v3104 = vld [vmem:[#allocation4 + $0x80] sm:$0xff]
      %v3105 = vld [vmem:[#allocation4 + $0x88] sm:$0xff]
      %v3106 = vld [vmem:[#allocation4 + $0x90] sm:$0xff]
      %v3107 = vld [vmem:[#allocation4 + $0x98] sm:$0xff]
      %v3108 = vadd.f32 %v3088, %v3010
      %v3109 = vadd.f32 %v3089, %v3013
      %v3110 = vadd.f32 %v3090, %v3018
      %v3111 = vadd.f32 %v3091, %v3021
      %v3112 = vadd.f32 %v3092, %v3026
      %v3113 = vadd.f32 %v3093, %v3029
      %v3114 = vadd.f32 %v3094, %v3034
      %v3115 = vadd.f32 %v3095, %v3037
      %v3116 = vadd.f32 %v3096, %v3042
      %v3117 = vadd.f32 %v3097, %v3045
      %v3118 = vadd.f32 %v3098, %v3050
      %v3119 = vadd.f32 %v3099, %v3053
      %v3120 = vadd.f32 %v3100, %v3058
      %v3121 = vadd.f32 %v3101, %v3061
      %v3122 = vadd.f32 %v3102, %v3066
      %v3123 = vadd.f32 %v3103, %v3069
      %v3124 = vadd.f32 %v3104, %v3074
      %v3125 = vadd.f32 %v3105, %v3077
      %v3126 = vadd.f32 %v3106, %v3082
      %v3127 = vadd.f32 %v3107, %v3085
      %3128 = vst.msk [vmem:[#allocation4] sm:$0xff] %vm2146, %v3108
      %3129 = vst.msk [vmem:[#allocation4 + $0x8] sm:$0xff] %vm2146, %v3109
      %3130 = vst.msk [vmem:[#allocation4 + $0x10] sm:$0xff] %vm2146, %v3110
      %3131 = vst.msk [vmem:[#allocation4 + $0x18] sm:$0xff] %vm2146, %v3111
      %3132 = vst.msk [vmem:[#allocation4 + $0x20] sm:$0xff] %vm2146, %v3112
      %3133 = vst.msk [vmem:[#allocation4 + $0x28] sm:$0xff] %vm2146, %v3113
      %3134 = vst.msk [vmem:[#allocation4 + $0x30] sm:$0xff] %vm2146, %v3114
      %3135 = vst.msk [vmem:[#allocation4 + $0x38] sm:$0xff] %vm2146, %v3115
      %3136 = vst.msk [vmem:[#allocation4 + $0x40] sm:$0xff] %vm2146, %v3116
      %3137 = vst.msk [vmem:[#allocation4 + $0x48] sm:$0xff] %vm2146, %v3117
      %3138 = vst.msk [vmem:[#allocation4 + $0x50] sm:$0xff] %vm2146, %v3118
      %3139 = vst.msk [vmem:[#allocation4 + $0x58] sm:$0xff] %vm2146, %v3119
      %3140 = vst.msk [vmem:[#allocation4 + $0x60] sm:$0xff] %vm2146, %v3120
      %3141 = vst.msk [vmem:[#allocation4 + $0x68] sm:$0xff] %vm2146, %v3121
      %3142 = vst.msk [vmem:[#allocation4 + $0x70] sm:$0xff] %vm2146, %v3122
      %3143 = vst.msk [vmem:[#allocation4 + $0x78] sm:$0xff] %vm2146, %v3123
      %3144 = vst.msk [vmem:[#allocation4 + $0x80] sm:$0xff] %vm2146, %v3124
      %3145 = vst.msk [vmem:[#allocation4 + $0x88] sm:$0xff] %vm2146, %v3125
      %3146 = vst.msk [vmem:[#allocation4 + $0x90] sm:$0xff] %vm2146, %v3126
      %3147 = vst.msk [vmem:[#allocation4 + $0x98] sm:$0xff] %vm2146, %v3127
      %v3148 = vld [vmem:[%s965] sm:$0xf]
      %v3149 = vld [vmem:[%s965 + $0x4] sm:$0xf]
      %v3150 = vld [vmem:[%s965 + $0xc] sm:$0xf]
      %v3151 = vld [vmem:[%s965 + $0x10] sm:$0xf]
      %v3152 = vld [vmem:[%s965 + $0x18] sm:$0xf]
      %v3153 = vld [vmem:[%s965 + $0x1c] sm:$0xf]
      %v3154 = vld [vmem:[%s965 + $0x24] sm:$0xf]
      %v3155 = vld [vmem:[%s965 + $0x28] sm:$0xf]
      %v3156 = vld [vmem:[%s965 + $0x30] sm:$0xf]
      %v3157 = vld [vmem:[%s965 + $0x34] sm:$0xf]
      %v3158 = vld [vmem:[%s965 + $0x3c] sm:$0xf]
      %v3159 = vld [vmem:[%s965 + $0x40] sm:$0xf]
      %v3160 = vld [vmem:[%s965 + $0x48] sm:$0xf]
      %v3161 = vld [vmem:[%s965 + $0x4c] sm:$0xf]
      %v3162 = vld [vmem:[%s965 + $0x54] sm:$0xf]
      %v3163 = vld [vmem:[%s965 + $0x58] sm:$0xf]
      %v3164 = vld [vmem:[%s965 + $0x60] sm:$0xf]
      %v3165 = vld [vmem:[%s965 + $0x64] sm:$0xf]
      %v3166 = vld [vmem:[%s965 + $0x6c] sm:$0xf]
      %v3167 = vld [vmem:[%s965 + $0x70] sm:$0xf]
      %v3168 = vld [vmem:[%s965 + $0x8] sm:$0x1]
      %v3169 = vld [vmem:[%s965 + $0x14] sm:$0x1]
      %v3170 = vld [vmem:[%s965 + $0x20] sm:$0x1]
      %v3171 = vld [vmem:[%s965 + $0x2c] sm:$0x1]
      %v3172 = vld [vmem:[%s965 + $0x38] sm:$0x1]
      %v3173 = vld [vmem:[%s965 + $0x44] sm:$0x1]
      %v3174 = vld [vmem:[%s965 + $0x50] sm:$0x1]
      %v3175 = vld [vmem:[%s965 + $0x5c] sm:$0x1]
      %v3176 = vld [vmem:[%s965 + $0x68] sm:$0x1]
      %v3177 = vld [vmem:[%s965 + $0x74] sm:$0x1]
      %v3179 = vshrl.u32 %v3148, 16
      %v3181 = vrot.slane %v3179, 4
      %v3182 = vshll.u32 %v3148, 16
      %v3184 = vrot.slane %v3182, 5
      %v3185 = vor.u32 %v3181, %v3184
      %v3186 = vrot.slane %v3185, 4
      %v3188 = vshll.u32 %v3149, 16
      %v3190 = vrot.slane %v3188, 5
      %v3191 = vsel %vm1652, %v3186, %v3190
      %v3192 = vshrl.u32 %v3149, 16
      %v3194 = vrot.slane %v3192, 4
      %v3195 = vor.u32 %v3194, %v3190
      %v3196 = vrot.slane %v3195, 4
      %v3198 = vshll.u32 %v3168, 16
      %v3200 = vrot.slane %v3198, 5
      %v3201 = vsel %vm1652, %v3196, %v3200
      %v3203 = vshrl.u32 %v3150, 16
      %v3205 = vrot.slane %v3203, 4
      %v3206 = vshll.u32 %v3150, 16
      %v3208 = vrot.slane %v3206, 5
      %v3209 = vor.u32 %v3205, %v3208
      %v3210 = vrot.slane %v3209, 4
      %v3212 = vshll.u32 %v3151, 16
      %v3214 = vrot.slane %v3212, 5
      %v3215 = vsel %vm1652, %v3210, %v3214
      %v3216 = vshrl.u32 %v3151, 16
      %v3218 = vrot.slane %v3216, 4
      %v3219 = vor.u32 %v3218, %v3214
      %v3220 = vrot.slane %v3219, 4
      %v3222 = vshll.u32 %v3169, 16
      %v3224 = vrot.slane %v3222, 5
      %v3225 = vsel %vm1652, %v3220, %v3224
      %v3227 = vshrl.u32 %v3152, 16
      %v3229 = vrot.slane %v3227, 4
      %v3230 = vshll.u32 %v3152, 16
      %v3232 = vrot.slane %v3230, 5
      %v3233 = vor.u32 %v3229, %v3232
      %v3234 = vrot.slane %v3233, 4
      %v3236 = vshll.u32 %v3153, 16
      %v3238 = vrot.slane %v3236, 5
      %v3239 = vsel %vm1652, %v3234, %v3238
      %v3240 = vshrl.u32 %v3153, 16
      %v3242 = vrot.slane %v3240, 4
      %v3243 = vor.u32 %v3242, %v3238
      %v3244 = vrot.slane %v3243, 4
      %v3246 = vshll.u32 %v3170, 16
      %v3248 = vrot.slane %v3246, 5
      %v3249 = vsel %vm1652, %v3244, %v3248
      %v3251 = vshrl.u32 %v3154, 16
      %v3253 = vrot.slane %v3251, 4
      %v3254 = vshll.u32 %v3154, 16
      %v3256 = vrot.slane %v3254, 5
      %v3257 = vor.u32 %v3253, %v3256
      %v3258 = vrot.slane %v3257, 4
      %v3260 = vshll.u32 %v3155, 16
      %v3262 = vrot.slane %v3260, 5
      %v3263 = vsel %vm1652, %v3258, %v3262
      %v3264 = vshrl.u32 %v3155, 16
      %v3266 = vrot.slane %v3264, 4
      %v3267 = vor.u32 %v3266, %v3262
      %v3268 = vrot.slane %v3267, 4
      %v3270 = vshll.u32 %v3171, 16
      %v3272 = vrot.slane %v3270, 5
      %v3273 = vsel %vm1652, %v3268, %v3272
      %v3275 = vshrl.u32 %v3156, 16
      %v3277 = vrot.slane %v3275, 4
      %v3278 = vshll.u32 %v3156, 16
      %v3280 = vrot.slane %v3278, 5
      %v3281 = vor.u32 %v3277, %v3280
      %v3282 = vrot.slane %v3281, 4
      %v3284 = vshll.u32 %v3157, 16
      %v3286 = vrot.slane %v3284, 5
      %v3287 = vsel %vm1652, %v3282, %v3286
      %v3288 = vshrl.u32 %v3157, 16
      %v3290 = vrot.slane %v3288, 4
      %v3291 = vor.u32 %v3290, %v3286
      %v3292 = vrot.slane %v3291, 4
      %v3294 = vshll.u32 %v3172, 16
      %v3296 = vrot.slane %v3294, 5
      %v3297 = vsel %vm1652, %v3292, %v3296
      %v3299 = vshrl.u32 %v3158, 16
      %v3301 = vrot.slane %v3299, 4
      %v3302 = vshll.u32 %v3158, 16
      %v3304 = vrot.slane %v3302, 5
      %v3305 = vor.u32 %v3301, %v3304
      %v3306 = vrot.slane %v3305, 4
      %v3308 = vshll.u32 %v3159, 16
      %v3310 = vrot.slane %v3308, 5
      %v3311 = vsel %vm1652, %v3306, %v3310
      %v3312 = vshrl.u32 %v3159, 16
      %v3314 = vrot.slane %v3312, 4
      %v3315 = vor.u32 %v3314, %v3310
      %v3316 = vrot.slane %v3315, 4
      %v3318 = vshll.u32 %v3173, 16
      %v3320 = vrot.slane %v3318, 5
      %v3321 = vsel %vm1652, %v3316, %v3320
      %v3323 = vshrl.u32 %v3160, 16
      %v3325 = vrot.slane %v3323, 4
      %v3326 = vshll.u32 %v3160, 16
      %v3328 = vrot.slane %v3326, 5
      %v3329 = vor.u32 %v3325, %v3328
      %v3330 = vrot.slane %v3329, 4
      %v3332 = vshll.u32 %v3161, 16
      %v3334 = vrot.slane %v3332, 5
      %v3335 = vsel %vm1652, %v3330, %v3334
      %v3336 = vshrl.u32 %v3161, 16
      %v3338 = vrot.slane %v3336, 4
      %v3339 = vor.u32 %v3338, %v3334
      %v3340 = vrot.slane %v3339, 4
      %v3342 = vshll.u32 %v3174, 16
      %v3344 = vrot.slane %v3342, 5
      %v3345 = vsel %vm1652, %v3340, %v3344
      %v3347 = vshrl.u32 %v3162, 16
      %v3349 = vrot.slane %v3347, 4
      %v3350 = vshll.u32 %v3162, 16
      %v3352 = vrot.slane %v3350, 5
      %v3353 = vor.u32 %v3349, %v3352
      %v3354 = vrot.slane %v3353, 4
      %v3356 = vshll.u32 %v3163, 16
      %v3358 = vrot.slane %v3356, 5
      %v3359 = vsel %vm1652, %v3354, %v3358
      %v3360 = vshrl.u32 %v3163, 16
      %v3362 = vrot.slane %v3360, 4
      %v3363 = vor.u32 %v3362, %v3358
      %v3364 = vrot.slane %v3363, 4
      %v3366 = vshll.u32 %v3175, 16
      %v3368 = vrot.slane %v3366, 5
      %v3369 = vsel %vm1652, %v3364, %v3368
      %v3371 = vshrl.u32 %v3164, 16
      %v3373 = vrot.slane %v3371, 4
      %v3374 = vshll.u32 %v3164, 16
      %v3376 = vrot.slane %v3374, 5
      %v3377 = vor.u32 %v3373, %v3376
      %v3378 = vrot.slane %v3377, 4
      %v3380 = vshll.u32 %v3165, 16
      %v3382 = vrot.slane %v3380, 5
      %v3383 = vsel %vm1652, %v3378, %v3382
      %v3384 = vshrl.u32 %v3165, 16
      %v3386 = vrot.slane %v3384, 4
      %v3387 = vor.u32 %v3386, %v3382
      %v3388 = vrot.slane %v3387, 4
      %v3390 = vshll.u32 %v3176, 16
      %v3392 = vrot.slane %v3390, 5
      %v3393 = vsel %vm1652, %v3388, %v3392
      %v3395 = vshrl.u32 %v3166, 16
      %v3397 = vrot.slane %v3395, 4
      %v3398 = vshll.u32 %v3166, 16
      %v3400 = vrot.slane %v3398, 5
      %v3401 = vor.u32 %v3397, %v3400
      %v3402 = vrot.slane %v3401, 4
      %v3404 = vshll.u32 %v3167, 16
      %v3406 = vrot.slane %v3404, 5
      %v3407 = vsel %vm1652, %v3402, %v3406
      %v3408 = vshrl.u32 %v3167, 16
      %v3410 = vrot.slane %v3408, 4
      %v3411 = vor.u32 %v3410, %v3406
      %v3412 = vrot.slane %v3411, 4
      %v3414 = vshll.u32 %v3177, 16
      %v3416 = vrot.slane %v3414, 5
      %v3417 = vsel %vm1652, %v3412, %v3416
      %v3418 = vld [vmem:[%s965] sm:$0xe]
      %v3419 = vld [vmem:[%s965 + $0xc] sm:$0xe]
      %v3420 = vld [vmem:[%s965 + $0x18] sm:$0xe]
      %v3421 = vld [vmem:[%s965 + $0x24] sm:$0xe]
      %v3422 = vld [vmem:[%s965 + $0x30] sm:$0xe]
      %v3423 = vld [vmem:[%s965 + $0x3c] sm:$0xe]
      %v3424 = vld [vmem:[%s965 + $0x48] sm:$0xe]
      %v3425 = vld [vmem:[%s965 + $0x54] sm:$0xe]
      %v3426 = vld [vmem:[%s965 + $0x60] sm:$0xe]
      %v3427 = vld [vmem:[%s965 + $0x6c] sm:$0xe]
      %v3458 = vrot.slane %v3418, 5
      %v3459 = vrot.slane %v3458, 4
      %v3460 = vrot.slane %v3149, 5
      %v3461 = vsel %vm1935, %v3459, %v3460
      %v3462 = vrot.slane %v3460, 4
      %v3463 = vrot.slane %v3168, 5
      %v3464 = vsel %vm1935, %v3462, %v3463
      %v3465 = vrot.slane %v3419, 5
      %v3466 = vrot.slane %v3465, 4
      %v3467 = vrot.slane %v3151, 5
      %v3468 = vsel %vm1935, %v3466, %v3467
      %v3469 = vrot.slane %v3467, 4
      %v3470 = vrot.slane %v3169, 5
      %v3471 = vsel %vm1935, %v3469, %v3470
      %v3472 = vrot.slane %v3420, 5
      %v3473 = vrot.slane %v3472, 4
      %v3474 = vrot.slane %v3153, 5
      %v3475 = vsel %vm1935, %v3473, %v3474
      %v3476 = vrot.slane %v3474, 4
      %v3477 = vrot.slane %v3170, 5
      %v3478 = vsel %vm1935, %v3476, %v3477
      %v3479 = vrot.slane %v3421, 5
      %v3480 = vrot.slane %v3479, 4
      %v3481 = vrot.slane %v3155, 5
      %v3482 = vsel %vm1935, %v3480, %v3481
      %v3483 = vrot.slane %v3481, 4
      %v3484 = vrot.slane %v3171, 5
      %v3485 = vsel %vm1935, %v3483, %v3484
      %v3486 = vrot.slane %v3422, 5
      %v3487 = vrot.slane %v3486, 4
      %v3488 = vrot.slane %v3157, 5
      %v3489 = vsel %vm1935, %v3487, %v3488
      %v3490 = vrot.slane %v3488, 4
      %v3491 = vrot.slane %v3172, 5
      %v3492 = vsel %vm1935, %v3490, %v3491
      %v3493 = vrot.slane %v3423, 5
      %v3494 = vrot.slane %v3493, 4
      %v3495 = vrot.slane %v3159, 5
      %v3496 = vsel %vm1935, %v3494, %v3495
      %v3497 = vrot.slane %v3495, 4
      %v3498 = vrot.slane %v3173, 5
      %v3499 = vsel %vm1935, %v3497, %v3498
      %v3500 = vrot.slane %v3424, 5
      %v3501 = vrot.slane %v3500, 4
      %v3502 = vrot.slane %v3161, 5
      %v3503 = vsel %vm1935, %v3501, %v3502
      %v3504 = vrot.slane %v3502, 4
      %v3505 = vrot.slane %v3174, 5
      %v3506 = vsel %vm1935, %v3504, %v3505
      %v3507 = vrot.slane %v3425, 5
      %v3508 = vrot.slane %v3507, 4
      %v3509 = vrot.slane %v3163, 5
      %v3510 = vsel %vm1935, %v3508, %v3509
      %v3511 = vrot.slane %v3509, 4
      %v3512 = vrot.slane %v3175, 5
      %v3513 = vsel %vm1935, %v3511, %v3512
      %v3514 = vrot.slane %v3426, 5
      %v3515 = vrot.slane %v3514, 4
      %v3516 = vrot.slane %v3165, 5
      %v3517 = vsel %vm1935, %v3515, %v3516
      %v3518 = vrot.slane %v3516, 4
      %v3519 = vrot.slane %v3176, 5
      %v3520 = vsel %vm1935, %v3518, %v3519
      %v3521 = vrot.slane %v3427, 5
      %v3522 = vrot.slane %v3521, 4
      %v3523 = vrot.slane %v3167, 5
      %v3524 = vsel %vm1935, %v3522, %v3523
      %v3525 = vrot.slane %v3523, 4
      %v3526 = vrot.slane %v3177, 5
      %v3527 = vsel %vm1935, %v3525, %v3526
      %v3538 = vunpack.c.l.b16 %v3148
      %v3539 = vunpack.c.l.b16 %v3149
      %v3540 = vunpack.c.l.b16 %v3150
      %v3541 = vunpack.c.l.b16 %v3151
      %v3542 = vunpack.c.l.b16 %v3152
      %v3543 = vunpack.c.l.b16 %v3153
      %v3544 = vunpack.c.l.b16 %v3154
      %v3545 = vunpack.c.l.b16 %v3155
      %v3546 = vunpack.c.l.b16 %v3156
      %v3547 = vunpack.c.l.b16 %v3157
      %v3548 = vunpack.c.l.b16 %v3158
      %v3549 = vunpack.c.l.b16 %v3159
      %v3550 = vunpack.c.l.b16 %v3160
      %v3551 = vunpack.c.l.b16 %v3161
      %v3552 = vunpack.c.l.b16 %v3162
      %v3553 = vunpack.c.l.b16 %v3163
      %v3554 = vunpack.c.l.b16 %v3164
      %v3555 = vunpack.c.l.b16 %v3165
      %v3556 = vunpack.c.l.b16 %v3166
      %v3557 = vunpack.c.l.b16 %v3167
      %v3558 = vpack.c.b16 %v3539, %v3538
      %v3559 = vpack.c.b16 %v3541, %v3540
      %v3560 = vpack.c.b16 %v3543, %v3542
      %v3561 = vpack.c.b16 %v3545, %v3544
      %v3562 = vpack.c.b16 %v3547, %v3546
      %v3563 = vpack.c.b16 %v3549, %v3548
      %v3564 = vpack.c.b16 %v3551, %v3550
      %v3565 = vpack.c.b16 %v3553, %v3552
      %v3566 = vpack.c.b16 %v3555, %v3554
      %v3567 = vpack.c.b16 %v3557, %v3556
      %v3568 = vunpack.c.l.b16 %v3191
      %v3569 = vunpack.c.l.b16 %v3201
      %v3570 = vunpack.c.l.b16 %v3215
      %v3571 = vunpack.c.l.b16 %v3225
      %v3572 = vunpack.c.l.b16 %v3239
      %v3573 = vunpack.c.l.b16 %v3249
      %v3574 = vunpack.c.l.b16 %v3263
      %v3575 = vunpack.c.l.b16 %v3273
      %v3576 = vunpack.c.l.b16 %v3287
      %v3577 = vunpack.c.l.b16 %v3297
      %v3578 = vunpack.c.l.b16 %v3311
      %v3579 = vunpack.c.l.b16 %v3321
      %v3580 = vunpack.c.l.b16 %v3335
      %v3581 = vunpack.c.l.b16 %v3345
      %v3582 = vunpack.c.l.b16 %v3359
      %v3583 = vunpack.c.l.b16 %v3369
      %v3584 = vunpack.c.l.b16 %v3383
      %v3585 = vunpack.c.l.b16 %v3393
      %v3586 = vunpack.c.l.b16 %v3407
      %v3587 = vunpack.c.l.b16 %v3417
      %v3588 = vpack.c.b16 %v3569, %v3568
      %v3589 = vpack.c.b16 %v3571, %v3570
      %v3590 = vpack.c.b16 %v3573, %v3572
      %v3591 = vpack.c.b16 %v3575, %v3574
      %v3592 = vpack.c.b16 %v3577, %v3576
      %v3593 = vpack.c.b16 %v3579, %v3578
      %v3594 = vpack.c.b16 %v3581, %v3580
      %v3595 = vpack.c.b16 %v3583, %v3582
      %v3596 = vpack.c.b16 %v3585, %v3584
      %v3597 = vpack.c.b16 %v3587, %v3586
      %3598 = vrot.lane.b32.xlu0 %v3588, 8
      %v3599 = vpop.permute.xlu0 %3598
      %3600 = vrot.lane.b32.xlu0 %v3589, 8
      %v3601 = vpop.permute.xlu0 %3600
      %3602 = vrot.lane.b32.xlu0 %v3590, 8
      %v3603 = vpop.permute.xlu0 %3602
      %3604 = vrot.lane.b32.xlu0 %v3591, 8
      %v3605 = vpop.permute.xlu0 %3604
      %3606 = vrot.lane.b32.xlu0 %v3592, 8
      %v3607 = vpop.permute.xlu0 %3606
      %3608 = vrot.lane.b32.xlu0 %v3593, 8
      %v3609 = vpop.permute.xlu0 %3608
      %3610 = vrot.lane.b32.xlu0 %v3594, 8
      %v3611 = vpop.permute.xlu0 %3610
      %3612 = vrot.lane.b32.xlu0 %v3595, 8
      %v3613 = vpop.permute.xlu0 %3612
      %3614 = vrot.lane.b32.xlu0 %v3596, 8
      %v3615 = vpop.permute.xlu0 %3614
      %3616 = vrot.lane.b32.xlu0 %v3597, 8
      %v3617 = vpop.permute.xlu0 %3616
      %v3618 = vunpack.c.l.b16 %v3461
      %v3619 = vunpack.c.l.b16 %v3464
      %v3620 = vunpack.c.l.b16 %v3468
      %v3621 = vunpack.c.l.b16 %v3471
      %v3622 = vunpack.c.l.b16 %v3475
      %v3623 = vunpack.c.l.b16 %v3478
      %v3624 = vunpack.c.l.b16 %v3482
      %v3625 = vunpack.c.l.b16 %v3485
      %v3626 = vunpack.c.l.b16 %v3489
      %v3627 = vunpack.c.l.b16 %v3492
      %v3628 = vunpack.c.l.b16 %v3496
      %v3629 = vunpack.c.l.b16 %v3499
      %v3630 = vunpack.c.l.b16 %v3503
      %v3631 = vunpack.c.l.b16 %v3506
      %v3632 = vunpack.c.l.b16 %v3510
      %v3633 = vunpack.c.l.b16 %v3513
      %v3634 = vunpack.c.l.b16 %v3517
      %v3635 = vunpack.c.l.b16 %v3520
      %v3636 = vunpack.c.l.b16 %v3524
      %v3637 = vunpack.c.l.b16 %v3527
      %v3638 = vpack.c.b16 %v3619, %v3618
      %v3639 = vpack.c.b16 %v3621, %v3620
      %v3640 = vpack.c.b16 %v3623, %v3622
      %v3641 = vpack.c.b16 %v3625, %v3624
      %v3642 = vpack.c.b16 %v3627, %v3626
      %v3643 = vpack.c.b16 %v3629, %v3628
      %v3644 = vpack.c.b16 %v3631, %v3630
      %v3645 = vpack.c.b16 %v3633, %v3632
      %v3646 = vpack.c.b16 %v3635, %v3634
      %v3647 = vpack.c.b16 %v3637, %v3636
      %3648 = vrot.lane.b32.xlu0 %v3638, 16
      %v3649 = vpop.permute.xlu0 %3648
      %3650 = vrot.lane.b32.xlu0 %v3639, 16
      %v3651 = vpop.permute.xlu0 %3650
      %3652 = vrot.lane.b32.xlu0 %v3640, 16
      %v3653 = vpop.permute.xlu0 %3652
      %3654 = vrot.lane.b32.xlu0 %v3641, 16
      %v3655 = vpop.permute.xlu0 %3654
      %3656 = vrot.lane.b32.xlu0 %v3642, 16
      %v3657 = vpop.permute.xlu0 %3656
      %3658 = vrot.lane.b32.xlu0 %v3643, 16
      %v3659 = vpop.permute.xlu0 %3658
      %3660 = vrot.lane.b32.xlu0 %v3644, 16
      %v3661 = vpop.permute.xlu0 %3660
      %3662 = vrot.lane.b32.xlu0 %v3645, 16
      %v3663 = vpop.permute.xlu0 %3662
      %3664 = vrot.lane.b32.xlu0 %v3646, 16
      %v3665 = vpop.permute.xlu0 %3664
      %3666 = vrot.lane.b32.xlu0 %v3647, 16
      %v3667 = vpop.permute.xlu0 %3666
      %v3670 = vsel %vm2146, %v3558, %v3599
      %v3673 = vsel %vm2146, %v3559, %v3601
      %v3676 = vsel %vm2146, %v3560, %v3603
      %v3679 = vsel %vm2146, %v3561, %v3605
      %v3682 = vsel %vm2146, %v3562, %v3607
      %v3685 = vsel %vm2146, %v3563, %v3609
      %v3688 = vsel %vm2146, %v3564, %v3611
      %v3691 = vsel %vm2146, %v3565, %v3613
      %v3694 = vsel %vm2146, %v3566, %v3615
      %v3697 = vsel %vm2146, %v3567, %v3617
      %v3699 = vsel %vm2177, %v3670, %v3649
      %v3701 = vsel %vm2177, %v3673, %v3651
      %v3703 = vsel %vm2177, %v3676, %v3653
      %v3705 = vsel %vm2177, %v3679, %v3655
      %v3707 = vsel %vm2177, %v3682, %v3657
      %v3709 = vsel %vm2177, %v3685, %v3659
      %v3711 = vsel %vm2177, %v3688, %v3661
      %v3713 = vsel %vm2177, %v3691, %v3663
      %v3715 = vsel %vm2177, %v3694, %v3665
      %v3717 = vsel %vm2177, %v3697, %v3667
      %s3718 = scalar_lea.vmem %s6, 24
      %v3719 = vld [vmem:[%s3718] sm:$0xf]
      %v3720 = vld [vmem:[%s3718 + $0x4] sm:$0xf]
      %v3721 = vld [vmem:[%s3718 + $0x8] sm:$0xf]
      %v3725 = vunpack.c.l.b16 %v3719
      %v3726 = vunpack.c.l.b16 %v3720
      %v3727 = vunpack.c.l.b16 %v3721
      %v3728 = vpack.c.b16 %v3726, %v3725
      %v3729 = vpack.c.b16 %v3727, %v3727
      %v3731 = vsel %vm2210, %v3699, 0
      %v3733 = vsel %vm2210, %v3701, 0
      %v3735 = vsel %vm2210, %v3703, 0
      %v3737 = vsel %vm2210, %v3705, 0
      %v3739 = vsel %vm2210, %v3707, 0
      %v3741 = vsel %vm2210, %v3709, 0
      %v3743 = vsel %vm2210, %v3711, 0
      %v3745 = vsel %vm2210, %v3713, 0
      %v3747 = vsel %vm2210, %v3715, 0
      %v3749 = vsel %vm2210, %v3717, 0
      %v3752 = vsel %vm2231, %v3729, 0
      %3754 = vmatprep.subr.bf16.mxu0 0
      %3755 = vmatpush1.bf16.msra.mxu0 %v3728
      %3756 = vmatprep.subr.bf16.mxu0 0
      %3757 = vmatpush1.bf16.msra.mxu0 %v3752
      %3758 = vmatprep.subr.bf16.mxu0 0
      %3759 = vmatpush1.bf16.msra.mxu0 0
      %3760 = vmatprep.subr.bf16.mxu0 0
      %3761 = vmatpush1.bf16.msra.mxu0 0
      %3762 = vmatprep.subr.bf16.mxu0 0
      %3763 = vmatpush1.bf16.msra.mxu0 0
      %3764 = vmatprep.subr.bf16.mxu0 0
      %3765 = vmatpush1.bf16.msra.mxu0 0
      %3766 = vmatprep.subr.bf16.mxu0 0
      %3767 = vmatpush1.bf16.msra.mxu0 0
      %3768 = vmatprep.subr.bf16.mxu0 0
      %3769 = vmatpush1.bf16.msra.mxu0 0
      %3770 = vmatprep.subr.bf16.mxu0 0
      %3771 = vmatpush1.bf16.msra.mxu0 0
      %3772 = vmatprep.subr.bf16.mxu0 0
      %3773 = vmatpush1.bf16.msra.mxu0 0
      %3774 = vmatprep.subr.bf16.mxu0 0
      %3775 = vmatpush1.bf16.msra.mxu0 0
      %3776 = vmatprep.subr.bf16.mxu0 0
      %3777 = vmatpush1.bf16.msra.mxu0 0
      %3778 = vmatprep.subr.bf16.mxu0 0
      %3779 = vmatpush1.bf16.msra.mxu0 0
      %3780 = vmatprep.subr.bf16.mxu0 0
      %3781 = vmatpush1.bf16.msra.mxu0 0
      %3782 = vmatprep.subr.bf16.mxu0 0
      %3783 = vmatpush1.bf16.msra.mxu0 0
      %3784 = vmatprep.subr.bf16.mxu0 0
      %3785 = vmatpush1.bf16.msra.mxu0 0
      %3786 = vmatprep.mubr.bf16.mxu0 0
      %3787 = vmatmul.mubr.bf16.gmra.mrb[0].mxu0 %v3731
      %v3788 = vpop.f32.mrb[0].mxu0
      %v3789 = vadd.f32 0.0, %v3788
      %v3790 = vpop.f32.mrb[0].mxu0
      %v3791 = vpop.f32.mrb[0].mxu0
      %v3792 = vadd.f32 0.0, %v3791
      %v3793 = vpop.f32.mrb[0].mxu0
      %3794 = vmatprep.mubr.bf16.mxu0 0
      %3795 = vmatmul.mubr.bf16.gmra.mrb[0].mxu0 %v3733
      %v3796 = vpop.f32.mrb[0].mxu0
      %v3797 = vadd.f32 0.0, %v3796
      %v3798 = vpop.f32.mrb[0].mxu0
      %v3799 = vpop.f32.mrb[0].mxu0
      %v3800 = vadd.f32 0.0, %v3799
      %v3801 = vpop.f32.mrb[0].mxu0
      %3802 = vmatprep.mubr.bf16.mxu0 0
      %3803 = vmatmul.mubr.bf16.gmra.mrb[0].mxu0 %v3735
      %v3804 = vpop.f32.mrb[0].mxu0
      %v3805 = vadd.f32 0.0, %v3804
      %v3806 = vpop.f32.mrb[0].mxu0
      %v3807 = vpop.f32.mrb[0].mxu0
      %v3808 = vadd.f32 0.0, %v3807
      %v3809 = vpop.f32.mrb[0].mxu0
      %3810 = vmatprep.mubr.bf16.mxu0 0
      %3811 = vmatmul.mubr.bf16.gmra.mrb[0].mxu0 %v3737
      %v3812 = vpop.f32.mrb[0].mxu0
      %v3813 = vadd.f32 0.0, %v3812
      %v3814 = vpop.f32.mrb[0].mxu0
      %v3815 = vpop.f32.mrb[0].mxu0
      %v3816 = vadd.f32 0.0, %v3815
      %v3817 = vpop.f32.mrb[0].mxu0
      %3818 = vmatprep.mubr.bf16.mxu0 0
      %3819 = vmatmul.mubr.bf16.gmra.mrb[0].mxu0 %v3739
      %v3820 = vpop.f32.mrb[0].mxu0
      %v3821 = vadd.f32 0.0, %v3820
      %v3822 = vpop.f32.mrb[0].mxu0
      %v3823 = vpop.f32.mrb[0].mxu0
      %v3824 = vadd.f32 0.0, %v3823
      %v3825 = vpop.f32.mrb[0].mxu0
      %3826 = vmatprep.mubr.bf16.mxu0 0
      %3827 = vmatmul.mubr.bf16.gmra.mrb[0].mxu0 %v3741
      %v3828 = vpop.f32.mrb[0].mxu0
      %v3829 = vadd.f32 0.0, %v3828
      %v3830 = vpop.f32.mrb[0].mxu0
      %v3831 = vpop.f32.mrb[0].mxu0
      %v3832 = vadd.f32 0.0, %v3831
      %v3833 = vpop.f32.mrb[0].mxu0
      %3834 = vmatprep.mubr.bf16.mxu0 0
      %3835 = vmatmul.mubr.bf16.gmra.mrb[0].mxu0 %v3743
      %v3836 = vpop.f32.mrb[0].mxu0
      %v3837 = vadd.f32 0.0, %v3836
      %v3838 = vpop.f32.mrb[0].mxu0
      %v3839 = vpop.f32.mrb[0].mxu0
      %v3840 = vadd.f32 0.0, %v3839
      %v3841 = vpop.f32.mrb[0].mxu0
      %3842 = vmatprep.mubr.bf16.mxu0 0
      %3843 = vmatmul.mubr.bf16.gmra.mrb[0].mxu0 %v3745
      %v3844 = vpop.f32.mrb[0].mxu0
      %v3845 = vadd.f32 0.0, %v3844
      %v3846 = vpop.f32.mrb[0].mxu0
      %v3847 = vpop.f32.mrb[0].mxu0
      %v3848 = vadd.f32 0.0, %v3847
      %v3849 = vpop.f32.mrb[0].mxu0
      %3850 = vmatprep.mubr.bf16.mxu0 0
      %3851 = vmatmul.mubr.bf16.gmra.mrb[0].mxu0 %v3747
      %v3852 = vpop.f32.mrb[0].mxu0
      %v3853 = vadd.f32 0.0, %v3852
      %v3854 = vpop.f32.mrb[0].mxu0
      %v3855 = vpop.f32.mrb[0].mxu0
      %v3856 = vadd.f32 0.0, %v3855
      %v3857 = vpop.f32.mrb[0].mxu0
      %3858 = vmatprep.mubr.bf16.mxu0 0
      %3859 = vmatmul.mubr.bf16.gmra.mrb[0].mxu0 %v3749
      %v3860 = vpop.f32.mrb[0].mxu0
      %v3861 = vadd.f32 0.0, %v3860
      %v3862 = vpop.f32.mrb[0].mxu0
      %v3863 = vpop.f32.mrb[0].mxu0
      %v3864 = vadd.f32 0.0, %v3863
      %v3865 = vpop.f32.mrb[0].mxu0
      %3866 = vdwg.mxu0
      %v3867 = vld [vmem:[#allocation4] sm:$0xff]
      %v3868 = vld [vmem:[#allocation4 + $0x8] sm:$0xff]
      %v3869 = vld [vmem:[#allocation4 + $0x10] sm:$0xff]
      %v3870 = vld [vmem:[#allocation4 + $0x18] sm:$0xff]
      %v3871 = vld [vmem:[#allocation4 + $0x20] sm:$0xff]
      %v3872 = vld [vmem:[#allocation4 + $0x28] sm:$0xff]
      %v3873 = vld [vmem:[#allocation4 + $0x30] sm:$0xff]
      %v3874 = vld [vmem:[#allocation4 + $0x38] sm:$0xff]
      %v3875 = vld [vmem:[#allocation4 + $0x40] sm:$0xff]
      %v3876 = vld [vmem:[#allocation4 + $0x48] sm:$0xff]
      %v3877 = vld [vmem:[#allocation4 + $0x50] sm:$0xff]
      %v3878 = vld [vmem:[#allocation4 + $0x58] sm:$0xff]
      %v3879 = vld [vmem:[#allocation4 + $0x60] sm:$0xff]
      %v3880 = vld [vmem:[#allocation4 + $0x68] sm:$0xff]
      %v3881 = vld [vmem:[#allocation4 + $0x70] sm:$0xff]
      %v3882 = vld [vmem:[#allocation4 + $0x78] sm:$0xff]
      %v3883 = vld [vmem:[#allocation4 + $0x80] sm:$0xff]
      %v3884 = vld [vmem:[#allocation4 + $0x88] sm:$0xff]
      %v3885 = vld [vmem:[#allocation4 + $0x90] sm:$0xff]
      %v3886 = vld [vmem:[#allocation4 + $0x98] sm:$0xff]
      %v3887 = vadd.f32 %v3867, %v3789
      %v3888 = vadd.f32 %v3868, %v3792
      %v3889 = vadd.f32 %v3869, %v3797
      %v3890 = vadd.f32 %v3870, %v3800
      %v3891 = vadd.f32 %v3871, %v3805
      %v3892 = vadd.f32 %v3872, %v3808
      %v3893 = vadd.f32 %v3873, %v3813
      %v3894 = vadd.f32 %v3874, %v3816
      %v3895 = vadd.f32 %v3875, %v3821
      %v3896 = vadd.f32 %v3876, %v3824
      %v3897 = vadd.f32 %v3877, %v3829
      %v3898 = vadd.f32 %v3878, %v3832
      %v3899 = vadd.f32 %v3879, %v3837
      %v3900 = vadd.f32 %v3880, %v3840
      %v3901 = vadd.f32 %v3881, %v3845
      %v3902 = vadd.f32 %v3882, %v3848
      %v3903 = vadd.f32 %v3883, %v3853
      %v3904 = vadd.f32 %v3884, %v3856
      %v3905 = vadd.f32 %v3885, %v3861
      %v3906 = vadd.f32 %v3886, %v3864
      %3907 = vst.msk [vmem:[#allocation4] sm:$0xff] %vm2146, %v3887
      %3908 = vst.msk [vmem:[#allocation4 + $0x8] sm:$0xff] %vm2146, %v3888
      %3909 = vst.msk [vmem:[#allocation4 + $0x10] sm:$0xff] %vm2146, %v3889
      %3910 = vst.msk [vmem:[#allocation4 + $0x18] sm:$0xff] %vm2146, %v3890
      %3911 = vst.msk [vmem:[#allocation4 + $0x20] sm:$0xff] %vm2146, %v3891
      %3912 = vst.msk [vmem:[#allocation4 + $0x28] sm:$0xff] %vm2146, %v3892
      %3913 = vst.msk [vmem:[#allocation4 + $0x30] sm:$0xff] %vm2146, %v3893
      %3914 = vst.msk [vmem:[#allocation4 + $0x38] sm:$0xff] %vm2146, %v3894
      %3915 = vst.msk [vmem:[#allocation4 + $0x40] sm:$0xff] %vm2146, %v3895
      %3916 = vst.msk [vmem:[#allocation4 + $0x48] sm:$0xff] %vm2146, %v3896
      %3917 = vst.msk [vmem:[#allocation4 + $0x50] sm:$0xff] %vm2146, %v3897
      %3918 = vst.msk [vmem:[#allocation4 + $0x58] sm:$0xff] %vm2146, %v3898
      %3919 = vst.msk [vmem:[#allocation4 + $0x60] sm:$0xff] %vm2146, %v3899
      %3920 = vst.msk [vmem:[#allocation4 + $0x68] sm:$0xff] %vm2146, %v3900
      %3921 = vst.msk [vmem:[#allocation4 + $0x70] sm:$0xff] %vm2146, %v3901
      %3922 = vst.msk [vmem:[#allocation4 + $0x78] sm:$0xff] %vm2146, %v3902
      %3923 = vst.msk [vmem:[#allocation4 + $0x80] sm:$0xff] %vm2146, %v3903
      %3924 = vst.msk [vmem:[#allocation4 + $0x88] sm:$0xff] %vm2146, %v3904
      %3925 = vst.msk [vmem:[#allocation4 + $0x90] sm:$0xff] %vm2146, %v3905
      %3926 = vst.msk [vmem:[#allocation4 + $0x98] sm:$0xff] %vm2146, %v3906
      %v3927 = vld [vmem:[#allocation4] sm:$0xff]
      %v3928 = vld [vmem:[#allocation4 + $0x8] sm:$0xff]
      %v3929 = vld [vmem:[#allocation4 + $0x10] sm:$0xff]
      %v3930 = vld [vmem:[#allocation4 + $0x18] sm:$0xff]
      %v3931 = vld [vmem:[#allocation4 + $0x20] sm:$0xff]
      %v3932 = vld [vmem:[#allocation4 + $0x28] sm:$0xff]
      %v3933 = vld [vmem:[#allocation4 + $0x30] sm:$0xff]
      %v3934 = vld [vmem:[#allocation4 + $0x38] sm:$0xff]
      %v3935 = vld [vmem:[#allocation4 + $0x40] sm:$0xff]
      %v3936 = vld [vmem:[#allocation4 + $0x48] sm:$0xff]
      %v3937 = vld [vmem:[#allocation4 + $0x50] sm:$0xff]
      %v3938 = vld [vmem:[#allocation4 + $0x58] sm:$0xff]
      %v3939 = vld [vmem:[#allocation4 + $0x60] sm:$0xff]
      %v3940 = vld [vmem:[#allocation4 + $0x68] sm:$0xff]
      %v3941 = vld [vmem:[#allocation4 + $0x70] sm:$0xff]
      %v3942 = vld [vmem:[#allocation4 + $0x78] sm:$0xff]
      %v3943 = vld [vmem:[#allocation4 + $0x80] sm:$0xff]
      %v3944 = vld [vmem:[#allocation4 + $0x88] sm:$0xff]
      %v3945 = vld [vmem:[#allocation4 + $0x90] sm:$0xff]
      %v3946 = vld [vmem:[#allocation4 + $0x98] sm:$0xff]
      %v3947 = vld [vmem:[%s7] sm:$0x1]
      %v3949 = vlaneseq
      %v3950 = vshrl.u32 %v3949, 7
      %v3951 = vsub.s32 0, %v3950
      %v3952 = vrot.slane %v3947, %v3951
      %v3954 = vadd.f32 %v3927, %v3952
      %v3955 = vadd.f32 %v3928, %v3952
      %v3956 = vadd.f32 %v3929, %v3952
      %v3957 = vadd.f32 %v3930, %v3952
      %v3958 = vadd.f32 %v3931, %v3952
      %v3959 = vadd.f32 %v3932, %v3952
      %v3960 = vadd.f32 %v3933, %v3952
      %v3961 = vadd.f32 %v3934, %v3952
      %v3962 = vadd.f32 %v3935, %v3952
      %v3963 = vadd.f32 %v3936, %v3952
      %v3964 = vadd.f32 %v3937, %v3952
      %v3965 = vadd.f32 %v3938, %v3952
      %v3966 = vadd.f32 %v3939, %v3952
      %v3967 = vadd.f32 %v3940, %v3952
      %v3968 = vadd.f32 %v3941, %v3952
      %v3969 = vadd.f32 %v3942, %v3952
      %v3970 = vadd.f32 %v3943, %v3952
      %v3971 = vadd.f32 %v3944, %v3952
      %v3972 = vadd.f32 %v3945, %v3952
      %v3973 = vadd.f32 %v3946, %v3952
      %v3974 = vmax.f32 %v3954, 0.0
      %v3975 = vmax.f32 %v3955, 0.0
      %v3976 = vmax.f32 %v3956, 0.0
      %v3977 = vmax.f32 %v3957, 0.0
      %v3978 = vmax.f32 %v3958, 0.0
      %v3979 = vmax.f32 %v3959, 0.0
      %v3980 = vmax.f32 %v3960, 0.0
      %v3981 = vmax.f32 %v3961, 0.0
      %v3982 = vmax.f32 %v3962, 0.0
      %v3983 = vmax.f32 %v3963, 0.0
      %v3984 = vmax.f32 %v3964, 0.0
      %v3985 = vmax.f32 %v3965, 0.0
      %v3986 = vmax.f32 %v3966, 0.0
      %v3987 = vmax.f32 %v3967, 0.0
      %v3988 = vmax.f32 %v3968, 0.0
      %v3989 = vmax.f32 %v3969, 0.0
      %v3990 = vmax.f32 %v3970, 0.0
      %v3991 = vmax.f32 %v3971, 0.0
      %v3992 = vmax.f32 %v3972, 0.0
      %v3993 = vmax.f32 %v3973, 0.0
      %v3994 = vld [vmem:[#allocation3] sm:$0x1]
      %v3995 = vsel %vm712, 0, %v3994
      %3996 = vst [vmem:[#allocation3] sm:$0x1] %v3995
      %v3997 = vld [vmem:[#allocation3 + $0xc] sm:$0x1]
      %v3998 = vsel %vm712, 0, %v3997
      %3999 = vst [vmem:[#allocation3 + $0xc] sm:$0x1] %v3998
      %v4000 = vld [vmem:[#allocation3 + $0x18] sm:$0x1]
      %v4001 = vsel %vm712, 0, %v4000
      %4002 = vst [vmem:[#allocation3 + $0x18] sm:$0x1] %v4001
      %v4003 = vld [vmem:[#allocation3 + $0x24] sm:$0x1]
      %v4004 = vsel %vm712, 0, %v4003
      %4005 = vst [vmem:[#allocation3 + $0x24] sm:$0x1] %v4004
      %v4006 = vld [vmem:[#allocation3 + $0x30] sm:$0x1]
      %v4007 = vsel %vm712, 0, %v4006
      %4008 = vst [vmem:[#allocation3 + $0x30] sm:$0x1] %v4007
      %v4009 = vld [vmem:[#allocation3 + $0x3c] sm:$0x1]
      %v4010 = vsel %vm712, 0, %v4009
      %4011 = vst [vmem:[#allocation3 + $0x3c] sm:$0x1] %v4010
      %v4012 = vld [vmem:[#allocation3 + $0x48] sm:$0x1]
      %v4013 = vsel %vm712, 0, %v4012
      %4014 = vst [vmem:[#allocation3 + $0x48] sm:$0x1] %v4013
      %v4015 = vld [vmem:[#allocation3 + $0x54] sm:$0x1]
      %v4016 = vsel %vm712, 0, %v4015
      %4017 = vst [vmem:[#allocation3 + $0x54] sm:$0x1] %v4016
      %v4018 = vld [vmem:[#allocation3 + $0x60] sm:$0x1]
      %v4019 = vsel %vm712, 0, %v4018
      %4020 = vst [vmem:[#allocation3 + $0x60] sm:$0x1] %v4019
      %v4021 = vld [vmem:[#allocation3 + $0x6c] sm:$0x1]
      %v4022 = vsel %vm712, 0, %v4021
      %4023 = vst [vmem:[#allocation3 + $0x6c] sm:$0x1] %v4022
      %v4024 = vld [vmem:[#allocation3 + $0x8] sm:$0x1]
      %v4025 = vsel %vm750, 0, %v4024
      %4026 = vst [vmem:[#allocation3 + $0x8] sm:$0x1] %v4025
      %v4027 = vld [vmem:[#allocation3 + $0x14] sm:$0x1]
      %v4028 = vsel %vm750, 0, %v4027
      %4029 = vst [vmem:[#allocation3 + $0x14] sm:$0x1] %v4028
      %v4030 = vld [vmem:[#allocation3 + $0x20] sm:$0x1]
      %v4031 = vsel %vm750, 0, %v4030
      %4032 = vst [vmem:[#allocation3 + $0x20] sm:$0x1] %v4031
      %v4033 = vld [vmem:[#allocation3 + $0x2c] sm:$0x1]
      %v4034 = vsel %vm750, 0, %v4033
      %4035 = vst [vmem:[#allocation3 + $0x2c] sm:$0x1] %v4034
      %v4036 = vld [vmem:[#allocation3 + $0x38] sm:$0x1]
      %v4037 = vsel %vm750, 0, %v4036
      %4038 = vst [vmem:[#allocation3 + $0x38] sm:$0x1] %v4037
      %v4039 = vld [vmem:[#allocation3 + $0x44] sm:$0x1]
      %v4040 = vsel %vm750, 0, %v4039
      %4041 = vst [vmem:[#allocation3 + $0x44] sm:$0x1] %v4040
      %v4042 = vld [vmem:[#allocation3 + $0x50] sm:$0x1]
      %v4043 = vsel %vm750, 0, %v4042
      %4044 = vst [vmem:[#allocation3 + $0x50] sm:$0x1] %v4043
      %v4045 = vld [vmem:[#allocation3 + $0x5c] sm:$0x1]
      %v4046 = vsel %vm750, 0, %v4045
      %4047 = vst [vmem:[#allocation3 + $0x5c] sm:$0x1] %v4046
      %v4048 = vld [vmem:[#allocation3 + $0x68] sm:$0x1]
      %v4049 = vsel %vm750, 0, %v4048
      %4050 = vst [vmem:[#allocation3 + $0x68] sm:$0x1] %v4049
      %v4051 = vld [vmem:[#allocation3 + $0x74] sm:$0x1]
      %v4052 = vsel %vm750, 0, %v4051
      %4053 = vst [vmem:[#allocation3 + $0x74] sm:$0x1] %v4052
      %v4054 = vpack.c.bf16 %v3975, %v3974
      %v4055 = vpack.c.bf16 %v3977, %v3976
      %v4056 = vpack.c.bf16 %v3979, %v3978
      %v4057 = vpack.c.bf16 %v3981, %v3980
      %v4058 = vpack.c.bf16 %v3983, %v3982
      %v4059 = vpack.c.bf16 %v3985, %v3984
      %v4060 = vpack.c.bf16 %v3987, %v3986
      %v4061 = vpack.c.bf16 %v3989, %v3988
      %v4062 = vpack.c.bf16 %v3991, %v3990
      %v4063 = vpack.c.bf16 %v3993, %v3992
      %v4074 = vunpack.c.l.b16 %v4054
      %v4075 = vunpack.c.h.b16 %v4054
      %v4076 = vunpack.c.l.b16 %v4055
      %v4077 = vunpack.c.h.b16 %v4055
      %v4078 = vunpack.c.l.b16 %v4056
      %v4079 = vunpack.c.h.b16 %v4056
      %v4080 = vunpack.c.l.b16 %v4057
      %v4081 = vunpack.c.h.b16 %v4057
      %v4082 = vunpack.c.l.b16 %v4058
      %v4083 = vunpack.c.h.b16 %v4058
      %v4084 = vunpack.c.l.b16 %v4059
      %v4085 = vunpack.c.h.b16 %v4059
      %v4086 = vunpack.c.l.b16 %v4060
      %v4087 = vunpack.c.h.b16 %v4060
      %v4088 = vunpack.c.l.b16 %v4061
      %v4089 = vunpack.c.h.b16 %v4061
      %v4090 = vunpack.c.l.b16 %v4062
      %v4091 = vunpack.c.h.b16 %v4062
      %v4092 = vunpack.c.l.b16 %v4063
      %v4093 = vunpack.c.h.b16 %v4063
      %v4094 = vpack.c.b16 %v4074, %v4074
      %v4095 = vpack.c.b16 %v4075, %v4075
      %v4096 = vpack.c.b16 %v4076, %v4076
      %v4097 = vpack.c.b16 %v4077, %v4077
      %v4098 = vpack.c.b16 %v4078, %v4078
      %v4099 = vpack.c.b16 %v4079, %v4079
      %v4100 = vpack.c.b16 %v4080, %v4080
      %v4101 = vpack.c.b16 %v4081, %v4081
      %v4102 = vpack.c.b16 %v4082, %v4082
      %v4103 = vpack.c.b16 %v4083, %v4083
      %v4104 = vpack.c.b16 %v4084, %v4084
      %v4105 = vpack.c.b16 %v4085, %v4085
      %v4106 = vpack.c.b16 %v4086, %v4086
      %v4107 = vpack.c.b16 %v4087, %v4087
      %v4108 = vpack.c.b16 %v4088, %v4088
      %v4109 = vpack.c.b16 %v4089, %v4089
      %v4110 = vpack.c.b16 %v4090, %v4090
      %v4111 = vpack.c.b16 %v4091, %v4091
      %v4112 = vpack.c.b16 %v4092, %v4092
      %v4113 = vpack.c.b16 %v4093, %v4093
      %v4115 = vshrl.u32 %v4094, 16
      %v4117 = vrot.slane %v4115, 7
      %v4118 = vshll.u32 %v4094, 16
      %v4120 = vor.u32 %v4117, %v4118
      %v4121 = vrot.slane %v4117, 4
      %v4123 = vshrl.u32 %v4095, 16
      %v4125 = vrot.slane %v4123, 7
      %v4126 = vshll.u32 %v4095, 16
      %v4128 = vor.u32 %v4125, %v4126
      %v4129 = vsel %vm804, %v4121, %v4128
      %v4130 = vrot.slane %v4125, 4
      %v4132 = vshrl.u32 %v4096, 16
      %v4134 = vrot.slane %v4132, 7
      %v4135 = vshll.u32 %v4096, 16
      %v4137 = vor.u32 %v4134, %v4135
      %v4138 = vrot.slane %v4134, 4
      %v4140 = vshrl.u32 %v4097, 16
      %v4142 = vrot.slane %v4140, 7
      %v4143 = vshll.u32 %v4097, 16
      %v4145 = vor.u32 %v4142, %v4143
      %v4146 = vsel %vm804, %v4138, %v4145
      %v4147 = vrot.slane %v4142, 4
      %v4149 = vshrl.u32 %v4098, 16
      %v4151 = vrot.slane %v4149, 7
      %v4152 = vshll.u32 %v4098, 16
      %v4154 = vor.u32 %v4151, %v4152
      %v4155 = vrot.slane %v4151, 4
      %v4157 = vshrl.u32 %v4099, 16
      %v4159 = vrot.slane %v4157, 7
      %v4160 = vshll.u32 %v4099, 16
      %v4162 = vor.u32 %v4159, %v4160
      %v4163 = vsel %vm804, %v4155, %v4162
      %v4164 = vrot.slane %v4159, 4
      %v4166 = vshrl.u32 %v4100, 16
      %v4168 = vrot.slane %v4166, 7
      %v4169 = vshll.u32 %v4100, 16
      %v4171 = vor.u32 %v4168, %v4169
      %v4172 = vrot.slane %v4168, 4
      %v4174 = vshrl.u32 %v4101, 16
      %v4176 = vrot.slane %v4174, 7
      %v4177 = vshll.u32 %v4101, 16
      %v4179 = vor.u32 %v4176, %v4177
      %v4180 = vsel %vm804, %v4172, %v4179
      %v4181 = vrot.slane %v4176, 4
      %v4183 = vshrl.u32 %v4102, 16
      %v4185 = vrot.slane %v4183, 7
      %v4186 = vshll.u32 %v4102, 16
      %v4188 = vor.u32 %v4185, %v4186
      %v4189 = vrot.slane %v4185, 4
      %v4191 = vshrl.u32 %v4103, 16
      %v4193 = vrot.slane %v4191, 7
      %v4194 = vshll.u32 %v4103, 16
      %v4196 = vor.u32 %v4193, %v4194
      %v4197 = vsel %vm804, %v4189, %v4196
      %v4198 = vrot.slane %v4193, 4
      %v4200 = vshrl.u32 %v4104, 16
      %v4202 = vrot.slane %v4200, 7
      %v4203 = vshll.u32 %v4104, 16
      %v4205 = vor.u32 %v4202, %v4203
      %v4206 = vrot.slane %v4202, 4
      %v4208 = vshrl.u32 %v4105, 16
      %v4210 = vrot.slane %v4208, 7
      %v4211 = vshll.u32 %v4105, 16
      %v4213 = vor.u32 %v4210, %v4211
      %v4214 = vsel %vm804, %v4206, %v4213
      %v4215 = vrot.slane %v4210, 4
      %v4217 = vshrl.u32 %v4106, 16
      %v4219 = vrot.slane %v4217, 7
      %v4220 = vshll.u32 %v4106, 16
      %v4222 = vor.u32 %v4219, %v4220
      %v4223 = vrot.slane %v4219, 4
      %v4225 = vshrl.u32 %v4107, 16
      %v4227 = vrot.slane %v4225, 7
      %v4228 = vshll.u32 %v4107, 16
      %v4230 = vor.u32 %v4227, %v4228
      %v4231 = vsel %vm804, %v4223, %v4230
      %v4232 = vrot.slane %v4227, 4
      %v4234 = vshrl.u32 %v4108, 16
      %v4236 = vrot.slane %v4234, 7
      %v4237 = vshll.u32 %v4108, 16
      %v4239 = vor.u32 %v4236, %v4237
      %v4240 = vrot.slane %v4236, 4
      %v4242 = vshrl.u32 %v4109, 16
      %v4244 = vrot.slane %v4242, 7
      %v4245 = vshll.u32 %v4109, 16
      %v4247 = vor.u32 %v4244, %v4245
      %v4248 = vsel %vm804, %v4240, %v4247
      %v4249 = vrot.slane %v4244, 4
      %v4251 = vshrl.u32 %v4110, 16
      %v4253 = vrot.slane %v4251, 7
      %v4254 = vshll.u32 %v4110, 16
      %v4256 = vor.u32 %v4253, %v4254
      %v4257 = vrot.slane %v4253, 4
      %v4259 = vshrl.u32 %v4111, 16
      %v4261 = vrot.slane %v4259, 7
      %v4262 = vshll.u32 %v4111, 16
      %v4264 = vor.u32 %v4261, %v4262
      %v4265 = vsel %vm804, %v4257, %v4264
      %v4266 = vrot.slane %v4261, 4
      %v4268 = vshrl.u32 %v4112, 16
      %v4270 = vrot.slane %v4268, 7
      %v4271 = vshll.u32 %v4112, 16
      %v4273 = vor.u32 %v4270, %v4271
      %v4274 = vrot.slane %v4270, 4
      %v4276 = vshrl.u32 %v4113, 16
      %v4278 = vrot.slane %v4276, 7
      %v4279 = vshll.u32 %v4113, 16
      %v4281 = vor.u32 %v4278, %v4279
      %v4282 = vsel %vm804, %v4274, %v4281
      %v4283 = vrot.slane %v4278, 4
      %vm4314 = vcmask 60416
      %vm4315 = vmand %vm4314, %vm749
      %v4316 = vld [vmem:[#allocation3] sm:$0xf]
      %v4317 = vsel %vm4315, %v4120, %v4316
      %4318 = vst [vmem:[#allocation3] sm:$0xf] %v4317
      %vm4319 = vcmask 60416
      %4320 = vst.msk [vmem:[#allocation3 + $0x4] sm:$0xf] %vm4319, %v4129
      %v4321 = vld [vmem:[#allocation3 + $0x8] sm:$0x1]
      %v4322 = vsel %vm712, %v4130, %v4321
      %4323 = vst [vmem:[#allocation3 + $0x8] sm:$0x1] %v4322
      %v4324 = vld [vmem:[#allocation3 + $0xc] sm:$0xf]
      %v4325 = vsel %vm4315, %v4137, %v4324
      %4326 = vst [vmem:[#allocation3 + $0xc] sm:$0xf] %v4325
      %4327 = vst.msk [vmem:[#allocation3 + $0x10] sm:$0xf] %vm4319, %v4146
      %v4328 = vld [vmem:[#allocation3 + $0x14] sm:$0x1]
      %v4329 = vsel %vm712, %v4147, %v4328
      %4330 = vst [vmem:[#allocation3 + $0x14] sm:$0x1] %v4329
      %v4331 = vld [vmem:[#allocation3 + $0x18] sm:$0xf]
      %v4332 = vsel %vm4315, %v4154, %v4331
      %4333 = vst [vmem:[#allocation3 + $0x18] sm:$0xf] %v4332
      %4334 = vst.msk [vmem:[#allocation3 + $0x1c] sm:$0xf] %vm4319, %v4163
      %v4335 = vld [vmem:[#allocation3 + $0x20] sm:$0x1]
      %v4336 = vsel %vm712, %v4164, %v4335
      %4337 = vst [vmem:[#allocation3 + $0x20] sm:$0x1] %v4336
      %v4338 = vld [vmem:[#allocation3 + $0x24] sm:$0xf]
      %v4339 = vsel %vm4315, %v4171, %v4338
      %4340 = vst [vmem:[#allocation3 + $0x24] sm:$0xf] %v4339
      %4341 = vst.msk [vmem:[#allocation3 + $0x28] sm:$0xf] %vm4319, %v4180
      %v4342 = vld [vmem:[#allocation3 + $0x2c] sm:$0x1]
      %v4343 = vsel %vm712, %v4181, %v4342
      %4344 = vst [vmem:[#allocation3 + $0x2c] sm:$0x1] %v4343
      %v4345 = vld [vmem:[#allocation3 + $0x30] sm:$0xf]
      %v4346 = vsel %vm4315, %v4188, %v4345
      %4347 = vst [vmem:[#allocation3 + $0x30] sm:$0xf] %v4346
      %4348 = vst.msk [vmem:[#allocation3 + $0x34] sm:$0xf] %vm4319, %v4197
      %v4349 = vld [vmem:[#allocation3 + $0x38] sm:$0x1]
      %v4350 = vsel %vm712, %v4198, %v4349
      %4351 = vst [vmem:[#allocation3 + $0x38] sm:$0x1] %v4350
      %v4352 = vld [vmem:[#allocation3 + $0x3c] sm:$0xf]
      %v4353 = vsel %vm4315, %v4205, %v4352
      %4354 = vst [vmem:[#allocation3 + $0x3c] sm:$0xf] %v4353
      %4355 = vst.msk [vmem:[#allocation3 + $0x40] sm:$0xf] %vm4319, %v4214
      %v4356 = vld [vmem:[#allocation3 + $0x44] sm:$0x1]
      %v4357 = vsel %vm712, %v4215, %v4356
      %4358 = vst [vmem:[#allocation3 + $0x44] sm:$0x1] %v4357
      %v4359 = vld [vmem:[#allocation3 + $0x48] sm:$0xf]
      %v4360 = vsel %vm4315, %v4222, %v4359
      %4361 = vst [vmem:[#allocation3 + $0x48] sm:$0xf] %v4360
      %4362 = vst.msk [vmem:[#allocation3 + $0x4c] sm:$0xf] %vm4319, %v4231
      %v4363 = vld [vmem:[#allocation3 + $0x50] sm:$0x1]
      %v4364 = vsel %vm712, %v4232, %v4363
      %4365 = vst [vmem:[#allocation3 + $0x50] sm:$0x1] %v4364
      %v4366 = vld [vmem:[#allocation3 + $0x54] sm:$0xf]
      %v4367 = vsel %vm4315, %v4239, %v4366
      %4368 = vst [vmem:[#allocation3 + $0x54] sm:$0xf] %v4367
      %4369 = vst.msk [vmem:[#allocation3 + $0x58] sm:$0xf] %vm4319, %v4248
      %v4370 = vld [vmem:[#allocation3 + $0x5c] sm:$0x1]
      %v4371 = vsel %vm712, %v4249, %v4370
      %4372 = vst [vmem:[#allocation3 + $0x5c] sm:$0x1] %v4371
      %v4373 = vld [vmem:[#allocation3 + $0x60] sm:$0xf]
      %v4374 = vsel %vm4315, %v4256, %v4373
      %4375 = vst [vmem:[#allocation3 + $0x60] sm:$0xf] %v4374
      %4376 = vst.msk [vmem:[#allocation3 + $0x64] sm:$0xf] %vm4319, %v4265
      %v4377 = vld [vmem:[#allocation3 + $0x68] sm:$0x1]
      %v4378 = vsel %vm712, %v4266, %v4377
      %4379 = vst [vmem:[#allocation3 + $0x68] sm:$0x1] %v4378
      %v4380 = vld [vmem:[#allocation3 + $0x6c] sm:$0xf]
      %v4381 = vsel %vm4315, %v4273, %v4380
      %4382 = vst [vmem:[#allocation3 + $0x6c] sm:$0xf] %v4381
      %4383 = vst.msk [vmem:[#allocation3 + $0x70] sm:$0xf] %vm4319, %v4282
      %v4384 = vld [vmem:[#allocation3 + $0x74] sm:$0x1]
      %v4385 = vsel %vm712, %v4283, %v4384
      %4386 = vst [vmem:[#allocation3 + $0x74] sm:$0x1] %v4385
      // Predicated region
      $region77: #{tpu_custom_call.1} parent=59 // pred_check
        %p4387 = pneg %p1444
      $region78: #{tpu_custom_call.1} parent=59 // pred_check_branch
        %4389 = sbr.rel (%p4387) target = $region80
      $region79: #{tpu_custom_call.1} parent=59 // pred_region
        %4390 = vst.msk [vmem:[#allocation3] sm:$0xf] %vm4319, 0
        %4391 = vst.msk [vmem:[#allocation3 + $0x4] sm:$0xf] %vm4319, 0
        %vm4392 = vcmask 57344
        %4393 = vst.msk [vmem:[#allocation3 + $0x8] sm:$0x1] %vm4392, 0
      $region80: #{tpu_custom_call.1} parent=59 // pred_fallthru
        _
      // Predicated region
      $region81: #{tpu_custom_call.1} parent=59 // pred_check
        %p4394 = pneg %p1598
      $region82: #{tpu_custom_call.1} parent=59 // pred_check_branch
        %4396 = sbr.rel (%p4394) target = $region84
      $region83: #{tpu_custom_call.1} parent=59 // pred_region
        %s4397 = scalar_lea.vmem [#allocation3], 108
        %4398 = vst.msk [vmem:[%s4397] sm:$0xf] %vm4319, 0
        %4399 = vst.msk [vmem:[%s4397 + $0x4] sm:$0xf] %vm4319, 0
        %vm4400 = vcmask 57344
        %4401 = vst.msk [vmem:[%s4397 + $0x8] sm:$0x1] %vm4400, 0
      $region84: #{tpu_custom_call.1} parent=59 // pred_fallthru
        _
      %v4402 = vld [vmem:[#allocation3] sm:$0xf]
      %v4403 = vld [vmem:[#allocation3 + $0x4] sm:$0xf]
      %v4404 = vld [vmem:[#allocation3 + $0xc] sm:$0xf]
      %v4405 = vld [vmem:[#allocation3 + $0x10] sm:$0xf]
      %v4406 = vld [vmem:[#allocation3 + $0x18] sm:$0xf]
      %v4407 = vld [vmem:[#allocation3 + $0x1c] sm:$0xf]
      %v4408 = vld [vmem:[#allocation3 + $0x24] sm:$0xf]
      %v4409 = vld [vmem:[#allocation3 + $0x28] sm:$0xf]
      %v4410 = vld [vmem:[#allocation3 + $0x30] sm:$0xf]
      %v4411 = vld [vmem:[#allocation3 + $0x34] sm:$0xf]
      %v4412 = vld [vmem:[#allocation3 + $0x3c] sm:$0xf]
      %v4413 = vld [vmem:[#allocation3 + $0x40] sm:$0xf]
      %v4414 = vld [vmem:[#allocation3 + $0x48] sm:$0xf]
      %v4415 = vld [vmem:[#allocation3 + $0x4c] sm:$0xf]
      %v4416 = vld [vmem:[#allocation3 + $0x54] sm:$0xf]
      %v4417 = vld [vmem:[#allocation3 + $0x58] sm:$0xf]
      %v4418 = vld [vmem:[#allocation3 + $0x8] sm:$0x1]
      %v4419 = vld [vmem:[#allocation3 + $0x14] sm:$0x1]
      %v4420 = vld [vmem:[#allocation3 + $0x20] sm:$0x1]
      %v4421 = vld [vmem:[#allocation3 + $0x2c] sm:$0x1]
      %v4422 = vld [vmem:[#allocation3 + $0x38] sm:$0x1]
      %v4423 = vld [vmem:[#allocation3 + $0x44] sm:$0x1]
      %v4424 = vld [vmem:[#allocation3 + $0x50] sm:$0x1]
      %v4425 = vld [vmem:[#allocation3 + $0x5c] sm:$0x1]
      %v4427 = vshrl.u32 %v4402, 16
      %v4429 = vrot.slane %v4427, 4
      %v4430 = vshll.u32 %v4402, 16
      %v4432 = vrot.slane %v4430, 5
      %v4433 = vor.u32 %v4429, %v4432
      %v4434 = vrot.slane %v4433, 4
      %v4436 = vshll.u32 %v4403, 16
      %v4438 = vrot.slane %v4436, 5
      %v4439 = vsel %vm1652, %v4434, %v4438
      %v4440 = vshrl.u32 %v4403, 16
      %v4442 = vrot.slane %v4440, 4
      %v4443 = vor.u32 %v4442, %v4438
      %v4444 = vrot.slane %v4443, 4
      %v4446 = vshll.u32 %v4418, 16
      %v4448 = vrot.slane %v4446, 5
      %v4449 = vsel %vm1652, %v4444, %v4448
      %v4451 = vshrl.u32 %v4404, 16
      %v4453 = vrot.slane %v4451, 4
      %v4454 = vshll.u32 %v4404, 16
      %v4456 = vrot.slane %v4454, 5
      %v4457 = vor.u32 %v4453, %v4456
      %v4458 = vrot.slane %v4457, 4
      %v4460 = vshll.u32 %v4405, 16
      %v4462 = vrot.slane %v4460, 5
      %v4463 = vsel %vm1652, %v4458, %v4462
      %v4464 = vshrl.u32 %v4405, 16
      %v4466 = vrot.slane %v4464, 4
      %v4467 = vor.u32 %v4466, %v4462
      %v4468 = vrot.slane %v4467, 4
      %v4470 = vshll.u32 %v4419, 16
      %v4472 = vrot.slane %v4470, 5
      %v4473 = vsel %vm1652, %v4468, %v4472
      %v4475 = vshrl.u32 %v4406, 16
      %v4477 = vrot.slane %v4475, 4
      %v4478 = vshll.u32 %v4406, 16
      %v4480 = vrot.slane %v4478, 5
      %v4481 = vor.u32 %v4477, %v4480
      %v4482 = vrot.slane %v4481, 4
      %v4484 = vshll.u32 %v4407, 16
      %v4486 = vrot.slane %v4484, 5
      %v4487 = vsel %vm1652, %v4482, %v4486
      %v4488 = vshrl.u32 %v4407, 16
      %v4490 = vrot.slane %v4488, 4
      %v4491 = vor.u32 %v4490, %v4486
      %v4492 = vrot.slane %v4491, 4
      %v4494 = vshll.u32 %v4420, 16
      %v4496 = vrot.slane %v4494, 5
      %v4497 = vsel %vm1652, %v4492, %v4496
      %v4499 = vshrl.u32 %v4408, 16
      %v4501 = vrot.slane %v4499, 4
      %v4502 = vshll.u32 %v4408, 16
      %v4504 = vrot.slane %v4502, 5
      %v4505 = vor.u32 %v4501, %v4504
      %v4506 = vrot.slane %v4505, 4
      %v4508 = vshll.u32 %v4409, 16
      %v4510 = vrot.slane %v4508, 5
      %v4511 = vsel %vm1652, %v4506, %v4510
      %v4512 = vshrl.u32 %v4409, 16
      %v4514 = vrot.slane %v4512, 4
      %v4515 = vor.u32 %v4514, %v4510
      %v4516 = vrot.slane %v4515, 4
      %v4518 = vshll.u32 %v4421, 16
      %v4520 = vrot.slane %v4518, 5
      %v4521 = vsel %vm1652, %v4516, %v4520
      %v4523 = vshrl.u32 %v4410, 16
      %v4525 = vrot.slane %v4523, 4
      %v4526 = vshll.u32 %v4410, 16
      %v4528 = vrot.slane %v4526, 5
      %v4529 = vor.u32 %v4525, %v4528
      %v4530 = vrot.slane %v4529, 4
      %v4532 = vshll.u32 %v4411, 16
      %v4534 = vrot.slane %v4532, 5
      %v4535 = vsel %vm1652, %v4530, %v4534
      %v4536 = vshrl.u32 %v4411, 16
      %v4538 = vrot.slane %v4536, 4
      %v4539 = vor.u32 %v4538, %v4534
      %v4540 = vrot.slane %v4539, 4
      %v4542 = vshll.u32 %v4422, 16
      %v4544 = vrot.slane %v4542, 5
      %v4545 = vsel %vm1652, %v4540, %v4544
      %v4547 = vshrl.u32 %v4412, 16
      %v4549 = vrot.slane %v4547, 4
      %v4550 = vshll.u32 %v4412, 16
      %v4552 = vrot.slane %v4550, 5
      %v4553 = vor.u32 %v4549, %v4552
      %v4554 = vrot.slane %v4553, 4
      %v4556 = vshll.u32 %v4413, 16
      %v4558 = vrot.slane %v4556, 5
      %v4559 = vsel %vm1652, %v4554, %v4558
      %v4560 = vshrl.u32 %v4413, 16
      %v4562 = vrot.slane %v4560, 4
      %v4563 = vor.u32 %v4562, %v4558
      %v4564 = vrot.slane %v4563, 4
      %v4566 = vshll.u32 %v4423, 16
      %v4568 = vrot.slane %v4566, 5
      %v4569 = vsel %vm1652, %v4564, %v4568
      %v4571 = vshrl.u32 %v4414, 16
      %v4573 = vrot.slane %v4571, 4
      %v4574 = vshll.u32 %v4414, 16
      %v4576 = vrot.slane %v4574, 5
      %v4577 = vor.u32 %v4573, %v4576
      %v4578 = vrot.slane %v4577, 4
      %v4580 = vshll.u32 %v4415, 16
      %v4582 = vrot.slane %v4580, 5
      %v4583 = vsel %vm1652, %v4578, %v4582
      %v4584 = vshrl.u32 %v4415, 16
      %v4586 = vrot.slane %v4584, 4
      %v4587 = vor.u32 %v4586, %v4582
      %v4588 = vrot.slane %v4587, 4
      %v4590 = vshll.u32 %v4424, 16
      %v4592 = vrot.slane %v4590, 5
      %v4593 = vsel %vm1652, %v4588, %v4592
      %v4595 = vshrl.u32 %v4416, 16
      %v4597 = vrot.slane %v4595, 4
      %v4598 = vshll.u32 %v4416, 16
      %v4600 = vrot.slane %v4598, 5
      %v4601 = vor.u32 %v4597, %v4600
      %v4602 = vrot.slane %v4601, 4
      %v4604 = vshll.u32 %v4417, 16
      %v4606 = vrot.slane %v4604, 5
      %v4607 = vsel %vm1652, %v4602, %v4606
      %v4608 = vshrl.u32 %v4417, 16
      %v4610 = vrot.slane %v4608, 4
      %v4611 = vor.u32 %v4610, %v4606
      %v4612 = vrot.slane %v4611, 4
      %v4614 = vshll.u32 %v4425, 16
      %v4616 = vrot.slane %v4614, 5
      %v4617 = vsel %vm1652, %v4612, %v4616
      %v4618 = vld [vmem:[#allocation3] sm:$0xe]
      %v4619 = vld [vmem:[#allocation3 + $0xc] sm:$0xe]
      %v4620 = vld [vmem:[#allocation3 + $0x18] sm:$0xe]
      %v4621 = vld [vmem:[#allocation3 + $0x24] sm:$0xe]
      %v4622 = vld [vmem:[#allocation3 + $0x30] sm:$0xe]
      %v4623 = vld [vmem:[#allocation3 + $0x3c] sm:$0xe]
      %v4624 = vld [vmem:[#allocation3 + $0x48] sm:$0xe]
      %v4625 = vld [vmem:[#allocation3 + $0x54] sm:$0xe]
      %v4650 = vrot.slane %v4618, 5
      %v4651 = vrot.slane %v4650, 4
      %v4652 = vrot.slane %v4403, 5
      %v4653 = vsel %vm1935, %v4651, %v4652
      %v4654 = vrot.slane %v4652, 4
      %v4655 = vrot.slane %v4418, 5
      %v4656 = vsel %vm1935, %v4654, %v4655
      %v4657 = vrot.slane %v4619, 5
      %v4658 = vrot.slane %v4657, 4
      %v4659 = vrot.slane %v4405, 5
      %v4660 = vsel %vm1935, %v4658, %v4659
      %v4661 = vrot.slane %v4659, 4
      %v4662 = vrot.slane %v4419, 5
      %v4663 = vsel %vm1935, %v4661, %v4662
      %v4664 = vrot.slane %v4620, 5
      %v4665 = vrot.slane %v4664, 4
      %v4666 = vrot.slane %v4407, 5
      %v4667 = vsel %vm1935, %v4665, %v4666
      %v4668 = vrot.slane %v4666, 4
      %v4669 = vrot.slane %v4420, 5
      %v4670 = vsel %vm1935, %v4668, %v4669
      %v4671 = vrot.slane %v4621, 5
      %v4672 = vrot.slane %v4671, 4
      %v4673 = vrot.slane %v4409, 5
      %v4674 = vsel %vm1935, %v4672, %v4673
      %v4675 = vrot.slane %v4673, 4
      %v4676 = vrot.slane %v4421, 5
      %v4677 = vsel %vm1935, %v4675, %v4676
      %v4678 = vrot.slane %v4622, 5
      %v4679 = vrot.slane %v4678, 4
      %v4680 = vrot.slane %v4411, 5
      %v4681 = vsel %vm1935, %v4679, %v4680
      %v4682 = vrot.slane %v4680, 4
      %v4683 = vrot.slane %v4422, 5
      %v4684 = vsel %vm1935, %v4682, %v4683
      %v4685 = vrot.slane %v4623, 5
      %v4686 = vrot.slane %v4685, 4
      %v4687 = vrot.slane %v4413, 5
      %v4688 = vsel %vm1935, %v4686, %v4687
      %v4689 = vrot.slane %v4687, 4
      %v4690 = vrot.slane %v4423, 5
      %v4691 = vsel %vm1935, %v4689, %v4690
      %v4692 = vrot.slane %v4624, 5
      %v4693 = vrot.slane %v4692, 4
      %v4694 = vrot.slane %v4415, 5
      %v4695 = vsel %vm1935, %v4693, %v4694
      %v4696 = vrot.slane %v4694, 4
      %v4697 = vrot.slane %v4424, 5
      %v4698 = vsel %vm1935, %v4696, %v4697
      %v4699 = vrot.slane %v4625, 5
      %v4700 = vrot.slane %v4699, 4
      %v4701 = vrot.slane %v4417, 5
      %v4702 = vsel %vm1935, %v4700, %v4701
      %v4703 = vrot.slane %v4701, 4
      %v4704 = vrot.slane %v4425, 5
      %v4705 = vsel %vm1935, %v4703, %v4704
      %v4714 = vunpack.c.l.b16 %v4402
      %v4715 = vunpack.c.l.b16 %v4403
      %v4716 = vunpack.c.l.b16 %v4404
      %v4717 = vunpack.c.l.b16 %v4405
      %v4718 = vunpack.c.l.b16 %v4406
      %v4719 = vunpack.c.l.b16 %v4407
      %v4720 = vunpack.c.l.b16 %v4408
      %v4721 = vunpack.c.l.b16 %v4409
      %v4722 = vunpack.c.l.b16 %v4410
      %v4723 = vunpack.c.l.b16 %v4411
      %v4724 = vunpack.c.l.b16 %v4412
      %v4725 = vunpack.c.l.b16 %v4413
      %v4726 = vunpack.c.l.b16 %v4414
      %v4727 = vunpack.c.l.b16 %v4415
      %v4728 = vunpack.c.l.b16 %v4416
      %v4729 = vunpack.c.l.b16 %v4417
      %v4730 = vpack.c.b16 %v4715, %v4714
      %v4731 = vpack.c.b16 %v4717, %v4716
      %v4732 = vpack.c.b16 %v4719, %v4718
      %v4733 = vpack.c.b16 %v4721, %v4720
      %v4734 = vpack.c.b16 %v4723, %v4722
      %v4735 = vpack.c.b16 %v4725, %v4724
      %v4736 = vpack.c.b16 %v4727, %v4726
      %v4737 = vpack.c.b16 %v4729, %v4728
      %v4738 = vunpack.c.l.b16 %v4439
      %v4739 = vunpack.c.l.b16 %v4449
      %v4740 = vunpack.c.l.b16 %v4463
      %v4741 = vunpack.c.l.b16 %v4473
      %v4742 = vunpack.c.l.b16 %v4487
      %v4743 = vunpack.c.l.b16 %v4497
      %v4744 = vunpack.c.l.b16 %v4511
      %v4745 = vunpack.c.l.b16 %v4521
      %v4746 = vunpack.c.l.b16 %v4535
      %v4747 = vunpack.c.l.b16 %v4545
      %v4748 = vunpack.c.l.b16 %v4559
      %v4749 = vunpack.c.l.b16 %v4569
      %v4750 = vunpack.c.l.b16 %v4583
      %v4751 = vunpack.c.l.b16 %v4593
      %v4752 = vunpack.c.l.b16 %v4607
      %v4753 = vunpack.c.l.b16 %v4617
      %v4754 = vpack.c.b16 %v4739, %v4738
      %v4755 = vpack.c.b16 %v4741, %v4740
      %v4756 = vpack.c.b16 %v4743, %v4742
      %v4757 = vpack.c.b16 %v4745, %v4744
      %v4758 = vpack.c.b16 %v4747, %v4746
      %v4759 = vpack.c.b16 %v4749, %v4748
      %v4760 = vpack.c.b16 %v4751, %v4750
      %v4761 = vpack.c.b16 %v4753, %v4752
      %4762 = vrot.lane.b32.xlu0 %v4754, 8
      %v4763 = vpop.permute.xlu0 %4762
      %4764 = vrot.lane.b32.xlu0 %v4755, 8
      %v4765 = vpop.permute.xlu0 %4764
      %4766 = vrot.lane.b32.xlu0 %v4756, 8
      %v4767 = vpop.permute.xlu0 %4766
      %4768 = vrot.lane.b32.xlu0 %v4757, 8
      %v4769 = vpop.permute.xlu0 %4768
      %4770 = vrot.lane.b32.xlu0 %v4758, 8
      %v4771 = vpop.permute.xlu0 %4770
      %4772 = vrot.lane.b32.xlu0 %v4759, 8
      %v4773 = vpop.permute.xlu0 %4772
      %4774 = vrot.lane.b32.xlu0 %v4760, 8
      %v4775 = vpop.permute.xlu0 %4774
      %4776 = vrot.lane.b32.xlu0 %v4761, 8
      %v4777 = vpop.permute.xlu0 %4776
      %v4778 = vunpack.c.l.b16 %v4653
      %v4779 = vunpack.c.l.b16 %v4656
      %v4780 = vunpack.c.l.b16 %v4660
      %v4781 = vunpack.c.l.b16 %v4663
      %v4782 = vunpack.c.l.b16 %v4667
      %v4783 = vunpack.c.l.b16 %v4670
      %v4784 = vunpack.c.l.b16 %v4674
      %v4785 = vunpack.c.l.b16 %v4677
      %v4786 = vunpack.c.l.b16 %v4681
      %v4787 = vunpack.c.l.b16 %v4684
      %v4788 = vunpack.c.l.b16 %v4688
      %v4789 = vunpack.c.l.b16 %v4691
      %v4790 = vunpack.c.l.b16 %v4695
      %v4791 = vunpack.c.l.b16 %v4698
      %v4792 = vunpack.c.l.b16 %v4702
      %v4793 = vunpack.c.l.b16 %v4705
      %v4794 = vpack.c.b16 %v4779, %v4778
      %v4795 = vpack.c.b16 %v4781, %v4780
      %v4796 = vpack.c.b16 %v4783, %v4782
      %v4797 = vpack.c.b16 %v4785, %v4784
      %v4798 = vpack.c.b16 %v4787, %v4786
      %v4799 = vpack.c.b16 %v4789, %v4788
      %v4800 = vpack.c.b16 %v4791, %v4790
      %v4801 = vpack.c.b16 %v4793, %v4792
      %4802 = vrot.lane.b32.xlu0 %v4794, 16
      %v4803 = vpop.permute.xlu0 %4802
      %4804 = vrot.lane.b32.xlu0 %v4795, 16
      %v4805 = vpop.permute.xlu0 %4804
      %4806 = vrot.lane.b32.xlu0 %v4796, 16
      %v4807 = vpop.permute.xlu0 %4806
      %4808 = vrot.lane.b32.xlu0 %v4797, 16
      %v4809 = vpop.permute.xlu0 %4808
      %4810 = vrot.lane.b32.xlu0 %v4798, 16
      %v4811 = vpop.permute.xlu0 %4810
      %4812 = vrot.lane.b32.xlu0 %v4799, 16
      %v4813 = vpop.permute.xlu0 %4812
      %4814 = vrot.lane.b32.xlu0 %v4800, 16
      %v4815 = vpop.permute.xlu0 %4814
      %4816 = vrot.lane.b32.xlu0 %v4801, 16
      %v4817 = vpop.permute.xlu0 %4816
      %v4820 = vsel %vm2146, %v4730, %v4763
      %v4823 = vsel %vm2146, %v4731, %v4765
      %v4826 = vsel %vm2146, %v4732, %v4767
      %v4829 = vsel %vm2146, %v4733, %v4769
      %v4832 = vsel %vm2146, %v4734, %v4771
      %v4835 = vsel %vm2146, %v4735, %v4773
      %v4838 = vsel %vm2146, %v4736, %v4775
      %v4841 = vsel %vm2146, %v4737, %v4777
      %v4843 = vsel %vm2177, %v4820, %v4803
      %v4845 = vsel %vm2177, %v4823, %v4805
      %v4847 = vsel %vm2177, %v4826, %v4807
      %v4849 = vsel %vm2177, %v4829, %v4809
      %v4851 = vsel %vm2177, %v4832, %v4811
      %v4853 = vsel %vm2177, %v4835, %v4813
      %v4855 = vsel %vm2177, %v4838, %v4815
      %v4857 = vsel %vm2177, %v4841, %v4817
      %v4858 = vld [vmem:[%s8] sm:$0xf]
      %v4859 = vld [vmem:[%s8 + $0x4] sm:$0xf]
      %v4860 = vld [vmem:[%s8 + $0x8] sm:$0xf]
      %v4864 = vunpack.c.l.b16 %v4858
      %v4865 = vunpack.c.l.b16 %v4859
      %v4866 = vunpack.c.l.b16 %v4860
      %v4867 = vpack.c.b16 %v4865, %v4864
      %v4868 = vpack.c.b16 %v4866, %v4866
      %v4870 = vsel %vm2210, %v4843, 0
      %v4872 = vsel %vm2210, %v4845, 0
      %v4874 = vsel %vm2210, %v4847, 0
      %v4876 = vsel %vm2210, %v4849, 0
      %v4878 = vsel %vm2210, %v4851, 0
      %v4880 = vsel %vm2210, %v4853, 0
      %v4882 = vsel %vm2210, %v4855, 0
      %v4884 = vsel %vm2210, %v4857, 0
      %v4887 = vsel %vm2231, %v4868, 0
      %4889 = vmatprep.subr.bf16.mxu0 0
      %4890 = vmatpush1.bf16.msra.mxu0 %v4867
      %4891 = vmatprep.subr.bf16.mxu0 0
      %4892 = vmatpush1.bf16.msra.mxu0 %v4887
      %4893 = vmatprep.subr.bf16.mxu0 0
      %4894 = vmatpush1.bf16.msra.mxu0 0
      %4895 = vmatprep.subr.bf16.mxu0 0
      %4896 = vmatpush1.bf16.msra.mxu0 0
      %4897 = vmatprep.subr.bf16.mxu0 0
      %4898 = vmatpush1.bf16.msra.mxu0 0
      %4899 = vmatprep.subr.bf16.mxu0 0
      %4900 = vmatpush1.bf16.msra.mxu0 0
      %4901 = vmatprep.subr.bf16.mxu0 0
      %4902 = vmatpush1.bf16.msra.mxu0 0
      %4903 = vmatprep.subr.bf16.mxu0 0
      %4904 = vmatpush1.bf16.msra.mxu0 0
      %4905 = vmatprep.subr.bf16.mxu0 0
      %4906 = vmatpush1.bf16.msra.mxu0 0
      %4907 = vmatprep.subr.bf16.mxu0 0
      %4908 = vmatpush1.bf16.msra.mxu0 0
      %4909 = vmatprep.subr.bf16.mxu0 0
      %4910 = vmatpush1.bf16.msra.mxu0 0
      %4911 = vmatprep.subr.bf16.mxu0 0
      %4912 = vmatpush1.bf16.msra.mxu0 0
      %4913 = vmatprep.subr.bf16.mxu0 0
      %4914 = vmatpush1.bf16.msra.mxu0 0
      %4915 = vmatprep.subr.bf16.mxu0 0
      %4916 = vmatpush1.bf16.msra.mxu0 0
      %4917 = vmatprep.subr.bf16.mxu0 0
      %4918 = vmatpush1.bf16.msra.mxu0 0
      %4919 = vmatprep.subr.bf16.mxu0 0
      %4920 = vmatpush1.bf16.msra.mxu0 0
      %4921 = vmatprep.mubr.bf16.mxu0 0
      %4922 = vmatmul.mubr.bf16.gmra.mrb[0].mxu0 %v4870
      %v4923 = vpop.f32.mrb[0].mxu0
      %v4924 = vadd.f32 0.0, %v4923
      %v4925 = vpop.f32.mrb[0].mxu0
      %v4926 = vpop.f32.mrb[0].mxu0
      %v4927 = vadd.f32 0.0, %v4926
      %v4928 = vpop.f32.mrb[0].mxu0
      %4929 = vmatprep.mubr.bf16.mxu0 0
      %4930 = vmatmul.mubr.bf16.gmra.mrb[0].mxu0 %v4872
      %v4931 = vpop.f32.mrb[0].mxu0
      %v4932 = vadd.f32 0.0, %v4931
      %v4933 = vpop.f32.mrb[0].mxu0
      %v4934 = vpop.f32.mrb[0].mxu0
      %v4935 = vadd.f32 0.0, %v4934
      %v4936 = vpop.f32.mrb[0].mxu0
      %4937 = vmatprep.mubr.bf16.mxu0 0
      %4938 = vmatmul.mubr.bf16.gmra.mrb[0].mxu0 %v4874
      %v4939 = vpop.f32.mrb[0].mxu0
      %v4940 = vadd.f32 0.0, %v4939
      %v4941 = vpop.f32.mrb[0].mxu0
      %v4942 = vpop.f32.mrb[0].mxu0
      %v4943 = vadd.f32 0.0, %v4942
      %v4944 = vpop.f32.mrb[0].mxu0
      %4945 = vmatprep.mubr.bf16.mxu0 0
      %4946 = vmatmul.mubr.bf16.gmra.mrb[0].mxu0 %v4876
      %v4947 = vpop.f32.mrb[0].mxu0
      %v4948 = vadd.f32 0.0, %v4947
      %v4949 = vpop.f32.mrb[0].mxu0
      %v4950 = vpop.f32.mrb[0].mxu0
      %v4951 = vadd.f32 0.0, %v4950
      %v4952 = vpop.f32.mrb[0].mxu0
      %4953 = vmatprep.mubr.bf16.mxu0 0
      %4954 = vmatmul.mubr.bf16.gmra.mrb[0].mxu0 %v4878
      %v4955 = vpop.f32.mrb[0].mxu0
      %v4956 = vadd.f32 0.0, %v4955
      %v4957 = vpop.f32.mrb[0].mxu0
      %v4958 = vpop.f32.mrb[0].mxu0
      %v4959 = vadd.f32 0.0, %v4958
      %v4960 = vpop.f32.mrb[0].mxu0
      %4961 = vmatprep.mubr.bf16.mxu0 0
      %4962 = vmatmul.mubr.bf16.gmra.mrb[0].mxu0 %v4880
      %v4963 = vpop.f32.mrb[0].mxu0
      %v4964 = vadd.f32 0.0, %v4963
      %v4965 = vpop.f32.mrb[0].mxu0
      %v4966 = vpop.f32.mrb[0].mxu0
      %v4967 = vadd.f32 0.0, %v4966
      %v4968 = vpop.f32.mrb[0].mxu0
      %4969 = vmatprep.mubr.bf16.mxu0 0
      %4970 = vmatmul.mubr.bf16.gmra.mrb[0].mxu0 %v4882
      %v4971 = vpop.f32.mrb[0].mxu0
      %v4972 = vadd.f32 0.0, %v4971
      %v4973 = vpop.f32.mrb[0].mxu0
      %v4974 = vpop.f32.mrb[0].mxu0
      %v4975 = vadd.f32 0.0, %v4974
      %v4976 = vpop.f32.mrb[0].mxu0
      %4977 = vmatprep.mubr.bf16.mxu0 0
      %4978 = vmatmul.mubr.bf16.gmra.mrb[0].mxu0 %v4884
      %v4979 = vpop.f32.mrb[0].mxu0
      %v4980 = vadd.f32 0.0, %v4979
      %v4981 = vpop.f32.mrb[0].mxu0
      %v4982 = vpop.f32.mrb[0].mxu0
      %v4983 = vadd.f32 0.0, %v4982
      %v4984 = vpop.f32.mrb[0].mxu0
      %4985 = vdwg.mxu0
      %4986 = vst.msk [vmem:[#allocation4] sm:$0xff] %vm2146, %v4924
      %4987 = vst.msk [vmem:[#allocation4 + $0x8] sm:$0xff] %vm2146, %v4927
      %4988 = vst.msk [vmem:[#allocation4 + $0x10] sm:$0xff] %vm2146, %v4932
      %4989 = vst.msk [vmem:[#allocation4 + $0x18] sm:$0xff] %vm2146, %v4935
      %4990 = vst.msk [vmem:[#allocation4 + $0x20] sm:$0xff] %vm2146, %v4940
      %4991 = vst.msk [vmem:[#allocation4 + $0x28] sm:$0xff] %vm2146, %v4943
      %4992 = vst.msk [vmem:[#allocation4 + $0x30] sm:$0xff] %vm2146, %v4948
      %4993 = vst.msk [vmem:[#allocation4 + $0x38] sm:$0xff] %vm2146, %v4951
      %4994 = vst.msk [vmem:[#allocation4 + $0x40] sm:$0xff] %vm2146, %v4956
      %4995 = vst.msk [vmem:[#allocation4 + $0x48] sm:$0xff] %vm2146, %v4959
      %4996 = vst.msk [vmem:[#allocation4 + $0x50] sm:$0xff] %vm2146, %v4964
      %4997 = vst.msk [vmem:[#allocation4 + $0x58] sm:$0xff] %vm2146, %v4967
      %4998 = vst.msk [vmem:[#allocation4 + $0x60] sm:$0xff] %vm2146, %v4972
      %4999 = vst.msk [vmem:[#allocation4 + $0x68] sm:$0xff] %vm2146, %v4975
      %5000 = vst.msk [vmem:[#allocation4 + $0x70] sm:$0xff] %vm2146, %v4980
      %5001 = vst.msk [vmem:[#allocation4 + $0x78] sm:$0xff] %vm2146, %v4983
      %s5002 = scalar_lea.vmem [#allocation3], 12
      %v5003 = vld [vmem:[%s5002] sm:$0xf]
      %v5004 = vld [vmem:[%s5002 + $0x4] sm:$0xf]
      %v5005 = vld [vmem:[%s5002 + $0xc] sm:$0xf]
      %v5006 = vld [vmem:[%s5002 + $0x10] sm:$0xf]
      %v5007 = vld [vmem:[%s5002 + $0x18] sm:$0xf]
      %v5008 = vld [vmem:[%s5002 + $0x1c] sm:$0xf]
      %v5009 = vld [vmem:[%s5002 + $0x24] sm:$0xf]
      %v5010 = vld [vmem:[%s5002 + $0x28] sm:$0xf]
      %v5011 = vld [vmem:[%s5002 + $0x30] sm:$0xf]
      %v5012 = vld [vmem:[%s5002 + $0x34] sm:$0xf]
      %v5013 = vld [vmem:[%s5002 + $0x3c] sm:$0xf]
      %v5014 = vld [vmem:[%s5002 + $0x40] sm:$0xf]
      %v5015 = vld [vmem:[%s5002 + $0x48] sm:$0xf]
      %v5016 = vld [vmem:[%s5002 + $0x4c] sm:$0xf]
      %v5017 = vld [vmem:[%s5002 + $0x54] sm:$0xf]
      %v5018 = vld [vmem:[%s5002 + $0x58] sm:$0xf]
      %v5019 = vld [vmem:[%s5002 + $0x8] sm:$0x1]
      %v5020 = vld [vmem:[%s5002 + $0x14] sm:$0x1]
      %v5021 = vld [vmem:[%s5002 + $0x20] sm:$0x1]
      %v5022 = vld [vmem:[%s5002 + $0x2c] sm:$0x1]
      %v5023 = vld [vmem:[%s5002 + $0x38] sm:$0x1]
      %v5024 = vld [vmem:[%s5002 + $0x44] sm:$0x1]
      %v5025 = vld [vmem:[%s5002 + $0x50] sm:$0x1]
      %v5026 = vld [vmem:[%s5002 + $0x5c] sm:$0x1]
      %v5028 = vshrl.u32 %v5003, 16
      %v5030 = vrot.slane %v5028, 4
      %v5031 = vshll.u32 %v5003, 16
      %v5033 = vrot.slane %v5031, 5
      %v5034 = vor.u32 %v5030, %v5033
      %v5035 = vrot.slane %v5034, 4
      %v5037 = vshll.u32 %v5004, 16
      %v5039 = vrot.slane %v5037, 5
      %v5040 = vsel %vm1652, %v5035, %v5039
      %v5041 = vshrl.u32 %v5004, 16
      %v5043 = vrot.slane %v5041, 4
      %v5044 = vor.u32 %v5043, %v5039
      %v5045 = vrot.slane %v5044, 4
      %v5047 = vshll.u32 %v5019, 16
      %v5049 = vrot.slane %v5047, 5
      %v5050 = vsel %vm1652, %v5045, %v5049
      %v5052 = vshrl.u32 %v5005, 16
      %v5054 = vrot.slane %v5052, 4
      %v5055 = vshll.u32 %v5005, 16
      %v5057 = vrot.slane %v5055, 5
      %v5058 = vor.u32 %v5054, %v5057
      %v5059 = vrot.slane %v5058, 4
      %v5061 = vshll.u32 %v5006, 16
      %v5063 = vrot.slane %v5061, 5
      %v5064 = vsel %vm1652, %v5059, %v5063
      %v5065 = vshrl.u32 %v5006, 16
      %v5067 = vrot.slane %v5065, 4
      %v5068 = vor.u32 %v5067, %v5063
      %v5069 = vrot.slane %v5068, 4
      %v5071 = vshll.u32 %v5020, 16
      %v5073 = vrot.slane %v5071, 5
      %v5074 = vsel %vm1652, %v5069, %v5073
      %v5076 = vshrl.u32 %v5007, 16
      %v5078 = vrot.slane %v5076, 4
      %v5079 = vshll.u32 %v5007, 16
      %v5081 = vrot.slane %v5079, 5
      %v5082 = vor.u32 %v5078, %v5081
      %v5083 = vrot.slane %v5082, 4
      %v5085 = vshll.u32 %v5008, 16
      %v5087 = vrot.slane %v5085, 5
      %v5088 = vsel %vm1652, %v5083, %v5087
      %v5089 = vshrl.u32 %v5008, 16
      %v5091 = vrot.slane %v5089, 4
      %v5092 = vor.u32 %v5091, %v5087
      %v5093 = vrot.slane %v5092, 4
      %v5095 = vshll.u32 %v5021, 16
      %v5097 = vrot.slane %v5095, 5
      %v5098 = vsel %vm1652, %v5093, %v5097
      %v5100 = vshrl.u32 %v5009, 16
      %v5102 = vrot.slane %v5100, 4
      %v5103 = vshll.u32 %v5009, 16
      %v5105 = vrot.slane %v5103, 5
      %v5106 = vor.u32 %v5102, %v5105
      %v5107 = vrot.slane %v5106, 4
      %v5109 = vshll.u32 %v5010, 16
      %v5111 = vrot.slane %v5109, 5
      %v5112 = vsel %vm1652, %v5107, %v5111
      %v5113 = vshrl.u32 %v5010, 16
      %v5115 = vrot.slane %v5113, 4
      %v5116 = vor.u32 %v5115, %v5111
      %v5117 = vrot.slane %v5116, 4
      %v5119 = vshll.u32 %v5022, 16
      %v5121 = vrot.slane %v5119, 5
      %v5122 = vsel %vm1652, %v5117, %v5121
      %v5124 = vshrl.u32 %v5011, 16
      %v5126 = vrot.slane %v5124, 4
      %v5127 = vshll.u32 %v5011, 16
      %v5129 = vrot.slane %v5127, 5
      %v5130 = vor.u32 %v5126, %v5129
      %v5131 = vrot.slane %v5130, 4
      %v5133 = vshll.u32 %v5012, 16
      %v5135 = vrot.slane %v5133, 5
      %v5136 = vsel %vm1652, %v5131, %v5135
      %v5137 = vshrl.u32 %v5012, 16
      %v5139 = vrot.slane %v5137, 4
      %v5140 = vor.u32 %v5139, %v5135
      %v5141 = vrot.slane %v5140, 4
      %v5143 = vshll.u32 %v5023, 16
      %v5145 = vrot.slane %v5143, 5
      %v5146 = vsel %vm1652, %v5141, %v5145
      %v5148 = vshrl.u32 %v5013, 16
      %v5150 = vrot.slane %v5148, 4
      %v5151 = vshll.u32 %v5013, 16
      %v5153 = vrot.slane %v5151, 5
      %v5154 = vor.u32 %v5150, %v5153
      %v5155 = vrot.slane %v5154, 4
      %v5157 = vshll.u32 %v5014, 16
      %v5159 = vrot.slane %v5157, 5
      %v5160 = vsel %vm1652, %v5155, %v5159
      %v5161 = vshrl.u32 %v5014, 16
      %v5163 = vrot.slane %v5161, 4
      %v5164 = vor.u32 %v5163, %v5159
      %v5165 = vrot.slane %v5164, 4
      %v5167 = vshll.u32 %v5024, 16
      %v5169 = vrot.slane %v5167, 5
      %v5170 = vsel %vm1652, %v5165, %v5169
      %v5172 = vshrl.u32 %v5015, 16
      %v5174 = vrot.slane %v5172, 4
      %v5175 = vshll.u32 %v5015, 16
      %v5177 = vrot.slane %v5175, 5
      %v5178 = vor.u32 %v5174, %v5177
      %v5179 = vrot.slane %v5178, 4
      %v5181 = vshll.u32 %v5016, 16
      %v5183 = vrot.slane %v5181, 5
      %v5184 = vsel %vm1652, %v5179, %v5183
      %v5185 = vshrl.u32 %v5016, 16
      %v5187 = vrot.slane %v5185, 4
      %v5188 = vor.u32 %v5187, %v5183
      %v5189 = vrot.slane %v5188, 4
      %v5191 = vshll.u32 %v5025, 16
      %v5193 = vrot.slane %v5191, 5
      %v5194 = vsel %vm1652, %v5189, %v5193
      %v5196 = vshrl.u32 %v5017, 16
      %v5198 = vrot.slane %v5196, 4
      %v5199 = vshll.u32 %v5017, 16
      %v5201 = vrot.slane %v5199, 5
      %v5202 = vor.u32 %v5198, %v5201
      %v5203 = vrot.slane %v5202, 4
      %v5205 = vshll.u32 %v5018, 16
      %v5207 = vrot.slane %v5205, 5
      %v5208 = vsel %vm1652, %v5203, %v5207
      %v5209 = vshrl.u32 %v5018, 16
      %v5211 = vrot.slane %v5209, 4
      %v5212 = vor.u32 %v5211, %v5207
      %v5213 = vrot.slane %v5212, 4
      %v5215 = vshll.u32 %v5026, 16
      %v5217 = vrot.slane %v5215, 5
      %v5218 = vsel %vm1652, %v5213, %v5217
      %v5219 = vld [vmem:[%s5002] sm:$0xe]
      %v5220 = vld [vmem:[%s5002 + $0xc] sm:$0xe]
      %v5221 = vld [vmem:[%s5002 + $0x18] sm:$0xe]
      %v5222 = vld [vmem:[%s5002 + $0x24] sm:$0xe]
      %v5223 = vld [vmem:[%s5002 + $0x30] sm:$0xe]
      %v5224 = vld [vmem:[%s5002 + $0x3c] sm:$0xe]
      %v5225 = vld [vmem:[%s5002 + $0x48] sm:$0xe]
      %v5226 = vld [vmem:[%s5002 + $0x54] sm:$0xe]
      %v5251 = vrot.slane %v5219, 5
      %v5252 = vrot.slane %v5251, 4
      %v5253 = vrot.slane %v5004, 5
      %v5254 = vsel %vm1935, %v5252, %v5253
      %v5255 = vrot.slane %v5253, 4
      %v5256 = vrot.slane %v5019, 5
      %v5257 = vsel %vm1935, %v5255, %v5256
      %v5258 = vrot.slane %v5220, 5
      %v5259 = vrot.slane %v5258, 4
      %v5260 = vrot.slane %v5006, 5
      %v5261 = vsel %vm1935, %v5259, %v5260
      %v5262 = vrot.slane %v5260, 4
      %v5263 = vrot.slane %v5020, 5
      %v5264 = vsel %vm1935, %v5262, %v5263
      %v5265 = vrot.slane %v5221, 5
      %v5266 = vrot.slane %v5265, 4
      %v5267 = vrot.slane %v5008, 5
      %v5268 = vsel %vm1935, %v5266, %v5267
      %v5269 = vrot.slane %v5267, 4
      %v5270 = vrot.slane %v5021, 5
      %v5271 = vsel %vm1935, %v5269, %v5270
      %v5272 = vrot.slane %v5222, 5
      %v5273 = vrot.slane %v5272, 4
      %v5274 = vrot.slane %v5010, 5
      %v5275 = vsel %vm1935, %v5273, %v5274
      %v5276 = vrot.slane %v5274, 4
      %v5277 = vrot.slane %v5022, 5
      %v5278 = vsel %vm1935, %v5276, %v5277
      %v5279 = vrot.slane %v5223, 5
      %v5280 = vrot.slane %v5279, 4
      %v5281 = vrot.slane %v5012, 5
      %v5282 = vsel %vm1935, %v5280, %v5281
      %v5283 = vrot.slane %v5281, 4
      %v5284 = vrot.slane %v5023, 5
      %v5285 = vsel %vm1935, %v5283, %v5284
      %v5286 = vrot.slane %v5224, 5
      %v5287 = vrot.slane %v5286, 4
      %v5288 = vrot.slane %v5014, 5
      %v5289 = vsel %vm1935, %v5287, %v5288
      %v5290 = vrot.slane %v5288, 4
      %v5291 = vrot.slane %v5024, 5
      %v5292 = vsel %vm1935, %v5290, %v5291
      %v5293 = vrot.slane %v5225, 5
      %v5294 = vrot.slane %v5293, 4
      %v5295 = vrot.slane %v5016, 5
      %v5296 = vsel %vm1935, %v5294, %v5295
      %v5297 = vrot.slane %v5295, 4
      %v5298 = vrot.slane %v5025, 5
      %v5299 = vsel %vm1935, %v5297, %v5298
      %v5300 = vrot.slane %v5226, 5
      %v5301 = vrot.slane %v5300, 4
      %v5302 = vrot.slane %v5018, 5
      %v5303 = vsel %vm1935, %v5301, %v5302
      %v5304 = vrot.slane %v5302, 4
      %v5305 = vrot.slane %v5026, 5
      %v5306 = vsel %vm1935, %v5304, %v5305
      %v5315 = vunpack.c.l.b16 %v5003
      %v5316 = vunpack.c.l.b16 %v5004
      %v5317 = vunpack.c.l.b16 %v5005
      %v5318 = vunpack.c.l.b16 %v5006
      %v5319 = vunpack.c.l.b16 %v5007
      %v5320 = vunpack.c.l.b16 %v5008
      %v5321 = vunpack.c.l.b16 %v5009
      %v5322 = vunpack.c.l.b16 %v5010
      %v5323 = vunpack.c.l.b16 %v5011
      %v5324 = vunpack.c.l.b16 %v5012
      %v5325 = vunpack.c.l.b16 %v5013
      %v5326 = vunpack.c.l.b16 %v5014
      %v5327 = vunpack.c.l.b16 %v5015
      %v5328 = vunpack.c.l.b16 %v5016
      %v5329 = vunpack.c.l.b16 %v5017
      %v5330 = vunpack.c.l.b16 %v5018
      %v5331 = vpack.c.b16 %v5316, %v5315
      %v5332 = vpack.c.b16 %v5318, %v5317
      %v5333 = vpack.c.b16 %v5320, %v5319
      %v5334 = vpack.c.b16 %v5322, %v5321
      %v5335 = vpack.c.b16 %v5324, %v5323
      %v5336 = vpack.c.b16 %v5326, %v5325
      %v5337 = vpack.c.b16 %v5328, %v5327
      %v5338 = vpack.c.b16 %v5330, %v5329
      %v5339 = vunpack.c.l.b16 %v5040
      %v5340 = vunpack.c.l.b16 %v5050
      %v5341 = vunpack.c.l.b16 %v5064
      %v5342 = vunpack.c.l.b16 %v5074
      %v5343 = vunpack.c.l.b16 %v5088
      %v5344 = vunpack.c.l.b16 %v5098
      %v5345 = vunpack.c.l.b16 %v5112
      %v5346 = vunpack.c.l.b16 %v5122
      %v5347 = vunpack.c.l.b16 %v5136
      %v5348 = vunpack.c.l.b16 %v5146
      %v5349 = vunpack.c.l.b16 %v5160
      %v5350 = vunpack.c.l.b16 %v5170
      %v5351 = vunpack.c.l.b16 %v5184
      %v5352 = vunpack.c.l.b16 %v5194
      %v5353 = vunpack.c.l.b16 %v5208
      %v5354 = vunpack.c.l.b16 %v5218
      %v5355 = vpack.c.b16 %v5340, %v5339
      %v5356 = vpack.c.b16 %v5342, %v5341
      %v5357 = vpack.c.b16 %v5344, %v5343
      %v5358 = vpack.c.b16 %v5346, %v5345
      %v5359 = vpack.c.b16 %v5348, %v5347
      %v5360 = vpack.c.b16 %v5350, %v5349
      %v5361 = vpack.c.b16 %v5352, %v5351
      %v5362 = vpack.c.b16 %v5354, %v5353
      %5363 = vrot.lane.b32.xlu0 %v5355, 8
      %v5364 = vpop.permute.xlu0 %5363
      %5365 = vrot.lane.b32.xlu0 %v5356, 8
      %v5366 = vpop.permute.xlu0 %5365
      %5367 = vrot.lane.b32.xlu0 %v5357, 8
      %v5368 = vpop.permute.xlu0 %5367
      %5369 = vrot.lane.b32.xlu0 %v5358, 8
      %v5370 = vpop.permute.xlu0 %5369
      %5371 = vrot.lane.b32.xlu0 %v5359, 8
      %v5372 = vpop.permute.xlu0 %5371
      %5373 = vrot.lane.b32.xlu0 %v5360, 8
      %v5374 = vpop.permute.xlu0 %5373
      %5375 = vrot.lane.b32.xlu0 %v5361, 8
      %v5376 = vpop.permute.xlu0 %5375
      %5377 = vrot.lane.b32.xlu0 %v5362, 8
      %v5378 = vpop.permute.xlu0 %5377
      %v5379 = vunpack.c.l.b16 %v5254
      %v5380 = vunpack.c.l.b16 %v5257
      %v5381 = vunpack.c.l.b16 %v5261
      %v5382 = vunpack.c.l.b16 %v5264
      %v5383 = vunpack.c.l.b16 %v5268
      %v5384 = vunpack.c.l.b16 %v5271
      %v5385 = vunpack.c.l.b16 %v5275
      %v5386 = vunpack.c.l.b16 %v5278
      %v5387 = vunpack.c.l.b16 %v5282
      %v5388 = vunpack.c.l.b16 %v5285
      %v5389 = vunpack.c.l.b16 %v5289
      %v5390 = vunpack.c.l.b16 %v5292
      %v5391 = vunpack.c.l.b16 %v5296
      %v5392 = vunpack.c.l.b16 %v5299
      %v5393 = vunpack.c.l.b16 %v5303
      %v5394 = vunpack.c.l.b16 %v5306
      %v5395 = vpack.c.b16 %v5380, %v5379
      %v5396 = vpack.c.b16 %v5382, %v5381
      %v5397 = vpack.c.b16 %v5384, %v5383
      %v5398 = vpack.c.b16 %v5386, %v5385
      %v5399 = vpack.c.b16 %v5388, %v5387
      %v5400 = vpack.c.b16 %v5390, %v5389
      %v5401 = vpack.c.b16 %v5392, %v5391
      %v5402 = vpack.c.b16 %v5394, %v5393
      %5403 = vrot.lane.b32.xlu0 %v5395, 16
      %v5404 = vpop.permute.xlu0 %5403
      %5405 = vrot.lane.b32.xlu0 %v5396, 16
      %v5406 = vpop.permute.xlu0 %5405
      %5407 = vrot.lane.b32.xlu0 %v5397, 16
      %v5408 = vpop.permute.xlu0 %5407
      %5409 = vrot.lane.b32.xlu0 %v5398, 16
      %v5410 = vpop.permute.xlu0 %5409
      %5411 = vrot.lane.b32.xlu0 %v5399, 16
      %v5412 = vpop.permute.xlu0 %5411
      %5413 = vrot.lane.b32.xlu0 %v5400, 16
      %v5414 = vpop.permute.xlu0 %5413
      %5415 = vrot.lane.b32.xlu0 %v5401, 16
      %v5416 = vpop.permute.xlu0 %5415
      %5417 = vrot.lane.b32.xlu0 %v5402, 16
      %v5418 = vpop.permute.xlu0 %5417
      %v5421 = vsel %vm2146, %v5331, %v5364
      %v5424 = vsel %vm2146, %v5332, %v5366
      %v5427 = vsel %vm2146, %v5333, %v5368
      %v5430 = vsel %vm2146, %v5334, %v5370
      %v5433 = vsel %vm2146, %v5335, %v5372
      %v5436 = vsel %vm2146, %v5336, %v5374
      %v5439 = vsel %vm2146, %v5337, %v5376
      %v5442 = vsel %vm2146, %v5338, %v5378
      %v5444 = vsel %vm2177, %v5421, %v5404
      %v5446 = vsel %vm2177, %v5424, %v5406
      %v5448 = vsel %vm2177, %v5427, %v5408
      %v5450 = vsel %vm2177, %v5430, %v5410
      %v5452 = vsel %vm2177, %v5433, %v5412
      %v5454 = vsel %vm2177, %v5436, %v5414
      %v5456 = vsel %vm2177, %v5439, %v5416
      %v5458 = vsel %vm2177, %v5442, %v5418
      %s5459 = scalar_lea.vmem %s8, 12
      %v5460 = vld [vmem:[%s5459] sm:$0xf]
      %v5461 = vld [vmem:[%s5459 + $0x4] sm:$0xf]
      %v5462 = vld [vmem:[%s5459 + $0x8] sm:$0xf]
      %v5466 = vunpack.c.l.b16 %v5460
      %v5467 = vunpack.c.l.b16 %v5461
      %v5468 = vunpack.c.l.b16 %v5462
      %v5469 = vpack.c.b16 %v5467, %v5466
      %v5470 = vpack.c.b16 %v5468, %v5468
      %v5472 = vsel %vm2210, %v5444, 0
      %v5474 = vsel %vm2210, %v5446, 0
      %v5476 = vsel %vm2210, %v5448, 0
      %v5478 = vsel %vm2210, %v5450, 0
      %v5480 = vsel %vm2210, %v5452, 0
      %v5482 = vsel %vm2210, %v5454, 0
      %v5484 = vsel %vm2210, %v5456, 0
      %v5486 = vsel %vm2210, %v5458, 0
      %v5489 = vsel %vm2231, %v5470, 0
      %5491 = vmatprep.subr.bf16.mxu0 0
      %5492 = vmatpush1.bf16.msra.mxu0 %v5469
      %5493 = vmatprep.subr.bf16.mxu0 0
      %5494 = vmatpush1.bf16.msra.mxu0 %v5489
      %5495 = vmatprep.subr.bf16.mxu0 0
      %5496 = vmatpush1.bf16.msra.mxu0 0
      %5497 = vmatprep.subr.bf16.mxu0 0
      %5498 = vmatpush1.bf16.msra.mxu0 0
      %5499 = vmatprep.subr.bf16.mxu0 0
      %5500 = vmatpush1.bf16.msra.mxu0 0
      %5501 = vmatprep.subr.bf16.mxu0 0
      %5502 = vmatpush1.bf16.msra.mxu0 0
      %5503 = vmatprep.subr.bf16.mxu0 0
      %5504 = vmatpush1.bf16.msra.mxu0 0
      %5505 = vmatprep.subr.bf16.mxu0 0
      %5506 = vmatpush1.bf16.msra.mxu0 0
      %5507 = vmatprep.subr.bf16.mxu0 0
      %5508 = vmatpush1.bf16.msra.mxu0 0
      %5509 = vmatprep.subr.bf16.mxu0 0
      %5510 = vmatpush1.bf16.msra.mxu0 0
      %5511 = vmatprep.subr.bf16.mxu0 0
      %5512 = vmatpush1.bf16.msra.mxu0 0
      %5513 = vmatprep.subr.bf16.mxu0 0
      %5514 = vmatpush1.bf16.msra.mxu0 0
      %5515 = vmatprep.subr.bf16.mxu0 0
      %5516 = vmatpush1.bf16.msra.mxu0 0
      %5517 = vmatprep.subr.bf16.mxu0 0
      %5518 = vmatpush1.bf16.msra.mxu0 0
      %5519 = vmatprep.subr.bf16.mxu0 0
      %5520 = vmatpush1.bf16.msra.mxu0 0
      %5521 = vmatprep.subr.bf16.mxu0 0
      %5522 = vmatpush1.bf16.msra.mxu0 0
      %5523 = vmatprep.mubr.bf16.mxu0 0
      %5524 = vmatmul.mubr.bf16.gmra.mrb[0].mxu0 %v5472
      %v5525 = vpop.f32.mrb[0].mxu0
      %v5526 = vadd.f32 0.0, %v5525
      %v5527 = vpop.f32.mrb[0].mxu0
      %v5528 = vpop.f32.mrb[0].mxu0
      %v5529 = vadd.f32 0.0, %v5528
      %v5530 = vpop.f32.mrb[0].mxu0
      %5531 = vmatprep.mubr.bf16.mxu0 0
      %5532 = vmatmul.mubr.bf16.gmra.mrb[0].mxu0 %v5474
      %v5533 = vpop.f32.mrb[0].mxu0
      %v5534 = vadd.f32 0.0, %v5533
      %v5535 = vpop.f32.mrb[0].mxu0
      %v5536 = vpop.f32.mrb[0].mxu0
      %v5537 = vadd.f32 0.0, %v5536
      %v5538 = vpop.f32.mrb[0].mxu0
      %5539 = vmatprep.mubr.bf16.mxu0 0
      %5540 = vmatmul.mubr.bf16.gmra.mrb[0].mxu0 %v5476
      %v5541 = vpop.f32.mrb[0].mxu0
      %v5542 = vadd.f32 0.0, %v5541
      %v5543 = vpop.f32.mrb[0].mxu0
      %v5544 = vpop.f32.mrb[0].mxu0
      %v5545 = vadd.f32 0.0, %v5544
      %v5546 = vpop.f32.mrb[0].mxu0
      %5547 = vmatprep.mubr.bf16.mxu0 0
      %5548 = vmatmul.mubr.bf16.gmra.mrb[0].mxu0 %v5478
      %v5549 = vpop.f32.mrb[0].mxu0
      %v5550 = vadd.f32 0.0, %v5549
      %v5551 = vpop.f32.mrb[0].mxu0
      %v5552 = vpop.f32.mrb[0].mxu0
      %v5553 = vadd.f32 0.0, %v5552
      %v5554 = vpop.f32.mrb[0].mxu0
      %5555 = vmatprep.mubr.bf16.mxu0 0
      %5556 = vmatmul.mubr.bf16.gmra.mrb[0].mxu0 %v5480
      %v5557 = vpop.f32.mrb[0].mxu0
      %v5558 = vadd.f32 0.0, %v5557
      %v5559 = vpop.f32.mrb[0].mxu0
      %v5560 = vpop.f32.mrb[0].mxu0
      %v5561 = vadd.f32 0.0, %v5560
      %v5562 = vpop.f32.mrb[0].mxu0
      %5563 = vmatprep.mubr.bf16.mxu0 0
      %5564 = vmatmul.mubr.bf16.gmra.mrb[0].mxu0 %v5482
      %v5565 = vpop.f32.mrb[0].mxu0
      %v5566 = vadd.f32 0.0, %v5565
      %v5567 = vpop.f32.mrb[0].mxu0
      %v5568 = vpop.f32.mrb[0].mxu0
      %v5569 = vadd.f32 0.0, %v5568
      %v5570 = vpop.f32.mrb[0].mxu0
      %5571 = vmatprep.mubr.bf16.mxu0 0
      %5572 = vmatmul.mubr.bf16.gmra.mrb[0].mxu0 %v5484
      %v5573 = vpop.f32.mrb[0].mxu0
      %v5574 = vadd.f32 0.0, %v5573
      %v5575 = vpop.f32.mrb[0].mxu0
      %v5576 = vpop.f32.mrb[0].mxu0
      %v5577 = vadd.f32 0.0, %v5576
      %v5578 = vpop.f32.mrb[0].mxu0
      %5579 = vmatprep.mubr.bf16.mxu0 0
      %5580 = vmatmul.mubr.bf16.gmra.mrb[0].mxu0 %v5486
      %v5581 = vpop.f32.mrb[0].mxu0
      %v5582 = vadd.f32 0.0, %v5581
      %v5583 = vpop.f32.mrb[0].mxu0
      %v5584 = vpop.f32.mrb[0].mxu0
      %v5585 = vadd.f32 0.0, %v5584
      %v5586 = vpop.f32.mrb[0].mxu0
      %5587 = vdwg.mxu0
      %v5588 = vld [vmem:[#allocation4] sm:$0xff]
      %v5589 = vld [vmem:[#allocation4 + $0x8] sm:$0xff]
      %v5590 = vld [vmem:[#allocation4 + $0x10] sm:$0xff]
      %v5591 = vld [vmem:[#allocation4 + $0x18] sm:$0xff]
      %v5592 = vld [vmem:[#allocation4 + $0x20] sm:$0xff]
      %v5593 = vld [vmem:[#allocation4 + $0x28] sm:$0xff]
      %v5594 = vld [vmem:[#allocation4 + $0x30] sm:$0xff]
      %v5595 = vld [vmem:[#allocation4 + $0x38] sm:$0xff]
      %v5596 = vld [vmem:[#allocation4 + $0x40] sm:$0xff]
      %v5597 = vld [vmem:[#allocation4 + $0x48] sm:$0xff]
      %v5598 = vld [vmem:[#allocation4 + $0x50] sm:$0xff]
      %v5599 = vld [vmem:[#allocation4 + $0x58] sm:$0xff]
      %v5600 = vld [vmem:[#allocation4 + $0x60] sm:$0xff]
      %v5601 = vld [vmem:[#allocation4 + $0x68] sm:$0xff]
      %v5602 = vld [vmem:[#allocation4 + $0x70] sm:$0xff]
      %v5603 = vld [vmem:[#allocation4 + $0x78] sm:$0xff]
      %v5604 = vadd.f32 %v5588, %v5526
      %v5605 = vadd.f32 %v5589, %v5529
      %v5606 = vadd.f32 %v5590, %v5534
      %v5607 = vadd.f32 %v5591, %v5537
      %v5608 = vadd.f32 %v5592, %v5542
      %v5609 = vadd.f32 %v5593, %v5545
      %v5610 = vadd.f32 %v5594, %v5550
      %v5611 = vadd.f32 %v5595, %v5553
      %v5612 = vadd.f32 %v5596, %v5558
      %v5613 = vadd.f32 %v5597, %v5561
      %v5614 = vadd.f32 %v5598, %v5566
      %v5615 = vadd.f32 %v5599, %v5569
      %v5616 = vadd.f32 %v5600, %v5574
      %v5617 = vadd.f32 %v5601, %v5577
      %v5618 = vadd.f32 %v5602, %v5582
      %v5619 = vadd.f32 %v5603, %v5585
      %5620 = vst.msk [vmem:[#allocation4] sm:$0xff] %vm2146, %v5604
      %5621 = vst.msk [vmem:[#allocation4 + $0x8] sm:$0xff] %vm2146, %v5605
      %5622 = vst.msk [vmem:[#allocation4 + $0x10] sm:$0xff] %vm2146, %v5606
      %5623 = vst.msk [vmem:[#allocation4 + $0x18] sm:$0xff] %vm2146, %v5607
      %5624 = vst.msk [vmem:[#allocation4 + $0x20] sm:$0xff] %vm2146, %v5608
      %5625 = vst.msk [vmem:[#allocation4 + $0x28] sm:$0xff] %vm2146, %v5609
      %5626 = vst.msk [vmem:[#allocation4 + $0x30] sm:$0xff] %vm2146, %v5610
      %5627 = vst.msk [vmem:[#allocation4 + $0x38] sm:$0xff] %vm2146, %v5611
      %5628 = vst.msk [vmem:[#allocation4 + $0x40] sm:$0xff] %vm2146, %v5612
      %5629 = vst.msk [vmem:[#allocation4 + $0x48] sm:$0xff] %vm2146, %v5613
      %5630 = vst.msk [vmem:[#allocation4 + $0x50] sm:$0xff] %vm2146, %v5614
      %5631 = vst.msk [vmem:[#allocation4 + $0x58] sm:$0xff] %vm2146, %v5615
      %5632 = vst.msk [vmem:[#allocation4 + $0x60] sm:$0xff] %vm2146, %v5616
      %5633 = vst.msk [vmem:[#allocation4 + $0x68] sm:$0xff] %vm2146, %v5617
      %5634 = vst.msk [vmem:[#allocation4 + $0x70] sm:$0xff] %vm2146, %v5618
      %5635 = vst.msk [vmem:[#allocation4 + $0x78] sm:$0xff] %vm2146, %v5619
      %s5636 = scalar_lea.vmem [#allocation3], 24
      %v5637 = vld [vmem:[%s5636] sm:$0xf]
      %v5638 = vld [vmem:[%s5636 + $0x4] sm:$0xf]
      %v5639 = vld [vmem:[%s5636 + $0xc] sm:$0xf]
      %v5640 = vld [vmem:[%s5636 + $0x10] sm:$0xf]
      %v5641 = vld [vmem:[%s5636 + $0x18] sm:$0xf]
      %v5642 = vld [vmem:[%s5636 + $0x1c] sm:$0xf]
      %v5643 = vld [vmem:[%s5636 + $0x24] sm:$0xf]
      %v5644 = vld [vmem:[%s5636 + $0x28] sm:$0xf]
      %v5645 = vld [vmem:[%s5636 + $0x30] sm:$0xf]
      %v5646 = vld [vmem:[%s5636 + $0x34] sm:$0xf]
      %v5647 = vld [vmem:[%s5636 + $0x3c] sm:$0xf]
      %v5648 = vld [vmem:[%s5636 + $0x40] sm:$0xf]
      %v5649 = vld [vmem:[%s5636 + $0x48] sm:$0xf]
      %v5650 = vld [vmem:[%s5636 + $0x4c] sm:$0xf]
      %v5651 = vld [vmem:[%s5636 + $0x54] sm:$0xf]
      %v5652 = vld [vmem:[%s5636 + $0x58] sm:$0xf]
      %v5653 = vld [vmem:[%s5636 + $0x8] sm:$0x1]
      %v5654 = vld [vmem:[%s5636 + $0x14] sm:$0x1]
      %v5655 = vld [vmem:[%s5636 + $0x20] sm:$0x1]
      %v5656 = vld [vmem:[%s5636 + $0x2c] sm:$0x1]
      %v5657 = vld [vmem:[%s5636 + $0x38] sm:$0x1]
      %v5658 = vld [vmem:[%s5636 + $0x44] sm:$0x1]
      %v5659 = vld [vmem:[%s5636 + $0x50] sm:$0x1]
      %v5660 = vld [vmem:[%s5636 + $0x5c] sm:$0x1]
      %v5662 = vshrl.u32 %v5637, 16
      %v5664 = vrot.slane %v5662, 4
      %v5665 = vshll.u32 %v5637, 16
      %v5667 = vrot.slane %v5665, 5
      %v5668 = vor.u32 %v5664, %v5667
      %v5669 = vrot.slane %v5668, 4
      %v5671 = vshll.u32 %v5638, 16
      %v5673 = vrot.slane %v5671, 5
      %v5674 = vsel %vm1652, %v5669, %v5673
      %v5675 = vshrl.u32 %v5638, 16
      %v5677 = vrot.slane %v5675, 4
      %v5678 = vor.u32 %v5677, %v5673
      %v5679 = vrot.slane %v5678, 4
      %v5681 = vshll.u32 %v5653, 16
      %v5683 = vrot.slane %v5681, 5
      %v5684 = vsel %vm1652, %v5679, %v5683
      %v5686 = vshrl.u32 %v5639, 16
      %v5688 = vrot.slane %v5686, 4
      %v5689 = vshll.u32 %v5639, 16
      %v5691 = vrot.slane %v5689, 5
      %v5692 = vor.u32 %v5688, %v5691
      %v5693 = vrot.slane %v5692, 4
      %v5695 = vshll.u32 %v5640, 16
      %v5697 = vrot.slane %v5695, 5
      %v5698 = vsel %vm1652, %v5693, %v5697
      %v5699 = vshrl.u32 %v5640, 16
      %v5701 = vrot.slane %v5699, 4
      %v5702 = vor.u32 %v5701, %v5697
      %v5703 = vrot.slane %v5702, 4
      %v5705 = vshll.u32 %v5654, 16
      %v5707 = vrot.slane %v5705, 5
      %v5708 = vsel %vm1652, %v5703, %v5707
      %v5710 = vshrl.u32 %v5641, 16
      %v5712 = vrot.slane %v5710, 4
      %v5713 = vshll.u32 %v5641, 16
      %v5715 = vrot.slane %v5713, 5
      %v5716 = vor.u32 %v5712, %v5715
      %v5717 = vrot.slane %v5716, 4
      %v5719 = vshll.u32 %v5642, 16
      %v5721 = vrot.slane %v5719, 5
      %v5722 = vsel %vm1652, %v5717, %v5721
      %v5723 = vshrl.u32 %v5642, 16
      %v5725 = vrot.slane %v5723, 4
      %v5726 = vor.u32 %v5725, %v5721
      %v5727 = vrot.slane %v5726, 4
      %v5729 = vshll.u32 %v5655, 16
      %v5731 = vrot.slane %v5729, 5
      %v5732 = vsel %vm1652, %v5727, %v5731
      %v5734 = vshrl.u32 %v5643, 16
      %v5736 = vrot.slane %v5734, 4
      %v5737 = vshll.u32 %v5643, 16
      %v5739 = vrot.slane %v5737, 5
      %v5740 = vor.u32 %v5736, %v5739
      %v5741 = vrot.slane %v5740, 4
      %v5743 = vshll.u32 %v5644, 16
      %v5745 = vrot.slane %v5743, 5
      %v5746 = vsel %vm1652, %v5741, %v5745
      %v5747 = vshrl.u32 %v5644, 16
      %v5749 = vrot.slane %v5747, 4
      %v5750 = vor.u32 %v5749, %v5745
      %v5751 = vrot.slane %v5750, 4
      %v5753 = vshll.u32 %v5656, 16
      %v5755 = vrot.slane %v5753, 5
      %v5756 = vsel %vm1652, %v5751, %v5755
      %v5758 = vshrl.u32 %v5645, 16
      %v5760 = vrot.slane %v5758, 4
      %v5761 = vshll.u32 %v5645, 16
      %v5763 = vrot.slane %v5761, 5
      %v5764 = vor.u32 %v5760, %v5763
      %v5765 = vrot.slane %v5764, 4
      %v5767 = vshll.u32 %v5646, 16
      %v5769 = vrot.slane %v5767, 5
      %v5770 = vsel %vm1652, %v5765, %v5769
      %v5771 = vshrl.u32 %v5646, 16
      %v5773 = vrot.slane %v5771, 4
      %v5774 = vor.u32 %v5773, %v5769
      %v5775 = vrot.slane %v5774, 4
      %v5777 = vshll.u32 %v5657, 16
      %v5779 = vrot.slane %v5777, 5
      %v5780 = vsel %vm1652, %v5775, %v5779
      %v5782 = vshrl.u32 %v5647, 16
      %v5784 = vrot.slane %v5782, 4
      %v5785 = vshll.u32 %v5647, 16
      %v5787 = vrot.slane %v5785, 5
      %v5788 = vor.u32 %v5784, %v5787
      %v5789 = vrot.slane %v5788, 4
      %v5791 = vshll.u32 %v5648, 16
      %v5793 = vrot.slane %v5791, 5
      %v5794 = vsel %vm1652, %v5789, %v5793
      %v5795 = vshrl.u32 %v5648, 16
      %v5797 = vrot.slane %v5795, 4
      %v5798 = vor.u32 %v5797, %v5793
      %v5799 = vrot.slane %v5798, 4
      %v5801 = vshll.u32 %v5658, 16
      %v5803 = vrot.slane %v5801, 5
      %v5804 = vsel %vm1652, %v5799, %v5803
      %v5806 = vshrl.u32 %v5649, 16
      %v5808 = vrot.slane %v5806, 4
      %v5809 = vshll.u32 %v5649, 16
      %v5811 = vrot.slane %v5809, 5
      %v5812 = vor.u32 %v5808, %v5811
      %v5813 = vrot.slane %v5812, 4
      %v5815 = vshll.u32 %v5650, 16
      %v5817 = vrot.slane %v5815, 5
      %v5818 = vsel %vm1652, %v5813, %v5817
      %v5819 = vshrl.u32 %v5650, 16
      %v5821 = vrot.slane %v5819, 4
      %v5822 = vor.u32 %v5821, %v5817
      %v5823 = vrot.slane %v5822, 4
      %v5825 = vshll.u32 %v5659, 16
      %v5827 = vrot.slane %v5825, 5
      %v5828 = vsel %vm1652, %v5823, %v5827
      %v5830 = vshrl.u32 %v5651, 16
      %v5832 = vrot.slane %v5830, 4
      %v5833 = vshll.u32 %v5651, 16
      %v5835 = vrot.slane %v5833, 5
      %v5836 = vor.u32 %v5832, %v5835
      %v5837 = vrot.slane %v5836, 4
      %v5839 = vshll.u32 %v5652, 16
      %v5841 = vrot.slane %v5839, 5
      %v5842 = vsel %vm1652, %v5837, %v5841
      %v5843 = vshrl.u32 %v5652, 16
      %v5845 = vrot.slane %v5843, 4
      %v5846 = vor.u32 %v5845, %v5841
      %v5847 = vrot.slane %v5846, 4
      %v5849 = vshll.u32 %v5660, 16
      %v5851 = vrot.slane %v5849, 5
      %v5852 = vsel %vm1652, %v5847, %v5851
      %v5853 = vld [vmem:[%s5636] sm:$0xe]
      %v5854 = vld [vmem:[%s5636 + $0xc] sm:$0xe]
      %v5855 = vld [vmem:[%s5636 + $0x18] sm:$0xe]
      %v5856 = vld [vmem:[%s5636 + $0x24] sm:$0xe]
      %v5857 = vld [vmem:[%s5636 + $0x30] sm:$0xe]
      %v5858 = vld [vmem:[%s5636 + $0x3c] sm:$0xe]
      %v5859 = vld [vmem:[%s5636 + $0x48] sm:$0xe]
      %v5860 = vld [vmem:[%s5636 + $0x54] sm:$0xe]
      %v5885 = vrot.slane %v5853, 5
      %v5886 = vrot.slane %v5885, 4
      %v5887 = vrot.slane %v5638, 5
      %v5888 = vsel %vm1935, %v5886, %v5887
      %v5889 = vrot.slane %v5887, 4
      %v5890 = vrot.slane %v5653, 5
      %v5891 = vsel %vm1935, %v5889, %v5890
      %v5892 = vrot.slane %v5854, 5
      %v5893 = vrot.slane %v5892, 4
      %v5894 = vrot.slane %v5640, 5
      %v5895 = vsel %vm1935, %v5893, %v5894
      %v5896 = vrot.slane %v5894, 4
      %v5897 = vrot.slane %v5654, 5
      %v5898 = vsel %vm1935, %v5896, %v5897
      %v5899 = vrot.slane %v5855, 5
      %v5900 = vrot.slane %v5899, 4
      %v5901 = vrot.slane %v5642, 5
      %v5902 = vsel %vm1935, %v5900, %v5901
      %v5903 = vrot.slane %v5901, 4
      %v5904 = vrot.slane %v5655, 5
      %v5905 = vsel %vm1935, %v5903, %v5904
      %v5906 = vrot.slane %v5856, 5
      %v5907 = vrot.slane %v5906, 4
      %v5908 = vrot.slane %v5644, 5
      %v5909 = vsel %vm1935, %v5907, %v5908
      %v5910 = vrot.slane %v5908, 4
      %v5911 = vrot.slane %v5656, 5
      %v5912 = vsel %vm1935, %v5910, %v5911
      %v5913 = vrot.slane %v5857, 5
      %v5914 = vrot.slane %v5913, 4
      %v5915 = vrot.slane %v5646, 5
      %v5916 = vsel %vm1935, %v5914, %v5915
      %v5917 = vrot.slane %v5915, 4
      %v5918 = vrot.slane %v5657, 5
      %v5919 = vsel %vm1935, %v5917, %v5918
      %v5920 = vrot.slane %v5858, 5
      %v5921 = vrot.slane %v5920, 4
      %v5922 = vrot.slane %v5648, 5
      %v5923 = vsel %vm1935, %v5921, %v5922
      %v5924 = vrot.slane %v5922, 4
      %v5925 = vrot.slane %v5658, 5
      %v5926 = vsel %vm1935, %v5924, %v5925
      %v5927 = vrot.slane %v5859, 5
      %v5928 = vrot.slane %v5927, 4
      %v5929 = vrot.slane %v5650, 5
      %v5930 = vsel %vm1935, %v5928, %v5929
      %v5931 = vrot.slane %v5929, 4
      %v5932 = vrot.slane %v5659, 5
      %v5933 = vsel %vm1935, %v5931, %v5932
      %v5934 = vrot.slane %v5860, 5
      %v5935 = vrot.slane %v5934, 4
      %v5936 = vrot.slane %v5652, 5
      %v5937 = vsel %vm1935, %v5935, %v5936
      %v5938 = vrot.slane %v5936, 4
      %v5939 = vrot.slane %v5660, 5
      %v5940 = vsel %vm1935, %v5938, %v5939
      %v5949 = vunpack.c.l.b16 %v5637
      %v5950 = vunpack.c.l.b16 %v5638
      %v5951 = vunpack.c.l.b16 %v5639
      %v5952 = vunpack.c.l.b16 %v5640
      %v5953 = vunpack.c.l.b16 %v5641
      %v5954 = vunpack.c.l.b16 %v5642
      %v5955 = vunpack.c.l.b16 %v5643
      %v5956 = vunpack.c.l.b16 %v5644
      %v5957 = vunpack.c.l.b16 %v5645
      %v5958 = vunpack.c.l.b16 %v5646
      %v5959 = vunpack.c.l.b16 %v5647
      %v5960 = vunpack.c.l.b16 %v5648
      %v5961 = vunpack.c.l.b16 %v5649
      %v5962 = vunpack.c.l.b16 %v5650
      %v5963 = vunpack.c.l.b16 %v5651
      %v5964 = vunpack.c.l.b16 %v5652
      %v5965 = vpack.c.b16 %v5950, %v5949
      %v5966 = vpack.c.b16 %v5952, %v5951
      %v5967 = vpack.c.b16 %v5954, %v5953
      %v5968 = vpack.c.b16 %v5956, %v5955
      %v5969 = vpack.c.b16 %v5958, %v5957
      %v5970 = vpack.c.b16 %v5960, %v5959
      %v5971 = vpack.c.b16 %v5962, %v5961
      %v5972 = vpack.c.b16 %v5964, %v5963
      %v5973 = vunpack.c.l.b16 %v5674
      %v5974 = vunpack.c.l.b16 %v5684
      %v5975 = vunpack.c.l.b16 %v5698
      %v5976 = vunpack.c.l.b16 %v5708
      %v5977 = vunpack.c.l.b16 %v5722
      %v5978 = vunpack.c.l.b16 %v5732
      %v5979 = vunpack.c.l.b16 %v5746
      %v5980 = vunpack.c.l.b16 %v5756
      %v5981 = vunpack.c.l.b16 %v5770
      %v5982 = vunpack.c.l.b16 %v5780
      %v5983 = vunpack.c.l.b16 %v5794
      %v5984 = vunpack.c.l.b16 %v5804
      %v5985 = vunpack.c.l.b16 %v5818
      %v5986 = vunpack.c.l.b16 %v5828
      %v5987 = vunpack.c.l.b16 %v5842
      %v5988 = vunpack.c.l.b16 %v5852
      %v5989 = vpack.c.b16 %v5974, %v5973
      %v5990 = vpack.c.b16 %v5976, %v5975
      %v5991 = vpack.c.b16 %v5978, %v5977
      %v5992 = vpack.c.b16 %v5980, %v5979
      %v5993 = vpack.c.b16 %v5982, %v5981
      %v5994 = vpack.c.b16 %v5984, %v5983
      %v5995 = vpack.c.b16 %v5986, %v5985
      %v5996 = vpack.c.b16 %v5988, %v5987
      %5997 = vrot.lane.b32.xlu0 %v5989, 8
      %v5998 = vpop.permute.xlu0 %5997
      %5999 = vrot.lane.b32.xlu0 %v5990, 8
      %v6000 = vpop.permute.xlu0 %5999
      %6001 = vrot.lane.b32.xlu0 %v5991, 8
      %v6002 = vpop.permute.xlu0 %6001
      %6003 = vrot.lane.b32.xlu0 %v5992, 8
      %v6004 = vpop.permute.xlu0 %6003
      %6005 = vrot.lane.b32.xlu0 %v5993, 8
      %v6006 = vpop.permute.xlu0 %6005
      %6007 = vrot.lane.b32.xlu0 %v5994, 8
      %v6008 = vpop.permute.xlu0 %6007
      %6009 = vrot.lane.b32.xlu0 %v5995, 8
      %v6010 = vpop.permute.xlu0 %6009
      %6011 = vrot.lane.b32.xlu0 %v5996, 8
      %v6012 = vpop.permute.xlu0 %6011
      %v6013 = vunpack.c.l.b16 %v5888
      %v6014 = vunpack.c.l.b16 %v5891
      %v6015 = vunpack.c.l.b16 %v5895
      %v6016 = vunpack.c.l.b16 %v5898
      %v6017 = vunpack.c.l.b16 %v5902
      %v6018 = vunpack.c.l.b16 %v5905
      %v6019 = vunpack.c.l.b16 %v5909
      %v6020 = vunpack.c.l.b16 %v5912
      %v6021 = vunpack.c.l.b16 %v5916
      %v6022 = vunpack.c.l.b16 %v5919
      %v6023 = vunpack.c.l.b16 %v5923
      %v6024 = vunpack.c.l.b16 %v5926
      %v6025 = vunpack.c.l.b16 %v5930
      %v6026 = vunpack.c.l.b16 %v5933
      %v6027 = vunpack.c.l.b16 %v5937
      %v6028 = vunpack.c.l.b16 %v5940
      %v6029 = vpack.c.b16 %v6014, %v6013
      %v6030 = vpack.c.b16 %v6016, %v6015
      %v6031 = vpack.c.b16 %v6018, %v6017
      %v6032 = vpack.c.b16 %v6020, %v6019
      %v6033 = vpack.c.b16 %v6022, %v6021
      %v6034 = vpack.c.b16 %v6024, %v6023
      %v6035 = vpack.c.b16 %v6026, %v6025
      %v6036 = vpack.c.b16 %v6028, %v6027
      %6037 = vrot.lane.b32.xlu0 %v6029, 16
      %v6038 = vpop.permute.xlu0 %6037
      %6039 = vrot.lane.b32.xlu0 %v6030, 16
      %v6040 = vpop.permute.xlu0 %6039
      %6041 = vrot.lane.b32.xlu0 %v6031, 16
      %v6042 = vpop.permute.xlu0 %6041
      %6043 = vrot.lane.b32.xlu0 %v6032, 16
      %v6044 = vpop.permute.xlu0 %6043
      %6045 = vrot.lane.b32.xlu0 %v6033, 16
      %v6046 = vpop.permute.xlu0 %6045
      %6047 = vrot.lane.b32.xlu0 %v6034, 16
      %v6048 = vpop.permute.xlu0 %6047
      %6049 = vrot.lane.b32.xlu0 %v6035, 16
      %v6050 = vpop.permute.xlu0 %6049
      %6051 = vrot.lane.b32.xlu0 %v6036, 16
      %v6052 = vpop.permute.xlu0 %6051
      %v6055 = vsel %vm2146, %v5965, %v5998
      %v6058 = vsel %vm2146, %v5966, %v6000
      %v6061 = vsel %vm2146, %v5967, %v6002
      %v6064 = vsel %vm2146, %v5968, %v6004
      %v6067 = vsel %vm2146, %v5969, %v6006
      %v6070 = vsel %vm2146, %v5970, %v6008
      %v6073 = vsel %vm2146, %v5971, %v6010
      %v6076 = vsel %vm2146, %v5972, %v6012
      %v6078 = vsel %vm2177, %v6055, %v6038
      %v6080 = vsel %vm2177, %v6058, %v6040
      %v6082 = vsel %vm2177, %v6061, %v6042
      %v6084 = vsel %vm2177, %v6064, %v6044
      %v6086 = vsel %vm2177, %v6067, %v6046
      %v6088 = vsel %vm2177, %v6070, %v6048
      %v6090 = vsel %vm2177, %v6073, %v6050
      %v6092 = vsel %vm2177, %v6076, %v6052
      %s6093 = scalar_lea.vmem %s8, 24
      %v6094 = vld [vmem:[%s6093] sm:$0xf]
      %v6095 = vld [vmem:[%s6093 + $0x4] sm:$0xf]
      %v6096 = vld [vmem:[%s6093 + $0x8] sm:$0xf]
      %v6100 = vunpack.c.l.b16 %v6094
      %v6101 = vunpack.c.l.b16 %v6095
      %v6102 = vunpack.c.l.b16 %v6096
      %v6103 = vpack.c.b16 %v6101, %v6100
      %v6104 = vpack.c.b16 %v6102, %v6102
      %v6106 = vsel %vm2210, %v6078, 0
      %v6108 = vsel %vm2210, %v6080, 0
      %v6110 = vsel %vm2210, %v6082, 0
      %v6112 = vsel %vm2210, %v6084, 0
      %v6114 = vsel %vm2210, %v6086, 0
      %v6116 = vsel %vm2210, %v6088, 0
      %v6118 = vsel %vm2210, %v6090, 0
      %v6120 = vsel %vm2210, %v6092, 0
      %v6123 = vsel %vm2231, %v6104, 0
      %6125 = vmatprep.subr.bf16.mxu0 0
      %6126 = vmatpush1.bf16.msra.mxu0 %v6103
      %6127 = vmatprep.subr.bf16.mxu0 0
      %6128 = vmatpush1.bf16.msra.mxu0 %v6123
      %6129 = vmatprep.subr.bf16.mxu0 0
      %6130 = vmatpush1.bf16.msra.mxu0 0
      %6131 = vmatprep.subr.bf16.mxu0 0
      %6132 = vmatpush1.bf16.msra.mxu0 0
      %6133 = vmatprep.subr.bf16.mxu0 0
      %6134 = vmatpush1.bf16.msra.mxu0 0
      %6135 = vmatprep.subr.bf16.mxu0 0
      %6136 = vmatpush1.bf16.msra.mxu0 0
      %6137 = vmatprep.subr.bf16.mxu0 0
      %6138 = vmatpush1.bf16.msra.mxu0 0
      %6139 = vmatprep.subr.bf16.mxu0 0
      %6140 = vmatpush1.bf16.msra.mxu0 0
      %6141 = vmatprep.subr.bf16.mxu0 0
      %6142 = vmatpush1.bf16.msra.mxu0 0
      %6143 = vmatprep.subr.bf16.mxu0 0
      %6144 = vmatpush1.bf16.msra.mxu0 0
      %6145 = vmatprep.subr.bf16.mxu0 0
      %6146 = vmatpush1.bf16.msra.mxu0 0
      %6147 = vmatprep.subr.bf16.mxu0 0
      %6148 = vmatpush1.bf16.msra.mxu0 0
      %6149 = vmatprep.subr.bf16.mxu0 0
      %6150 = vmatpush1.bf16.msra.mxu0 0
      %6151 = vmatprep.subr.bf16.mxu0 0
      %6152 = vmatpush1.bf16.msra.mxu0 0
      %6153 = vmatprep.subr.bf16.mxu0 0
      %6154 = vmatpush1.bf16.msra.mxu0 0
      %6155 = vmatprep.subr.bf16.mxu0 0
      %6156 = vmatpush1.bf16.msra.mxu0 0
      %6157 = vmatprep.mubr.bf16.mxu0 0
      %6158 = vmatmul.mubr.bf16.gmra.mrb[0].mxu0 %v6106
      %v6159 = vpop.f32.mrb[0].mxu0
      %v6160 = vadd.f32 0.0, %v6159
      %v6161 = vpop.f32.mrb[0].mxu0
      %v6162 = vpop.f32.mrb[0].mxu0
      %v6163 = vadd.f32 0.0, %v6162
      %v6164 = vpop.f32.mrb[0].mxu0
      %6165 = vmatprep.mubr.bf16.mxu0 0
      %6166 = vmatmul.mubr.bf16.gmra.mrb[0].mxu0 %v6108
      %v6167 = vpop.f32.mrb[0].mxu0
      %v6168 = vadd.f32 0.0, %v6167
      %v6169 = vpop.f32.mrb[0].mxu0
      %v6170 = vpop.f32.mrb[0].mxu0
      %v6171 = vadd.f32 0.0, %v6170
      %v6172 = vpop.f32.mrb[0].mxu0
      %6173 = vmatprep.mubr.bf16.mxu0 0
      %6174 = vmatmul.mubr.bf16.gmra.mrb[0].mxu0 %v6110
      %v6175 = vpop.f32.mrb[0].mxu0
      %v6176 = vadd.f32 0.0, %v6175
      %v6177 = vpop.f32.mrb[0].mxu0
      %v6178 = vpop.f32.mrb[0].mxu0
      %v6179 = vadd.f32 0.0, %v6178
      %v6180 = vpop.f32.mrb[0].mxu0
      %6181 = vmatprep.mubr.bf16.mxu0 0
      %6182 = vmatmul.mubr.bf16.gmra.mrb[0].mxu0 %v6112
      %v6183 = vpop.f32.mrb[0].mxu0
      %v6184 = vadd.f32 0.0, %v6183
      %v6185 = vpop.f32.mrb[0].mxu0
      %v6186 = vpop.f32.mrb[0].mxu0
      %v6187 = vadd.f32 0.0, %v6186
      %v6188 = vpop.f32.mrb[0].mxu0
      %6189 = vmatprep.mubr.bf16.mxu0 0
      %6190 = vmatmul.mubr.bf16.gmra.mrb[0].mxu0 %v6114
      %v6191 = vpop.f32.mrb[0].mxu0
      %v6192 = vadd.f32 0.0, %v6191
      %v6193 = vpop.f32.mrb[0].mxu0
      %v6194 = vpop.f32.mrb[0].mxu0
      %v6195 = vadd.f32 0.0, %v6194
      %v6196 = vpop.f32.mrb[0].mxu0
      %6197 = vmatprep.mubr.bf16.mxu0 0
      %6198 = vmatmul.mubr.bf16.gmra.mrb[0].mxu0 %v6116
      %v6199 = vpop.f32.mrb[0].mxu0
      %v6200 = vadd.f32 0.0, %v6199
      %v6201 = vpop.f32.mrb[0].mxu0
      %v6202 = vpop.f32.mrb[0].mxu0
      %v6203 = vadd.f32 0.0, %v6202
      %v6204 = vpop.f32.mrb[0].mxu0
      %6205 = vmatprep.mubr.bf16.mxu0 0
      %6206 = vmatmul.mubr.bf16.gmra.mrb[0].mxu0 %v6118
      %v6207 = vpop.f32.mrb[0].mxu0
      %v6208 = vadd.f32 0.0, %v6207
      %v6209 = vpop.f32.mrb[0].mxu0
      %v6210 = vpop.f32.mrb[0].mxu0
      %v6211 = vadd.f32 0.0, %v6210
      %v6212 = vpop.f32.mrb[0].mxu0
      %6213 = vmatprep.mubr.bf16.mxu0 0
      %6214 = vmatmul.mubr.bf16.gmra.mrb[0].mxu0 %v6120
      %v6215 = vpop.f32.mrb[0].mxu0
      %v6216 = vadd.f32 0.0, %v6215
      %v6217 = vpop.f32.mrb[0].mxu0
      %v6218 = vpop.f32.mrb[0].mxu0
      %v6219 = vadd.f32 0.0, %v6218
      %v6220 = vpop.f32.mrb[0].mxu0
      %6221 = vdwg.mxu0
      %v6222 = vld [vmem:[#allocation4] sm:$0xff]
      %v6223 = vld [vmem:[#allocation4 + $0x8] sm:$0xff]
      %v6224 = vld [vmem:[#allocation4 + $0x10] sm:$0xff]
      %v6225 = vld [vmem:[#allocation4 + $0x18] sm:$0xff]
      %v6226 = vld [vmem:[#allocation4 + $0x20] sm:$0xff]
      %v6227 = vld [vmem:[#allocation4 + $0x28] sm:$0xff]
      %v6228 = vld [vmem:[#allocation4 + $0x30] sm:$0xff]
      %v6229 = vld [vmem:[#allocation4 + $0x38] sm:$0xff]
      %v6230 = vld [vmem:[#allocation4 + $0x40] sm:$0xff]
      %v6231 = vld [vmem:[#allocation4 + $0x48] sm:$0xff]
      %v6232 = vld [vmem:[#allocation4 + $0x50] sm:$0xff]
      %v6233 = vld [vmem:[#allocation4 + $0x58] sm:$0xff]
      %v6234 = vld [vmem:[#allocation4 + $0x60] sm:$0xff]
      %v6235 = vld [vmem:[#allocation4 + $0x68] sm:$0xff]
      %v6236 = vld [vmem:[#allocation4 + $0x70] sm:$0xff]
      %v6237 = vld [vmem:[#allocation4 + $0x78] sm:$0xff]
      %v6238 = vadd.f32 %v6222, %v6160
      %v6239 = vadd.f32 %v6223, %v6163
      %v6240 = vadd.f32 %v6224, %v6168
      %v6241 = vadd.f32 %v6225, %v6171
      %v6242 = vadd.f32 %v6226, %v6176
      %v6243 = vadd.f32 %v6227, %v6179
      %v6244 = vadd.f32 %v6228, %v6184
      %v6245 = vadd.f32 %v6229, %v6187
      %v6246 = vadd.f32 %v6230, %v6192
      %v6247 = vadd.f32 %v6231, %v6195
      %v6248 = vadd.f32 %v6232, %v6200
      %v6249 = vadd.f32 %v6233, %v6203
      %v6250 = vadd.f32 %v6234, %v6208
      %v6251 = vadd.f32 %v6235, %v6211
      %v6252 = vadd.f32 %v6236, %v6216
      %v6253 = vadd.f32 %v6237, %v6219
      %6254 = vst.msk [vmem:[#allocation4] sm:$0xff] %vm2146, %v6238
      %6255 = vst.msk [vmem:[#allocation4 + $0x8] sm:$0xff] %vm2146, %v6239
      %6256 = vst.msk [vmem:[#allocation4 + $0x10] sm:$0xff] %vm2146, %v6240
      %6257 = vst.msk [vmem:[#allocation4 + $0x18] sm:$0xff] %vm2146, %v6241
      %6258 = vst.msk [vmem:[#allocation4 + $0x20] sm:$0xff] %vm2146, %v6242
      %6259 = vst.msk [vmem:[#allocation4 + $0x28] sm:$0xff] %vm2146, %v6243
      %6260 = vst.msk [vmem:[#allocation4 + $0x30] sm:$0xff] %vm2146, %v6244
      %6261 = vst.msk [vmem:[#allocation4 + $0x38] sm:$0xff] %vm2146, %v6245
      %6262 = vst.msk [vmem:[#allocation4 + $0x40] sm:$0xff] %vm2146, %v6246
      %6263 = vst.msk [vmem:[#allocation4 + $0x48] sm:$0xff] %vm2146, %v6247
      %6264 = vst.msk [vmem:[#allocation4 + $0x50] sm:$0xff] %vm2146, %v6248
      %6265 = vst.msk [vmem:[#allocation4 + $0x58] sm:$0xff] %vm2146, %v6249
      %6266 = vst.msk [vmem:[#allocation4 + $0x60] sm:$0xff] %vm2146, %v6250
      %6267 = vst.msk [vmem:[#allocation4 + $0x68] sm:$0xff] %vm2146, %v6251
      %6268 = vst.msk [vmem:[#allocation4 + $0x70] sm:$0xff] %vm2146, %v6252
      %6269 = vst.msk [vmem:[#allocation4 + $0x78] sm:$0xff] %vm2146, %v6253
      %v6270 = vld [vmem:[#allocation4] sm:$0xff]
      %v6271 = vld [vmem:[#allocation4 + $0x8] sm:$0xff]
      %v6272 = vld [vmem:[#allocation4 + $0x10] sm:$0xff]
      %v6273 = vld [vmem:[#allocation4 + $0x18] sm:$0xff]
      %v6274 = vld [vmem:[#allocation4 + $0x20] sm:$0xff]
      %v6275 = vld [vmem:[#allocation4 + $0x28] sm:$0xff]
      %v6276 = vld [vmem:[#allocation4 + $0x30] sm:$0xff]
      %v6277 = vld [vmem:[#allocation4 + $0x38] sm:$0xff]
      %v6278 = vld [vmem:[#allocation4 + $0x40] sm:$0xff]
      %v6279 = vld [vmem:[#allocation4 + $0x48] sm:$0xff]
      %v6280 = vld [vmem:[#allocation4 + $0x50] sm:$0xff]
      %v6281 = vld [vmem:[#allocation4 + $0x58] sm:$0xff]
      %v6282 = vld [vmem:[#allocation4 + $0x60] sm:$0xff]
      %v6283 = vld [vmem:[#allocation4 + $0x68] sm:$0xff]
      %v6284 = vld [vmem:[#allocation4 + $0x70] sm:$0xff]
      %v6285 = vld [vmem:[#allocation4 + $0x78] sm:$0xff]
      %v6286 = vld [vmem:[%s9] sm:$0x1]
      %v6288 = vlaneseq
      %v6289 = vshrl.u32 %v6288, 7
      %v6290 = vsub.s32 0, %v6289
      %v6291 = vrot.slane %v6286, %v6290
      %v6293 = vadd.f32 %v6270, %v6291
      %v6294 = vadd.f32 %v6271, %v6291
      %v6295 = vadd.f32 %v6272, %v6291
      %v6296 = vadd.f32 %v6273, %v6291
      %v6297 = vadd.f32 %v6274, %v6291
      %v6298 = vadd.f32 %v6275, %v6291
      %v6299 = vadd.f32 %v6276, %v6291
      %v6300 = vadd.f32 %v6277, %v6291
      %v6301 = vadd.f32 %v6278, %v6291
      %v6302 = vadd.f32 %v6279, %v6291
      %v6303 = vadd.f32 %v6280, %v6291
      %v6304 = vadd.f32 %v6281, %v6291
      %v6305 = vadd.f32 %v6282, %v6291
      %v6306 = vadd.f32 %v6283, %v6291
      %v6307 = vadd.f32 %v6284, %v6291
      %v6308 = vadd.f32 %v6285, %v6291
      %v6309 = vmax.f32 %v6293, 0.0
      %v6310 = vmax.f32 %v6294, 0.0
      %v6311 = vmax.f32 %v6295, 0.0
      %v6312 = vmax.f32 %v6296, 0.0
      %v6313 = vmax.f32 %v6297, 0.0
      %v6314 = vmax.f32 %v6298, 0.0
      %v6315 = vmax.f32 %v6299, 0.0
      %v6316 = vmax.f32 %v6300, 0.0
      %v6317 = vmax.f32 %v6301, 0.0
      %v6318 = vmax.f32 %v6302, 0.0
      %v6319 = vmax.f32 %v6303, 0.0
      %v6320 = vmax.f32 %v6304, 0.0
      %v6321 = vmax.f32 %v6305, 0.0
      %v6322 = vmax.f32 %v6306, 0.0
      %v6323 = vmax.f32 %v6307, 0.0
      %v6324 = vmax.f32 %v6308, 0.0
      %6325 = vst.msk [vmem:[%s707] sm:$0xff] %vm2146, %v6309
      %6326 = vst.msk [vmem:[%s707 + $0x8] sm:$0xff] %vm2146, %v6310
      %6327 = vst.msk [vmem:[%s707 + $0x10] sm:$0xff] %vm2146, %v6311
      %6328 = vst.msk [vmem:[%s707 + $0x18] sm:$0xff] %vm2146, %v6312
      %6329 = vst.msk [vmem:[%s707 + $0x20] sm:$0xff] %vm2146, %v6313
      %6330 = vst.msk [vmem:[%s707 + $0x28] sm:$0xff] %vm2146, %v6314
      %6331 = vst.msk [vmem:[%s707 + $0x30] sm:$0xff] %vm2146, %v6315
      %6332 = vst.msk [vmem:[%s707 + $0x38] sm:$0xff] %vm2146, %v6316
      %6333 = vst.msk [vmem:[%s707 + $0x40] sm:$0xff] %vm2146, %v6317
      %6334 = vst.msk [vmem:[%s707 + $0x48] sm:$0xff] %vm2146, %v6318
      %6335 = vst.msk [vmem:[%s707 + $0x50] sm:$0xff] %vm2146, %v6319
      %6336 = vst.msk [vmem:[%s707 + $0x58] sm:$0xff] %vm2146, %v6320
      %6337 = vst.msk [vmem:[%s707 + $0x60] sm:$0xff] %vm2146, %v6321
      %6338 = vst.msk [vmem:[%s707 + $0x68] sm:$0xff] %vm2146, %v6322
      %6339 = vst.msk [vmem:[%s707 + $0x70] sm:$0xff] %vm2146, %v6323
      %6340 = vst.msk [vmem:[%s707 + $0x78] sm:$0xff] %vm2146, %v6324
      %s6341 = smul.u32 16, %s26
      %p6342 = scmp.lt.s32.totalorder %s25, 1
      %s6343 = scalar_select %p6342, %s25, 1
      %p6344 = scmp.lt.s32.totalorder %s6341, 31
      %s6345 = scalar_select %p6344, %s6341, 31
      %s6346 = smul.addr %s6343, 32
      %s6347 = sadd.s32 %s6345, %s6346
      %s6348 = smul.addr %s6347, 8
      %s6349 = scalar_lea.vmem %s10, %s6348
      // Predicated region
      $region85: #{tpu_custom_call.1} parent=59 // pred_check
        %p6350 = pneg %p337
      $region86: #{tpu_custom_call.1} parent=59 // pred_check_branch
        %6352 = sbr.rel (%p6350) target = $region88
      $region87: #{tpu_custom_call.1} parent=59 // pred_region
        %s6353 = smul.u32 16, %s26
      $region88: #{tpu_custom_call.1} parent=59 // pred_fallthru
        _
    $region60: #{tpu_custom_call.1} parent=5 // pred_fallthru
      _
    %p6354 = scmp.le.s32.totalorder 2, %s16
    // Predicated region
    $region89: #{tpu_custom_call.1} parent=5 // pred_check
      %p6355 = pneg %p6354
    $region90: #{tpu_custom_call.1} parent=5 // pred_check_branch
      %6357 = sbr.rel (%p6355) target = $region92
    $region91: #{tpu_custom_call.1} parent=5 // pred_region
      %s6358 = ssub.s32 %s16, 2
      // Predicated region
      $region93: #{tpu_custom_call.1} parent=91 // pred_check
        %p6359 = pneg %p343
      $region94: #{tpu_custom_call.1} parent=91 // pred_check_branch
        %6361 = sbr.rel (%p6359) target = $region96
      $region95: #{tpu_custom_call.1} parent=91 // pred_region
        %s6362 = smul.u32 16, %s28
        %p6363 = scmp.lt.s32.totalorder %s27, 1
        %s6364 = scalar_select %p6363, %s27, 1
        %p6365 = scmp.lt.s32.totalorder %s6362, 31
        %s6366 = scalar_select %p6365, %s6362, 31
        %s6367 = smul.addr %s6364, 32
        %s6368 = sadd.s32 %s6366, %s6367
        %s6369 = smul.addr %s6368, 8
        %s6370 = scalar_lea.vmem %s10, %s6369
      $region96: #{tpu_custom_call.1} parent=91 // pred_fallthru
        _
    $region92: #{tpu_custom_call.1} parent=5 // pred_fallthru
      _
  $region6: #{tpu_custom_call.1} parent=0 // loop_footer
    %s20 = sadd.s32 1, %s16
  $region7: #{tpu_custom_call.1} parent=0 // loop_footer_branch
    %15 = sbr.rel target = $region3
  $region8: #{tpu_custom_call.1} parent=0 // loop_exit
    _

</llo_original>
